<compile_context>
chip_gen: v7x
topology: tpu7x:2x2x1
jax: 0.10.0
libtpu: 0.0.40
codegen_flags: <defaults>
</compile_context>

<pallas_src>
import functools

import jax
import jax.numpy as jnp
import numpy as np
from jax.experimental import pallas as pl
from jax.experimental.pallas import tpu as pltpu

EPS = 1e-5  # PyTorch nn.LayerNorm default


def _layernorm(x, g, b):
    mu = jnp.mean(x, axis=-1, keepdims=True)
    var = jnp.mean((x - mu) ** 2, axis=-1, keepdims=True)
    return (x - mu) * jax.lax.rsqrt(var + EPS) * g + b


# ----------------------------------------------------------------------------
# Fused GPT forward kernel: one grid step == one batch element.
#   x_ref:   (T, C)  f32   (leading batch dim squeezed by BlockSpec)
#   weights: stacked per-layer arrays (leading dim = n_layer), bf16 matrices,
#            f32 biases / LayerNorm params.
#   o_ref:   (T, Vp) f32   padded-vocab logits (lane-dense, Vp % 128 == 0)
# ----------------------------------------------------------------------------
def gpt_kernel(x_ref,
               ln1_g_ref, ln1_b_ref, wqkv_ref, wp_ref, bp_ref,
               ln2_g_ref, ln2_b_ref, w1_ref, b1_ref, w2_ref, b2_ref,
               lnf_g_ref, lnf_b_ref, wlm_ref, blm_ref,
               o_ref, *, n_layer, n_head):
    x = x_ref[...]                                   # (T, C) f32
    T, C = x.shape
    hs = C // n_head
    scale = hs ** -0.5

    # Causal mask built once, reused by every layer (no per-head / per-layer iota).
    row = jax.lax.broadcasted_iota(jnp.int32, (T, T), 0)
    col = jax.lax.broadcasted_iota(jnp.int32, (T, T), 1)
    causal = (row >= col)[None]                      # (1, T, T)

    for l in range(n_layer):                         # unrolled at trace time
        # ---------------- multi-head causal self-attention ----------------
        xn = _layernorm(x, ln1_g_ref[l], ln1_b_ref[l]).astype(jnp.bfloat16)
        qkv = jnp.dot(xn, wqkv_ref[l],
                      preferred_element_type=jnp.float32)          # (T, 3C) f32
        q = qkv[:, :C].reshape(T, n_head, hs)                       # (T, H, hs)
        k = qkv[:, C:2 * C].reshape(T, n_head, hs)
        v = qkv[:, 2 * C:].reshape(T, n_head, hs)
        # batched over heads: (T,H,hs) x (T,H,hs) -> (H, T, T)
        wei = jnp.einsum('qhd,khd->hqk', q, k,
                         preferred_element_type=jnp.float32) * scale
        wei = jnp.where(causal, wei, -jnp.inf)
        wei = jax.nn.softmax(wei, axis=-1)                          # f32
        att = jnp.einsum('hqk,khd->qhd', wei, v,
                         preferred_element_type=jnp.float32)        # (T, H, hs)
        att = att.reshape(T, C)                                     # head concat
        att = jnp.dot(att.astype(jnp.bfloat16), wp_ref[l],
                      preferred_element_type=jnp.float32) + bp_ref[l]
        x = x + att

        # ---------------- feed-forward: Linear -> ReLU -> Linear -----------
        xn2 = _layernorm(x, ln2_g_ref[l], ln2_b_ref[l]).astype(jnp.bfloat16)
        h1 = jnp.dot(xn2, w1_ref[l],
                     preferred_element_type=jnp.float32) + b1_ref[l]
        h1 = jnp.maximum(h1, 0.0).astype(jnp.bfloat16)
        x = x + jnp.dot(h1, w2_ref[l],
                        preferred_element_type=jnp.float32) + b2_ref[l]

    # ---------------- final LayerNorm + LM head (padded, lane-dense) -------
    xn = _layernorm(x, lnf_g_ref[...], lnf_b_ref[...]).astype(jnp.bfloat16)
    o_ref[...] = jnp.dot(xn, wlm_ref[...],
                         preferred_element_type=jnp.float32) + blm_ref[...]


def _const_spec(a):
    """Full-extent BlockSpec (same block index every grid step -> DMA'd once)."""
    r = a.ndim
    return pl.BlockSpec(a.shape, lambda b, _r=r: (0,) * _r)


def gpt_forward(idx, params, cfg):
    """Pallas forward: returns logits (B, T, vocab).  (targets=None path)."""
    B, T = idx.shape
    C = cfg['n_embd']
    L = cfg['n_layer']
    H = cfg['n_head']
    V = params['w_lm'].shape[1]
    Vp = ((V + 127) // 128) * 128                     # lane-dense padded vocab

    # Embedding gather + positional add: plain-JAX glue.
    x = params['tok_emb'][idx] + params['pos_emb'][:T][None]        # (B, T, C) f32

    # Pad LM head to a multiple of 128 lanes; extra logit columns are exactly 0.
    # TODO(synk): stream/tile w_lm over the vocab dim inside the kernel for realistic
    # vocab sizes (a full [C, V] slab would not fit VMEM at e.g. V ~ 50k).
    wlm_p = jnp.pad(params['w_lm'], ((0, 0), (0, Vp - V)))
    blm_p = jnp.pad(params['b_lm'], ((0, 0), (0, Vp - V)))

    weights = [params['ln1_g'], params['ln1_b'], params['wqkv'],
               params['wp'], params['bp'],
               params['ln2_g'], params['ln2_b'],
               params['w1'], params['b1'], params['w2'], params['b2'],
               params['lnf_g'], params['lnf_b'], wlm_p, blm_p]

    logits_p = pl.pallas_call(
        functools.partial(gpt_kernel, n_layer=L, n_head=H),
        out_shape=jax.ShapeDtypeStruct((B, T, Vp), jnp.float32),
        grid=(B,),
        in_specs=[pl.BlockSpec((None, T, C), lambda b: (b, 0, 0))]
                 + [_const_spec(w) for w in weights],
        out_specs=pl.BlockSpec((None, T, Vp), lambda b: (b, 0, 0)),
        compiler_params=pltpu.CompilerParams(
            dimension_semantics=("parallel",),        # 2 TCs on v7x split the batch
            vmem_limit_bytes=64 * 1024 * 1024),
    )(x, *weights)
    return logits_p[:, :, :V]


# ----------------------------------------------------------------------------
# Pure-JAX reference (mirrors the kernel's bf16-operand / f32-accumulate math).
# ----------------------------------------------------------------------------
def ref_forward(idx, params, cfg):
    H, C, L = cfg['n_head'], cfg['n_embd'], cfg['n_layer']
    hs = C // H
    B, T = idx.shape
    x = params['tok_emb'][idx] + params['pos_emb'][:T][None]
    mask = jnp.tril(jnp.ones((T, T), bool))
    for l in range(L):
        xn = _layernorm(x, params['ln1_g'][l], params['ln1_b'][l]).astype(jnp.bfloat16)
        qkv = jnp.einsum('btc,cd->btd', xn, params['wqkv'][l],
                         preferred_element_type=jnp.float32)
        q = qkv[..., :C].reshape(B, T, H, hs)
        k = qkv[..., C:2 * C].reshape(B, T, H, hs)
        v = qkv[..., 2 * C:].reshape(B, T, H, hs)
        wei = jnp.einsum('bqhd,bkhd->bhqk', q, k) * (hs ** -0.5)
        wei = jnp.where(mask, wei, -jnp.inf)
        wei = jax.nn.softmax(wei, axis=-1)
        att = jnp.einsum('bhqk,bkhd->bqhd', wei, v).reshape(B, T, C)
        att = jnp.einsum('btc,cd->btd', att.astype(jnp.bfloat16), params['wp'][l],
                         preferred_element_type=jnp.float32) + params['bp'][l]
        x = x + att
        xn2 = _layernorm(x, params['ln2_g'][l], params['ln2_b'][l]).astype(jnp.bfloat16)
        h1 = jnp.einsum('btc,cf->btf', xn2, params['w1'][l],
                        preferred_element_type=jnp.float32) + params['b1'][l]
        h1 = jnp.maximum(h1, 0.0).astype(jnp.bfloat16)
        x = x + jnp.einsum('btf,fc->btc', h1, params['w2'][l],
                           preferred_element_type=jnp.float32) + params['b2'][l]
    xn = _layernorm(x, params['lnf_g'], params['lnf_b']).astype(jnp.bfloat16)
    return jnp.einsum('btc,cv->btv', xn, params['w_lm'],
                      preferred_element_type=jnp.float32) + params['b_lm']


# ----------------------------------------------------------------------------
# Deterministic synthetic parameter init (matches the module's _init_weights rules:
# Linear/Embedding ~ N(0, 0.02), biases zero, LayerNorm gamma=1 beta=0).
# Matmul weights stored in bf16 (MXU native); biases / LN params / embeddings f32.
# ----------------------------------------------------------------------------
def init_params(key, vocab_size, n_embd, block_size, n_layer):
    C = n_embd

    def nrm(k, shape, dtype=jnp.float32):
        return (0.02 * jax.random.normal(k, shape, jnp.float32)).astype(dtype)

    keys = iter(jax.random.split(key, 3 + 4 * n_layer))
    params = {
        'tok_emb': nrm(next(keys), (vocab_size, C)),
        'pos_emb': nrm(next(keys), (block_size, C)),
        'lnf_g': jnp.ones((1, C), jnp.float32),
        'lnf_b': jnp.zeros((1, C), jnp.float32),
        'w_lm': nrm(next(keys), (C, vocab_size), jnp.bfloat16),
        'b_lm': jnp.zeros((1, vocab_size), jnp.float32),
    }
    wqkv, wp, w1, w2 = [], [], [], []
    for _ in range(n_layer):
        wqkv.append(nrm(next(keys), (C, 3 * C), jnp.bfloat16))   # fused Q|K|V
        wp.append(nrm(next(keys), (C, C), jnp.bfloat16))
        w1.append(nrm(next(keys), (C, 4 * C), jnp.bfloat16))
        w2.append(nrm(next(keys), (4 * C, C), jnp.bfloat16))
    params.update(
        ln1_g=jnp.ones((n_layer, 1, C), jnp.float32),
        ln1_b=jnp.zeros((n_layer, 1, C), jnp.float32),
        ln2_g=jnp.ones((n_layer, 1, C), jnp.float32),
        ln2_b=jnp.zeros((n_layer, 1, C), jnp.float32),
        wqkv=jnp.stack(wqkv),
        wp=jnp.stack(wp),
        bp=jnp.zeros((n_layer, 1, C), jnp.float32),
        w1=jnp.stack(w1),
        b1=jnp.zeros((n_layer, 1, 4 * C), jnp.float32),
        w2=jnp.stack(w2),
        b2=jnp.zeros((n_layer, 1, C), jnp.float32),
    )
    return params


if __name__ == "__main__":
    cfg = dict(n_embd=32, n_head=4, block_size=8, n_layer=2, dropout=0.0)
    vocab_size = 65  # e.g. tiny-Shakespeare character vocabulary

    key = jax.random.PRNGKey(0)
    kparam, kidx = jax.random.split(key)
    params = init_params(kparam, vocab_size, cfg['n_embd'],
                         cfg['block_size'], cfg['n_layer'])

    B, T = 2, cfg['block_size']
    idx = jax.random.randint(kidx, (B, T), 0, vocab_size, dtype=jnp.int32)

    logits = gpt_forward(idx, params, cfg)            # (B, T, vocab_size)
    logits = jax.block_until_ready(logits)

    # TODO(synk): cross-entropy loss path (targets != None) left in plain JAX land;
    # forward here implements the targets=None path (logits only), like generate().
    ref = jax.block_until_ready(ref_forward(idx, params, cfg))
    np.testing.assert_allclose(np.asarray(logits), np.asarray(ref, dtype=np.float32),
                               atol=5e-3, rtol=5e-3)
    print("KERNEL_OK")
</pallas_src>

<mosaic_0001>
module attributes {stable_mosaic.version = 11 : i64} {
  func.func @gpt_kernel(%arg0: i32, %arg1: memref<1x8x32xf32, #tpu.memory_space<vmem>>, %arg2: memref<2x1x32xf32, #tpu.memory_space<vmem>>, %arg3: memref<2x1x32xf32, #tpu.memory_space<vmem>>, %arg4: memref<2x32x96xbf16, #tpu.memory_space<vmem>>, %arg5: memref<2x32x32xbf16, #tpu.memory_space<vmem>>, %arg6: memref<2x1x32xf32, #tpu.memory_space<vmem>>, %arg7: memref<2x1x32xf32, #tpu.memory_space<vmem>>, %arg8: memref<2x1x32xf32, #tpu.memory_space<vmem>>, %arg9: memref<2x32x128xbf16, #tpu.memory_space<vmem>>, %arg10: memref<2x1x128xf32, #tpu.memory_space<vmem>>, %arg11: memref<2x128x32xbf16, #tpu.memory_space<vmem>>, %arg12: memref<2x1x32xf32, #tpu.memory_space<vmem>>, %arg13: memref<1x32xf32, #tpu.memory_space<vmem>>, %arg14: memref<1x32xf32, #tpu.memory_space<vmem>>, %arg15: memref<32x128xbf16, #tpu.memory_space<vmem>>, %arg16: memref<1x128xf32, #tpu.memory_space<vmem>>, %arg17: memref<1x8x128xf32, #tpu.memory_space<vmem>>) attributes {dimension_semantics = [#tpu.dimension_semantics<parallel>], iteration_bounds = array<i64: 2>, scalar_prefetch = 0 : i64, scratch_operands = 0 : i64, tpu.core_type = #tpu.core_type<tc>, window_params = [{transform_indices = @transform_0, window_bounds = array<i64: 1, 8, 32>}, {pipeline_mode = #tpu.pipeline_mode<synchronous>, transform_indices = @transform_1, window_bounds = array<i64: 2, 1, 32>}, {pipeline_mode = #tpu.pipeline_mode<synchronous>, transform_indices = @transform_2, window_bounds = array<i64: 2, 1, 32>}, {pipeline_mode = #tpu.pipeline_mode<synchronous>, transform_indices = @transform_3, window_bounds = array<i64: 2, 32, 96>}, {pipeline_mode = #tpu.pipeline_mode<synchronous>, transform_indices = @transform_4, window_bounds = array<i64: 2, 32, 32>}, {pipeline_mode = #tpu.pipeline_mode<synchronous>, transform_indices = @transform_5, window_bounds = array<i64: 2, 1, 32>}, {pipeline_mode = #tpu.pipeline_mode<synchronous>, transform_indices = @transform_6, window_bounds = array<i64: 2, 1, 32>}, {pipeline_mode = #tpu.pipeline_mode<synchronous>, transform_indices = @transform_7, window_bounds = array<i64: 2, 1, 32>}, {pipeline_mode = #tpu.pipeline_mode<synchronous>, transform_indices = @transform_8, window_bounds = array<i64: 2, 32, 128>}, {pipeline_mode = #tpu.pipeline_mode<synchronous>, transform_indices = @transform_9, window_bounds = array<i64: 2, 1, 128>}, {pipeline_mode = #tpu.pipeline_mode<synchronous>, transform_indices = @transform_10, window_bounds = array<i64: 2, 128, 32>}, {pipeline_mode = #tpu.pipeline_mode<synchronous>, transform_indices = @transform_11, window_bounds = array<i64: 2, 1, 32>}, {pipeline_mode = #tpu.pipeline_mode<synchronous>, transform_indices = @transform_12, window_bounds = array<i64: 1, 32>}, {pipeline_mode = #tpu.pipeline_mode<synchronous>, transform_indices = @transform_13, window_bounds = array<i64: 1, 32>}, {pipeline_mode = #tpu.pipeline_mode<synchronous>, transform_indices = @transform_14, window_bounds = array<i64: 32, 128>}, {pipeline_mode = #tpu.pipeline_mode<synchronous>, transform_indices = @transform_15, window_bounds = array<i64: 1, 128>}, {transform_indices = @transform_16, window_bounds = array<i64: 1, 8, 128>}]} {
    %c0 = arith.constant 0 : index
    %c0_0 = arith.constant 0 : index
    %c0_1 = arith.constant 0 : index
    %0 = vector.load %arg1[%c0, %c0_0, %c0_1] : memref<1x8x32xf32, #tpu.memory_space<vmem>>, vector<1x8x32xf32>
    %1 = vector.shape_cast %0 : vector<1x8x32xf32> to vector<8x32xf32>
    %2 = tpu.iota {dimensions = array<i32: 0>} : vector<8x8xi32>
    %3 = tpu.iota {dimensions = array<i32: 1>} : vector<8x8xi32>
    %4 = arith.cmpi sge, %2, %3 : vector<8x8xi32>
    %5 = vector.shape_cast %4 : vector<8x8xi1> to vector<1x8x8xi1>
    %c0_2 = arith.constant 0 : index
    %c0_3 = arith.constant 0 : index
    %c0_4 = arith.constant 0 : index
    %6 = vector.load %arg2[%c0_2, %c0_3, %c0_4] : memref<2x1x32xf32, #tpu.memory_space<vmem>>, vector<1x1x32xf32>
    %7 = vector.shape_cast %6 : vector<1x1x32xf32> to vector<1x32xf32>
    %c0_5 = arith.constant 0 : index
    %c0_6 = arith.constant 0 : index
    %c0_7 = arith.constant 0 : index
    %8 = vector.load %arg3[%c0_5, %c0_6, %c0_7] : memref<2x1x32xf32, #tpu.memory_space<vmem>>, vector<1x1x32xf32>
    %9 = vector.shape_cast %8 : vector<1x1x32xf32> to vector<1x32xf32>
    %cst = arith.constant dense<0.000000e+00> : vector<8xf32>
    %10 = vector.multi_reduction <add>, %1, %cst [1] : vector<8x32xf32> to vector<8xf32>
    %11 = vector.shape_cast %10 : vector<8xf32> to vector<8x1xf32>
    %cst_8 = arith.constant 3.200000e+01 : f32
    %12 = vector.broadcast %cst_8 : f32 to vector<8x1xf32>
    %13 = arith.divf %11, %12 : vector<8x1xf32>
    %14 = vector.broadcast %13 : vector<8x1xf32> to vector<8x32xf32>
    %15 = arith.subf %1, %14 : vector<8x32xf32>
    %16 = arith.mulf %15, %15 : vector<8x32xf32>
    %cst_9 = arith.constant dense<0.000000e+00> : vector<8xf32>
    %17 = vector.multi_reduction <add>, %16, %cst_9 [1] : vector<8x32xf32> to vector<8xf32>
    %18 = vector.shape_cast %17 : vector<8xf32> to vector<8x1xf32>
    %cst_10 = arith.constant 3.200000e+01 : f32
    %19 = vector.broadcast %cst_10 : f32 to vector<8x1xf32>
    %20 = arith.divf %18, %19 : vector<8x1xf32>
    %21 = vector.broadcast %13 : vector<8x1xf32> to vector<8x32xf32>
    %22 = arith.subf %1, %21 : vector<8x32xf32>
    %cst_11 = arith.constant 9.99999974E-6 : f32
    %23 = vector.broadcast %cst_11 : f32 to vector<8x1xf32>
    %24 = arith.addf %20, %23 : vector<8x1xf32>
    %25 = math.rsqrt %24 : vector<8x1xf32>
    %26 = vector.broadcast %25 : vector<8x1xf32> to vector<8x32xf32>
    %27 = arith.mulf %22, %26 : vector<8x32xf32>
    %28 = vector.broadcast %7 : vector<1x32xf32> to vector<8x32xf32>
    %29 = arith.mulf %27, %28 : vector<8x32xf32>
    %30 = vector.broadcast %9 : vector<1x32xf32> to vector<8x32xf32>
    %31 = arith.addf %29, %30 : vector<8x32xf32>
    %32 = arith.truncf %31 : vector<8x32xf32> to vector<8x32xbf16>
    %c0_12 = arith.constant 0 : index
    %c0_13 = arith.constant 0 : index
    %c0_14 = arith.constant 0 : index
    %33 = vector.load %arg4[%c0_12, %c0_13, %c0_14] : memref<2x32x96xbf16, #tpu.memory_space<vmem>>, vector<1x32x96xbf16>
    %34 = vector.shape_cast %33 : vector<1x32x96xbf16> to vector<32x96xbf16>
    %cst_15 = arith.constant dense<0.000000e+00> : vector<8x96xf32>
    %35 = tpu.matmul %32, %34, %cst_15 {dimension_numbers = #tpu.dot_dimension_numbers<[1], [0], [0], [1], [0, 0, 1, 1], [], []>} : vector<8x32xbf16>, vector<32x96xbf16>, vector<8x96xf32> -> vector<8x96xf32>
    %36 = vector.extract_strided_slice %35 {offsets = [0, 0], sizes = [8, 32], strides = [1, 1]} : vector<8x96xf32> to vector<8x32xf32>
    %37 = vector.shape_cast %36 : vector<8x32xf32> to vector<8x4x8xf32>
    %38 = vector.extract_strided_slice %35 {offsets = [0, 32], sizes = [8, 32], strides = [1, 1]} : vector<8x96xf32> to vector<8x32xf32>
    %39 = vector.shape_cast %38 : vector<8x32xf32> to vector<8x4x8xf32>
    %40 = vector.extract_strided_slice %35 {offsets = [0, 64], sizes = [8, 32], strides = [1, 1]} : vector<8x96xf32> to vector<8x32xf32>
    %41 = vector.shape_cast %40 : vector<8x32xf32> to vector<8x4x8xf32>
    "tpu.trace_start"() <{level = 10 : i32, message = "qhd,khd->hqk"}> : () -> ()
    %cst_16 = arith.constant dense<0.000000e+00> : vector<4x8x8xf32>
    %42 = tpu.matmul %37, %39, %cst_16 {dimension_numbers = #tpu.dot_dimension_numbers<[2], [2], [0], [0], [0, 1, 0, 0, 1, 0], [1], [1]>} : vector<8x4x8xf32>, vector<8x4x8xf32>, vector<4x8x8xf32> -> vector<4x8x8xf32>
    "tpu.trace_stop"() : () -> ()
    %cst_17 = arith.constant 0.353553385 : f32
    %43 = vector.broadcast %cst_17 : f32 to vector<4x8x8xf32>
    %44 = arith.mulf %42, %43 : vector<4x8x8xf32>
    %cst_18 = arith.constant 0xFF800000 : f32
    %45 = vector.shape_cast %5 : vector<1x8x8xi1> to vector<1x8x8xi1>
    %46 = vector.broadcast %45 : vector<1x8x8xi1> to vector<4x8x8xi1>
    %47 = vector.broadcast %cst_18 : f32 to vector<4x8x8xf32>
    %48 = arith.select %46, %44, %47 : vector<4x8x8xi1>, vector<4x8x8xf32>
    %cst_19 = arith.constant dense<0xFF800000> : vector<4x8xf32>
    %49 = vector.multi_reduction <maximumf>, %48, %cst_19 [2] : vector<4x8x8xf32> to vector<4x8xf32>
    %cst_20 = arith.constant 0xFF800000 : f32
    %50 = vector.broadcast %cst_20 : f32 to vector<4x8xf32>
    %51 = arith.maximumf %50, %49 : vector<4x8xf32>
    %52 = vector.shape_cast %51 : vector<4x8xf32> to vector<4x8x1xf32>
    %53 = vector.broadcast %52 : vector<4x8x1xf32> to vector<4x8x8xf32>
    %54 = arith.subf %48, %53 : vector<4x8x8xf32>
    %55 = math.exp %54 : vector<4x8x8xf32>
    %cst_21 = arith.constant dense<0.000000e+00> : vector<4x8xf32>
    %56 = vector.multi_reduction <add>, %55, %cst_21 [2] : vector<4x8x8xf32> to vector<4x8xf32>
    %57 = vector.shape_cast %56 : vector<4x8xf32> to vector<4x8x1xf32>
    %58 = vector.broadcast %57 : vector<4x8x1xf32> to vector<4x8x8xf32>
    %59 = arith.divf %55, %58 : vector<4x8x8xf32>
    "tpu.trace_start"() <{level = 10 : i32, message = "hqk,khd->qhd"}> : () -> ()
    %cst_22 = arith.constant dense<0.000000e+00> : vector<4x8x8xf32>
    %60 = tpu.matmul %41, %59, %cst_22 {dimension_numbers = #tpu.dot_dimension_numbers<[0], [2], [2], [1], [0, 1, 0, 2, 1, 1], [1], [0]>} : vector<8x4x8xf32>, vector<4x8x8xf32>, vector<4x8x8xf32> -> vector<4x8x8xf32>
    %61 = tpu.transpose %60, [2, 0, 1] : vector<4x8x8xf32> -> vector<8x4x8xf32>
    "tpu.trace_stop"() : () -> ()
    %62 = vector.shape_cast %61 : vector<8x4x8xf32> to vector<8x32xf32>
    %63 = arith.truncf %62 : vector<8x32xf32> to vector<8x32xbf16>
    %c0_23 = arith.constant 0 : index
    %c0_24 = arith.constant 0 : index
    %c0_25 = arith.constant 0 : index
    %64 = vector.load %arg5[%c0_23, %c0_24, %c0_25] : memref<2x32x32xbf16, #tpu.memory_space<vmem>>, vector<1x32x32xbf16>
    %65 = vector.shape_cast %64 : vector<1x32x32xbf16> to vector<32x32xbf16>
    %cst_26 = arith.constant dense<0.000000e+00> : vector<8x32xf32>
    %66 = tpu.matmul %63, %65, %cst_26 {dimension_numbers = #tpu.dot_dimension_numbers<[1], [0], [0], [1], [0, 0, 1, 1], [], []>} : vector<8x32xbf16>, vector<32x32xbf16>, vector<8x32xf32> -> vector<8x32xf32>
    %c0_27 = arith.constant 0 : index
    %c0_28 = arith.constant 0 : index
    %c0_29 = arith.constant 0 : index
    %67 = vector.load %arg6[%c0_27, %c0_28, %c0_29] : memref<2x1x32xf32, #tpu.memory_space<vmem>>, vector<1x1x32xf32>
    %68 = vector.shape_cast %67 : vector<1x1x32xf32> to vector<1x32xf32>
    %69 = vector.broadcast %68 : vector<1x32xf32> to vector<8x32xf32>
    %70 = arith.addf %66, %69 : vector<8x32xf32>
    %71 = arith.addf %1, %70 : vector<8x32xf32>
    %c0_30 = arith.constant 0 : index
    %c0_31 = arith.constant 0 : index
    %c0_32 = arith.constant 0 : index
    %72 = vector.load %arg7[%c0_30, %c0_31, %c0_32] : memref<2x1x32xf32, #tpu.memory_space<vmem>>, vector<1x1x32xf32>
    %73 = vector.shape_cast %72 : vector<1x1x32xf32> to vector<1x32xf32>
    %c0_33 = arith.constant 0 : index
    %c0_34 = arith.constant 0 : index
    %c0_35 = arith.constant 0 : index
    %74 = vector.load %arg8[%c0_33, %c0_34, %c0_35] : memref<2x1x32xf32, #tpu.memory_space<vmem>>, vector<1x1x32xf32>
    %75 = vector.shape_cast %74 : vector<1x1x32xf32> to vector<1x32xf32>
    %cst_36 = arith.constant dense<0.000000e+00> : vector<8xf32>
    %76 = vector.multi_reduction <add>, %71, %cst_36 [1] : vector<8x32xf32> to vector<8xf32>
    %77 = vector.shape_cast %76 : vector<8xf32> to vector<8x1xf32>
    %cst_37 = arith.constant 3.200000e+01 : f32
    %78 = vector.broadcast %cst_37 : f32 to vector<8x1xf32>
    %79 = arith.divf %77, %78 : vector<8x1xf32>
    %80 = vector.broadcast %79 : vector<8x1xf32> to vector<8x32xf32>
    %81 = arith.subf %71, %80 : vector<8x32xf32>
    %82 = arith.mulf %81, %81 : vector<8x32xf32>
    %cst_38 = arith.constant dense<0.000000e+00> : vector<8xf32>
    %83 = vector.multi_reduction <add>, %82, %cst_38 [1] : vector<8x32xf32> to vector<8xf32>
    %84 = vector.shape_cast %83 : vector<8xf32> to vector<8x1xf32>
    %cst_39 = arith.constant 3.200000e+01 : f32
    %85 = vector.broadcast %cst_39 : f32 to vector<8x1xf32>
    %86 = arith.divf %84, %85 : vector<8x1xf32>
    %87 = vector.broadcast %79 : vector<8x1xf32> to vector<8x32xf32>
    %88 = arith.subf %71, %87 : vector<8x32xf32>
    %cst_40 = arith.constant 9.99999974E-6 : f32
    %89 = vector.broadcast %cst_40 : f32 to vector<8x1xf32>
    %90 = arith.addf %86, %89 : vector<8x1xf32>
    %91 = math.rsqrt %90 : vector<8x1xf32>
    %92 = vector.broadcast %91 : vector<8x1xf32> to vector<8x32xf32>
    %93 = arith.mulf %88, %92 : vector<8x32xf32>
    %94 = vector.broadcast %73 : vector<1x32xf32> to vector<8x32xf32>
    %95 = arith.mulf %93, %94 : vector<8x32xf32>
    %96 = vector.broadcast %75 : vector<1x32xf32> to vector<8x32xf32>
    %97 = arith.addf %95, %96 : vector<8x32xf32>
    %98 = arith.truncf %97 : vector<8x32xf32> to vector<8x32xbf16>
    %c0_41 = arith.constant 0 : index
    %c0_42 = arith.constant 0 : index
    %c0_43 = arith.constant 0 : index
    %99 = vector.load %arg9[%c0_41, %c0_42, %c0_43] : memref<2x32x128xbf16, #tpu.memory_space<vmem>>, vector<1x32x128xbf16>
    %100 = vector.shape_cast %99 : vector<1x32x128xbf16> to vector<32x128xbf16>
    %cst_44 = arith.constant dense<0.000000e+00> : vector<8x128xf32>
    %101 = tpu.matmul %98, %100, %cst_44 {dimension_numbers = #tpu.dot_dimension_numbers<[1], [0], [0], [1], [0, 0, 1, 1], [], []>} : vector<8x32xbf16>, vector<32x128xbf16>, vector<8x128xf32> -> vector<8x128xf32>
    %c0_45 = arith.constant 0 : index
    %c0_46 = arith.constant 0 : index
    %c0_47 = arith.constant 0 : index
    %102 = vector.load %arg10[%c0_45, %c0_46, %c0_47] : memref<2x1x128xf32, #tpu.memory_space<vmem>>, vector<1x1x128xf32>
    %103 = vector.shape_cast %102 : vector<1x1x128xf32> to vector<1x128xf32>
    %104 = vector.broadcast %103 : vector<1x128xf32> to vector<8x128xf32>
    %105 = arith.addf %101, %104 : vector<8x128xf32>
    %cst_48 = arith.constant 0.000000e+00 : f32
    %106 = vector.broadcast %cst_48 : f32 to vector<8x128xf32>
    %107 = arith.maximumf %105, %106 : vector<8x128xf32>
    %108 = arith.truncf %107 : vector<8x128xf32> to vector<8x128xbf16>
    %c0_49 = arith.constant 0 : index
    %c0_50 = arith.constant 0 : index
    %c0_51 = arith.constant 0 : index
    %109 = vector.load %arg11[%c0_49, %c0_50, %c0_51] : memref<2x128x32xbf16, #tpu.memory_space<vmem>>, vector<1x128x32xbf16>
    %110 = vector.shape_cast %109 : vector<1x128x32xbf16> to vector<128x32xbf16>
    %cst_52 = arith.constant dense<0.000000e+00> : vector<8x32xf32>
    %111 = tpu.matmul %108, %110, %cst_52 {dimension_numbers = #tpu.dot_dimension_numbers<[1], [0], [0], [1], [0, 0, 1, 1], [], []>} : vector<8x128xbf16>, vector<128x32xbf16>, vector<8x32xf32> -> vector<8x32xf32>
    %112 = arith.addf %71, %111 : vector<8x32xf32>
    %c0_53 = arith.constant 0 : index
    %c0_54 = arith.constant 0 : index
    %c0_55 = arith.constant 0 : index
    %113 = vector.load %arg12[%c0_53, %c0_54, %c0_55] : memref<2x1x32xf32, #tpu.memory_space<vmem>>, vector<1x1x32xf32>
    %114 = vector.shape_cast %113 : vector<1x1x32xf32> to vector<1x32xf32>
    %115 = vector.broadcast %114 : vector<1x32xf32> to vector<8x32xf32>
    %116 = arith.addf %112, %115 : vector<8x32xf32>
    %c1 = arith.constant 1 : index
    %c0_56 = arith.constant 0 : index
    %c0_57 = arith.constant 0 : index
    %117 = vector.load %arg2[%c1, %c0_56, %c0_57] : memref<2x1x32xf32, #tpu.memory_space<vmem>>, vector<1x1x32xf32>
    %118 = vector.shape_cast %117 : vector<1x1x32xf32> to vector<1x32xf32>
    %c1_58 = arith.constant 1 : index
    %c0_59 = arith.constant 0 : index
    %c0_60 = arith.constant 0 : index
    %119 = vector.load %arg3[%c1_58, %c0_59, %c0_60] : memref<2x1x32xf32, #tpu.memory_space<vmem>>, vector<1x1x32xf32>
    %120 = vector.shape_cast %119 : vector<1x1x32xf32> to vector<1x32xf32>
    %cst_61 = arith.constant dense<0.000000e+00> : vector<8xf32>
    %121 = vector.multi_reduction <add>, %116, %cst_61 [1] : vector<8x32xf32> to vector<8xf32>
    %122 = vector.shape_cast %121 : vector<8xf32> to vector<8x1xf32>
    %cst_62 = arith.constant 3.200000e+01 : f32
    %123 = vector.broadcast %cst_62 : f32 to vector<8x1xf32>
    %124 = arith.divf %122, %123 : vector<8x1xf32>
    %125 = vector.broadcast %124 : vector<8x1xf32> to vector<8x32xf32>
    %126 = arith.subf %116, %125 : vector<8x32xf32>
    %127 = arith.mulf %126, %126 : vector<8x32xf32>
    %cst_63 = arith.constant dense<0.000000e+00> : vector<8xf32>
    %128 = vector.multi_reduction <add>, %127, %cst_63 [1] : vector<8x32xf32> to vector<8xf32>
    %129 = vector.shape_cast %128 : vector<8xf32> to vector<8x1xf32>
    %cst_64 = arith.constant 3.200000e+01 : f32
    %130 = vector.broadcast %cst_64 : f32 to vector<8x1xf32>
    %131 = arith.divf %129, %130 : vector<8x1xf32>
    %132 = vector.broadcast %124 : vector<8x1xf32> to vector<8x32xf32>
    %133 = arith.subf %116, %132 : vector<8x32xf32>
    %cst_65 = arith.constant 9.99999974E-6 : f32
    %134 = vector.broadcast %cst_65 : f32 to vector<8x1xf32>
    %135 = arith.addf %131, %134 : vector<8x1xf32>
    %136 = math.rsqrt %135 : vector<8x1xf32>
    %137 = vector.broadcast %136 : vector<8x1xf32> to vector<8x32xf32>
    %138 = arith.mulf %133, %137 : vector<8x32xf32>
    %139 = vector.broadcast %118 : vector<1x32xf32> to vector<8x32xf32>
    %140 = arith.mulf %138, %139 : vector<8x32xf32>
    %141 = vector.broadcast %120 : vector<1x32xf32> to vector<8x32xf32>
    %142 = arith.addf %140, %141 : vector<8x32xf32>
    %143 = arith.truncf %142 : vector<8x32xf32> to vector<8x32xbf16>
    %c1_66 = arith.constant 1 : index
    %c0_67 = arith.constant 0 : index
    %c0_68 = arith.constant 0 : index
    %144 = vector.load %arg4[%c1_66, %c0_67, %c0_68] : memref<2x32x96xbf16, #tpu.memory_space<vmem>>, vector<1x32x96xbf16>
    %145 = vector.shape_cast %144 : vector<1x32x96xbf16> to vector<32x96xbf16>
    %cst_69 = arith.constant dense<0.000000e+00> : vector<8x96xf32>
    %146 = tpu.matmul %143, %145, %cst_69 {dimension_numbers = #tpu.dot_dimension_numbers<[1], [0], [0], [1], [0, 0, 1, 1], [], []>} : vector<8x32xbf16>, vector<32x96xbf16>, vector<8x96xf32> -> vector<8x96xf32>
    %147 = vector.extract_strided_slice %146 {offsets = [0, 0], sizes = [8, 32], strides = [1, 1]} : vector<8x96xf32> to vector<8x32xf32>
    %148 = vector.shape_cast %147 : vector<8x32xf32> to vector<8x4x8xf32>
    %149 = vector.extract_strided_slice %146 {offsets = [0, 32], sizes = [8, 32], strides = [1, 1]} : vector<8x96xf32> to vector<8x32xf32>
    %150 = vector.shape_cast %149 : vector<8x32xf32> to vector<8x4x8xf32>
    %151 = vector.extract_strided_slice %146 {offsets = [0, 64], sizes = [8, 32], strides = [1, 1]} : vector<8x96xf32> to vector<8x32xf32>
    %152 = vector.shape_cast %151 : vector<8x32xf32> to vector<8x4x8xf32>
    "tpu.trace_start"() <{level = 10 : i32, message = "qhd,khd->hqk"}> : () -> ()
    %cst_70 = arith.constant dense<0.000000e+00> : vector<4x8x8xf32>
    %153 = tpu.matmul %148, %150, %cst_70 {dimension_numbers = #tpu.dot_dimension_numbers<[2], [2], [0], [0], [0, 1, 0, 0, 1, 0], [1], [1]>} : vector<8x4x8xf32>, vector<8x4x8xf32>, vector<4x8x8xf32> -> vector<4x8x8xf32>
    "tpu.trace_stop"() : () -> ()
    %cst_71 = arith.constant 0.353553385 : f32
    %154 = vector.broadcast %cst_71 : f32 to vector<4x8x8xf32>
    %155 = arith.mulf %153, %154 : vector<4x8x8xf32>
    %cst_72 = arith.constant 0xFF800000 : f32
    %156 = vector.shape_cast %5 : vector<1x8x8xi1> to vector<1x8x8xi1>
    %157 = vector.broadcast %156 : vector<1x8x8xi1> to vector<4x8x8xi1>
    %158 = vector.broadcast %cst_72 : f32 to vector<4x8x8xf32>
    %159 = arith.select %157, %155, %158 : vector<4x8x8xi1>, vector<4x8x8xf32>
    %cst_73 = arith.constant dense<0xFF800000> : vector<4x8xf32>
    %160 = vector.multi_reduction <maximumf>, %159, %cst_73 [2] : vector<4x8x8xf32> to vector<4x8xf32>
    %cst_74 = arith.constant 0xFF800000 : f32
    %161 = vector.broadcast %cst_74 : f32 to vector<4x8xf32>
    %162 = arith.maximumf %161, %160 : vector<4x8xf32>
    %163 = vector.shape_cast %162 : vector<4x8xf32> to vector<4x8x1xf32>
    %164 = vector.broadcast %163 : vector<4x8x1xf32> to vector<4x8x8xf32>
    %165 = arith.subf %159, %164 : vector<4x8x8xf32>
    %166 = math.exp %165 : vector<4x8x8xf32>
    %cst_75 = arith.constant dense<0.000000e+00> : vector<4x8xf32>
    %167 = vector.multi_reduction <add>, %166, %cst_75 [2] : vector<4x8x8xf32> to vector<4x8xf32>
    %168 = vector.shape_cast %167 : vector<4x8xf32> to vector<4x8x1xf32>
    %169 = vector.broadcast %168 : vector<4x8x1xf32> to vector<4x8x8xf32>
    %170 = arith.divf %166, %169 : vector<4x8x8xf32>
    "tpu.trace_start"() <{level = 10 : i32, message = "hqk,khd->qhd"}> : () -> ()
    %cst_76 = arith.constant dense<0.000000e+00> : vector<4x8x8xf32>
    %171 = tpu.matmul %152, %170, %cst_76 {dimension_numbers = #tpu.dot_dimension_numbers<[0], [2], [2], [1], [0, 1, 0, 2, 1, 1], [1], [0]>} : vector<8x4x8xf32>, vector<4x8x8xf32>, vector<4x8x8xf32> -> vector<4x8x8xf32>
    %172 = tpu.transpose %171, [2, 0, 1] : vector<4x8x8xf32> -> vector<8x4x8xf32>
    "tpu.trace_stop"() : () -> ()
    %173 = vector.shape_cast %172 : vector<8x4x8xf32> to vector<8x32xf32>
    %174 = arith.truncf %173 : vector<8x32xf32> to vector<8x32xbf16>
    %c1_77 = arith.constant 1 : index
    %c0_78 = arith.constant 0 : index
    %c0_79 = arith.constant 0 : index
    %175 = vector.load %arg5[%c1_77, %c0_78, %c0_79] : memref<2x32x32xbf16, #tpu.memory_space<vmem>>, vector<1x32x32xbf16>
    %176 = vector.shape_cast %175 : vector<1x32x32xbf16> to vector<32x32xbf16>
    %cst_80 = arith.constant dense<0.000000e+00> : vector<8x32xf32>
    %177 = tpu.matmul %174, %176, %cst_80 {dimension_numbers = #tpu.dot_dimension_numbers<[1], [0], [0], [1], [0, 0, 1, 1], [], []>} : vector<8x32xbf16>, vector<32x32xbf16>, vector<8x32xf32> -> vector<8x32xf32>
    %c1_81 = arith.constant 1 : index
    %c0_82 = arith.constant 0 : index
    %c0_83 = arith.constant 0 : index
    %178 = vector.load %arg6[%c1_81, %c0_82, %c0_83] : memref<2x1x32xf32, #tpu.memory_space<vmem>>, vector<1x1x32xf32>
    %179 = vector.shape_cast %178 : vector<1x1x32xf32> to vector<1x32xf32>
    %180 = vector.broadcast %179 : vector<1x32xf32> to vector<8x32xf32>
    %181 = arith.addf %177, %180 : vector<8x32xf32>
    %182 = arith.addf %116, %181 : vector<8x32xf32>
    %c1_84 = arith.constant 1 : index
    %c0_85 = arith.constant 0 : index
    %c0_86 = arith.constant 0 : index
    %183 = vector.load %arg7[%c1_84, %c0_85, %c0_86] : memref<2x1x32xf32, #tpu.memory_space<vmem>>, vector<1x1x32xf32>
    %184 = vector.shape_cast %183 : vector<1x1x32xf32> to vector<1x32xf32>
    %c1_87 = arith.constant 1 : index
    %c0_88 = arith.constant 0 : index
    %c0_89 = arith.constant 0 : index
    %185 = vector.load %arg8[%c1_87, %c0_88, %c0_89] : memref<2x1x32xf32, #tpu.memory_space<vmem>>, vector<1x1x32xf32>
    %186 = vector.shape_cast %185 : vector<1x1x32xf32> to vector<1x32xf32>
    %cst_90 = arith.constant dense<0.000000e+00> : vector<8xf32>
    %187 = vector.multi_reduction <add>, %182, %cst_90 [1] : vector<8x32xf32> to vector<8xf32>
    %188 = vector.shape_cast %187 : vector<8xf32> to vector<8x1xf32>
    %cst_91 = arith.constant 3.200000e+01 : f32
    %189 = vector.broadcast %cst_91 : f32 to vector<8x1xf32>
    %190 = arith.divf %188, %189 : vector<8x1xf32>
    %191 = vector.broadcast %190 : vector<8x1xf32> to vector<8x32xf32>
    %192 = arith.subf %182, %191 : vector<8x32xf32>
    %193 = arith.mulf %192, %192 : vector<8x32xf32>
    %cst_92 = arith.constant dense<0.000000e+00> : vector<8xf32>
    %194 = vector.multi_reduction <add>, %193, %cst_92 [1] : vector<8x32xf32> to vector<8xf32>
    %195 = vector.shape_cast %194 : vector<8xf32> to vector<8x1xf32>
    %cst_93 = arith.constant 3.200000e+01 : f32
    %196 = vector.broadcast %cst_93 : f32 to vector<8x1xf32>
    %197 = arith.divf %195, %196 : vector<8x1xf32>
    %198 = vector.broadcast %190 : vector<8x1xf32> to vector<8x32xf32>
    %199 = arith.subf %182, %198 : vector<8x32xf32>
    %cst_94 = arith.constant 9.99999974E-6 : f32
    %200 = vector.broadcast %cst_94 : f32 to vector<8x1xf32>
    %201 = arith.addf %197, %200 : vector<8x1xf32>
    %202 = math.rsqrt %201 : vector<8x1xf32>
    %203 = vector.broadcast %202 : vector<8x1xf32> to vector<8x32xf32>
    %204 = arith.mulf %199, %203 : vector<8x32xf32>
    %205 = vector.broadcast %184 : vector<1x32xf32> to vector<8x32xf32>
    %206 = arith.mulf %204, %205 : vector<8x32xf32>
    %207 = vector.broadcast %186 : vector<1x32xf32> to vector<8x32xf32>
    %208 = arith.addf %206, %207 : vector<8x32xf32>
    %209 = arith.truncf %208 : vector<8x32xf32> to vector<8x32xbf16>
    %c1_95 = arith.constant 1 : index
    %c0_96 = arith.constant 0 : index
    %c0_97 = arith.constant 0 : index
    %210 = vector.load %arg9[%c1_95, %c0_96, %c0_97] : memref<2x32x128xbf16, #tpu.memory_space<vmem>>, vector<1x32x128xbf16>
    %211 = vector.shape_cast %210 : vector<1x32x128xbf16> to vector<32x128xbf16>
    %cst_98 = arith.constant dense<0.000000e+00> : vector<8x128xf32>
    %212 = tpu.matmul %209, %211, %cst_98 {dimension_numbers = #tpu.dot_dimension_numbers<[1], [0], [0], [1], [0, 0, 1, 1], [], []>} : vector<8x32xbf16>, vector<32x128xbf16>, vector<8x128xf32> -> vector<8x128xf32>
    %c1_99 = arith.constant 1 : index
    %c0_100 = arith.constant 0 : index
    %c0_101 = arith.constant 0 : index
    %213 = vector.load %arg10[%c1_99, %c0_100, %c0_101] : memref<2x1x128xf32, #tpu.memory_space<vmem>>, vector<1x1x128xf32>
    %214 = vector.shape_cast %213 : vector<1x1x128xf32> to vector<1x128xf32>
    %215 = vector.broadcast %214 : vector<1x128xf32> to vector<8x128xf32>
    %216 = arith.addf %212, %215 : vector<8x128xf32>
    %cst_102 = arith.constant 0.000000e+00 : f32
    %217 = vector.broadcast %cst_102 : f32 to vector<8x128xf32>
    %218 = arith.maximumf %216, %217 : vector<8x128xf32>
    %219 = arith.truncf %218 : vector<8x128xf32> to vector<8x128xbf16>
    %c1_103 = arith.constant 1 : index
    %c0_104 = arith.constant 0 : index
    %c0_105 = arith.constant 0 : index
    %220 = vector.load %arg11[%c1_103, %c0_104, %c0_105] : memref<2x128x32xbf16, #tpu.memory_space<vmem>>, vector<1x128x32xbf16>
    %221 = vector.shape_cast %220 : vector<1x128x32xbf16> to vector<128x32xbf16>
    %cst_106 = arith.constant dense<0.000000e+00> : vector<8x32xf32>
    %222 = tpu.matmul %219, %221, %cst_106 {dimension_numbers = #tpu.dot_dimension_numbers<[1], [0], [0], [1], [0, 0, 1, 1], [], []>} : vector<8x128xbf16>, vector<128x32xbf16>, vector<8x32xf32> -> vector<8x32xf32>
    %223 = arith.addf %182, %222 : vector<8x32xf32>
    %c1_107 = arith.constant 1 : index
    %c0_108 = arith.constant 0 : index
    %c0_109 = arith.constant 0 : index
    %224 = vector.load %arg12[%c1_107, %c0_108, %c0_109] : memref<2x1x32xf32, #tpu.memory_space<vmem>>, vector<1x1x32xf32>
    %225 = vector.shape_cast %224 : vector<1x1x32xf32> to vector<1x32xf32>
    %226 = vector.broadcast %225 : vector<1x32xf32> to vector<8x32xf32>
    %227 = arith.addf %223, %226 : vector<8x32xf32>
    %c0_110 = arith.constant 0 : index
    %c0_111 = arith.constant 0 : index
    %228 = vector.load %arg13[%c0_110, %c0_111] : memref<1x32xf32, #tpu.memory_space<vmem>>, vector<1x32xf32>
    %c0_112 = arith.constant 0 : index
    %c0_113 = arith.constant 0 : index
    %229 = vector.load %arg14[%c0_112, %c0_113] : memref<1x32xf32, #tpu.memory_space<vmem>>, vector<1x32xf32>
    %cst_114 = arith.constant dense<0.000000e+00> : vector<8xf32>
    %230 = vector.multi_reduction <add>, %227, %cst_114 [1] : vector<8x32xf32> to vector<8xf32>
    %231 = vector.shape_cast %230 : vector<8xf32> to vector<8x1xf32>
    %cst_115 = arith.constant 3.200000e+01 : f32
    %232 = vector.broadcast %cst_115 : f32 to vector<8x1xf32>
    %233 = arith.divf %231, %232 : vector<8x1xf32>
    %234 = vector.broadcast %233 : vector<8x1xf32> to vector<8x32xf32>
    %235 = arith.subf %227, %234 : vector<8x32xf32>
    %236 = arith.mulf %235, %235 : vector<8x32xf32>
    %cst_116 = arith.constant dense<0.000000e+00> : vector<8xf32>
    %237 = vector.multi_reduction <add>, %236, %cst_116 [1] : vector<8x32xf32> to vector<8xf32>
    %238 = vector.shape_cast %237 : vector<8xf32> to vector<8x1xf32>
    %cst_117 = arith.constant 3.200000e+01 : f32
    %239 = vector.broadcast %cst_117 : f32 to vector<8x1xf32>
    %240 = arith.divf %238, %239 : vector<8x1xf32>
    %241 = vector.broadcast %233 : vector<8x1xf32> to vector<8x32xf32>
    %242 = arith.subf %227, %241 : vector<8x32xf32>
    %cst_118 = arith.constant 9.99999974E-6 : f32
    %243 = vector.broadcast %cst_118 : f32 to vector<8x1xf32>
    %244 = arith.addf %240, %243 : vector<8x1xf32>
    %245 = math.rsqrt %244 : vector<8x1xf32>
    %246 = vector.broadcast %245 : vector<8x1xf32> to vector<8x32xf32>
    %247 = arith.mulf %242, %246 : vector<8x32xf32>
    %248 = vector.broadcast %228 : vector<1x32xf32> to vector<8x32xf32>
    %249 = arith.mulf %247, %248 : vector<8x32xf32>
    %250 = vector.broadcast %229 : vector<1x32xf32> to vector<8x32xf32>
    %251 = arith.addf %249, %250 : vector<8x32xf32>
    %252 = arith.truncf %251 : vector<8x32xf32> to vector<8x32xbf16>
    %c0_119 = arith.constant 0 : index
    %c0_120 = arith.constant 0 : index
    %253 = vector.load %arg15[%c0_119, %c0_120] : memref<32x128xbf16, #tpu.memory_space<vmem>>, vector<32x128xbf16>
    %cst_121 = arith.constant dense<0.000000e+00> : vector<8x128xf32>
    %254 = tpu.matmul %252, %253, %cst_121 {dimension_numbers = #tpu.dot_dimension_numbers<[1], [0], [0], [1], [0, 0, 1, 1], [], []>} : vector<8x32xbf16>, vector<32x128xbf16>, vector<8x128xf32> -> vector<8x128xf32>
    %c0_122 = arith.constant 0 : index
    %c0_123 = arith.constant 0 : index
    %255 = vector.load %arg16[%c0_122, %c0_123] : memref<1x128xf32, #tpu.memory_space<vmem>>, vector<1x128xf32>
    %256 = vector.broadcast %255 : vector<1x128xf32> to vector<8x128xf32>
    %257 = arith.addf %254, %256 : vector<8x128xf32>
    %c0_124 = arith.constant 0 : index
    %c0_125 = arith.constant 0 : index
    %c0_126 = arith.constant 0 : index
    %258 = vector.load %arg17[%c0_124, %c0_125, %c0_126] : memref<1x8x128xf32, #tpu.memory_space<vmem>>, vector<1x8x128xf32>
    %259 = vector.shape_cast %258 : vector<1x8x128xf32> to vector<8x128xf32>
    %260 = vector.shape_cast %257 : vector<8x128xf32> to vector<1x8x128xf32>
    tpu.vector_store %arg17[%c0_124, %c0_125, %c0_126], %260 {strides = array<i32>} : memref<1x8x128xf32, #tpu.memory_space<vmem>>, vector<1x8x128xf32>,
    return
  }
  func.func @transform_0(%arg0: i32) -> (i32, i32, i32) {
    %c0_i32 = arith.constant 0 : i32
    %c0_i32_0 = arith.constant 0 : i32
    %c0_i32_1 = arith.constant 0 : i32
    return %arg0, %c0_i32, %c0_i32_0 : i32, i32, i32
  }
  func.func @transform_1(%arg0: i32) -> (i32, i32, i32) {
    %c0_i32 = arith.constant 0 : i32
    %c0_i32_0 = arith.constant 0 : i32
    %c0_i32_1 = arith.constant 0 : i32
    %c0_i32_2 = arith.constant 0 : i32
    return %c0_i32, %c0_i32_0, %c0_i32_1 : i32, i32, i32
  }
  func.func @transform_2(%arg0: i32) -> (i32, i32, i32) {
    %c0_i32 = arith.constant 0 : i32
    %c0_i32_0 = arith.constant 0 : i32
    %c0_i32_1 = arith.constant 0 : i32
    %c0_i32_2 = arith.constant 0 : i32
    return %c0_i32, %c0_i32_0, %c0_i32_1 : i32, i32, i32
  }
  func.func @transform_3(%arg0: i32) -> (i32, i32, i32) {
    %c0_i32 = arith.constant 0 : i32
    %c0_i32_0 = arith.constant 0 : i32
    %c0_i32_1 = arith.constant 0 : i32
    %c0_i32_2 = arith.constant 0 : i32
    return %c0_i32, %c0_i32_0, %c0_i32_1 : i32, i32, i32
  }
  func.func @transform_4(%arg0: i32) -> (i32, i32, i32) {
    %c0_i32 = arith.constant 0 : i32
    %c0_i32_0 = arith.constant 0 : i32
    %c0_i32_1 = arith.constant 0 : i32
    %c0_i32_2 = arith.constant 0 : i32
    return %c0_i32, %c0_i32_0, %c0_i32_1 : i32, i32, i32
  }
  func.func @transform_5(%arg0: i32) -> (i32, i32, i32) {
    %c0_i32 = arith.constant 0 : i32
    %c0_i32_0 = arith.constant 0 : i32
    %c0_i32_1 = arith.constant 0 : i32
    %c0_i32_2 = arith.constant 0 : i32
    return %c0_i32, %c0_i32_0, %c0_i32_1 : i32, i32, i32
  }
  func.func @transform_6(%arg0: i32) -> (i32, i32, i32) {
    %c0_i32 = arith.constant 0 : i32
    %c0_i32_0 = arith.constant 0 : i32
    %c0_i32_1 = arith.constant 0 : i32
    %c0_i32_2 = arith.constant 0 : i32
    return %c0_i32, %c0_i32_0, %c0_i32_1 : i32, i32, i32
  }
  func.func @transform_7(%arg0: i32) -> (i32, i32, i32) {
    %c0_i32 = arith.constant 0 : i32
    %c0_i32_0 = arith.constant 0 : i32
    %c0_i32_1 = arith.constant 0 : i32
    %c0_i32_2 = arith.constant 0 : i32
    return %c0_i32, %c0_i32_0, %c0_i32_1 : i32, i32, i32
  }
  func.func @transform_8(%arg0: i32) -> (i32, i32, i32) {
    %c0_i32 = arith.constant 0 : i32
    %c0_i32_0 = arith.constant 0 : i32
    %c0_i32_1 = arith.constant 0 : i32
    %c0_i32_2 = arith.constant 0 : i32
    return %c0_i32, %c0_i32_0, %c0_i32_1 : i32, i32, i32
  }
  func.func @transform_9(%arg0: i32) -> (i32, i32, i32) {
    %c0_i32 = arith.constant 0 : i32
    %c0_i32_0 = arith.constant 0 : i32
    %c0_i32_1 = arith.constant 0 : i32
    %c0_i32_2 = arith.constant 0 : i32
    return %c0_i32, %c0_i32_0, %c0_i32_1 : i32, i32, i32
  }
  func.func @transform_10(%arg0: i32) -> (i32, i32, i32) {
    %c0_i32 = arith.constant 0 : i32
    %c0_i32_0 = arith.constant 0 : i32
    %c0_i32_1 = arith.constant 0 : i32
    %c0_i32_2 = arith.constant 0 : i32
    return %c0_i32, %c0_i32_0, %c0_i32_1 : i32, i32, i32
  }
  func.func @transform_11(%arg0: i32) -> (i32, i32, i32) {
    %c0_i32 = arith.constant 0 : i32
    %c0_i32_0 = arith.constant 0 : i32
    %c0_i32_1 = arith.constant 0 : i32
    %c0_i32_2 = arith.constant 0 : i32
    return %c0_i32, %c0_i32_0, %c0_i32_1 : i32, i32, i32
  }
  func.func @transform_12(%arg0: i32) -> (i32, i32) {
    %c0_i32 = arith.constant 0 : i32
    %c0_i32_0 = arith.constant 0 : i32
    %c0_i32_1 = arith.constant 0 : i32
    return %c0_i32, %c0_i32_0 : i32, i32
  }
  func.func @transform_13(%arg0: i32) -> (i32, i32) {
    %c0_i32 = arith.constant 0 : i32
    %c0_i32_0 = arith.constant 0 : i32
    %c0_i32_1 = arith.constant 0 : i32
    return %c0_i32, %c0_i32_0 : i32, i32
  }
  func.func @transform_14(%arg0: i32) -> (i32, i32) {
    %c0_i32 = arith.constant 0 : i32
    %c0_i32_0 = arith.constant 0 : i32
    %c0_i32_1 = arith.constant 0 : i32
    return %c0_i32, %c0_i32_0 : i32, i32
  }
  func.func @transform_15(%arg0: i32) -> (i32, i32) {
    %c0_i32 = arith.constant 0 : i32
    %c0_i32_0 = arith.constant 0 : i32
    %c0_i32_1 = arith.constant 0 : i32
    return %c0_i32, %c0_i32_0 : i32, i32
  }
  func.func @transform_16(%arg0: i32) -> (i32, i32, i32) {
    %c0_i32 = arith.constant 0 : i32
    %c0_i32_0 = arith.constant 0 : i32
    %c0_i32_1 = arith.constant 0 : i32
    return %arg0, %c0_i32, %c0_i32_0 : i32, i32, i32
  }
}

</mosaic_0001>

<llo_original>
// kernel: tpu_custom_call.1
$region0: #{tpu_custom_call.1}
  #allocation0 [shape = 'u32[]', space=smem, size = 0x4, offset = 0x4, fixed_abs, tag = 'smem constant byte address 0x4 - core index']
  #allocation1 [shape = 'u32[144,128]{1,0:T(1,128)}', space=vmem, size = 0x12000, scoped, tag = 'internal scratch']
  %s0 = inlined_call_operand.hbm [shape: f32[2,8,32], index: 0, kind: input, shape index: {}]
  %s1 = inlined_call_operand.hbm [shape: f32[2,1,32], index: 1, kind: input, shape index: {}]
  %s2 = inlined_call_operand.hbm [shape: f32[2,1,32], index: 2, kind: input, shape index: {}]
  %s3 = inlined_call_operand.hbm [shape: bf16[2,32,96], index: 3, kind: input, shape index: {}]
  %s4 = inlined_call_operand.hbm [shape: bf16[2,32,32], index: 4, kind: input, shape index: {}]
  %s5 = inlined_call_operand.hbm [shape: f32[2,1,32], index: 5, kind: input, shape index: {}]
  %s6 = inlined_call_operand.hbm [shape: f32[2,1,32], index: 6, kind: input, shape index: {}]
  %s7 = inlined_call_operand.hbm [shape: f32[2,1,32], index: 7, kind: input, shape index: {}]
  %s8 = inlined_call_operand.hbm [shape: bf16[2,32,128], index: 8, kind: input, shape index: {}]
  %s9 = inlined_call_operand.hbm [shape: f32[2,1,128], index: 9, kind: input, shape index: {}]
  %s10 = inlined_call_operand.hbm [shape: bf16[2,128,32], index: 10, kind: input, shape index: {}]
  %s11 = inlined_call_operand.hbm [shape: f32[2,1,32], index: 11, kind: input, shape index: {}]
  %s12 = inlined_call_operand.hbm [shape: f32[1,32], index: 12, kind: input, shape index: {}]
  %s13 = inlined_call_operand.hbm [shape: f32[1,32], index: 13, kind: input, shape index: {}]
  %s14 = inlined_call_operand.hbm [shape: bf16[32,128], index: 14, kind: input, shape index: {}]
  %s15 = inlined_call_operand.hbm [shape: f32[1,128], index: 15, kind: input, shape index: {}]
  %s16 = inlined_call_operand.hbm [shape: f32[2,8,128], index: 16, kind: output, shape index: {}]
  %s17 = sld [smem:[#allocation0]]
  $region161: #{tpu_custom_call.1} parent=0
    _
  %s19 = ssub.s32 1, %s17
  %s20 = scalar_select 0, %s19, %s17
  $region1: #{tpu_custom_call.1} parent=0
    #allocation2 [shape = 'u8[8192]{0}', space=vmem, size = 0x2000, scoped, tag = 'input window, operand 0']
    #allocation3 [shape = 's32[2]{0}', space=sflag, size = 0x8, scoped, tag = 'scoped memory for tpu_custom_call.1']
    #allocation4 [shape = 's32[2]{0}', space=sflag, size = 0x8, scoped, tag = 'scoped memory for tpu_custom_call.1']
    #allocation5 [shape = 'u8[1024]{0}', space=vmem, size = 0x400, scoped, tag = 'input window, operand 1, single buffered']
    #allocation6 [shape = 's32[1]{0}', space=sflag, size = 0x4, scoped, tag = 'scoped memory for tpu_custom_call.1']
    #allocation7 [shape = 'u8[1024]{0}', space=vmem, size = 0x400, scoped, tag = 'input window, operand 2, single buffered']
    #allocation8 [shape = 'u8[16384]{0}', space=vmem, size = 0x4000, scoped, tag = 'input window, operand 3, single buffered']
    #allocation9 [shape = 's32[1]{0}', space=sflag, size = 0x4, scoped, tag = 'scoped memory for tpu_custom_call.1']
    #allocation10 [shape = 'u8[16384]{0}', space=vmem, size = 0x4000, scoped, tag = 'input window, operand 4, single buffered']
    #allocation11 [shape = 'u8[1024]{0}', space=vmem, size = 0x400, scoped, tag = 'input window, operand 5, single buffered']
    #allocation12 [shape = 's32[1]{0}', space=sflag, size = 0x4, scoped, tag = 'scoped memory for tpu_custom_call.1']
    #allocation13 [shape = 'u8[1024]{0}', space=vmem, size = 0x400, scoped, tag = 'input window, operand 6, single buffered']
    #allocation14 [shape = 'u8[1024]{0}', space=vmem, size = 0x400, scoped, tag = 'input window, operand 7, single buffered']
    #allocation15 [shape = 's32[1]{0}', space=sflag, size = 0x4, scoped, tag = 'scoped memory for tpu_custom_call.1']
    #allocation16 [shape = 'u8[16384]{0}', space=vmem, size = 0x4000, scoped, tag = 'input window, operand 8, single buffered']
    #allocation17 [shape = 'u8[1024]{0}', space=vmem, size = 0x400, scoped, tag = 'input window, operand 9, single buffered']
    #allocation18 [shape = 's32[1]{0}', space=sflag, size = 0x4, scoped, tag = 'scoped memory for tpu_custom_call.1']
    #allocation19 [shape = 'u8[65536]{0}', space=vmem, size = 0x10000, scoped, tag = 'input window, operand 10, single buffered']
    #allocation20 [shape = 'u8[1024]{0}', space=vmem, size = 0x400, scoped, tag = 'input window, operand 11, single buffered']
    #allocation21 [shape = 's32[1]{0}', space=sflag, size = 0x4, scoped, tag = 'scoped memory for tpu_custom_call.1']
    #allocation22 [shape = 'u8[512]{0}', space=vmem, size = 0x400, scoped, tag = 'input window, operand 12, single buffered']
    #allocation23 [shape = 'u8[512]{0}', space=vmem, size = 0x400, scoped, tag = 'input window, operand 13, single buffered']
    #allocation24 [shape = 's32[1]{0}', space=sflag, size = 0x4, scoped, tag = 'scoped memory for tpu_custom_call.1']
    #allocation25 [shape = 'u8[8192]{0}', space=vmem, size = 0x2000, scoped, tag = 'input window, operand 14, single buffered']
    #allocation26 [shape = 'u8[512]{0}', space=vmem, size = 0x400, scoped, tag = 'input window, operand 15, single buffered']
    #allocation27 [shape = 's32[1]{0}', space=sflag, size = 0x4, scoped, tag = 'scoped memory for tpu_custom_call.1']
    #allocation28 [shape = 'u8[8192]{0}', space=vmem, size = 0x2000, scoped, tag = 'output window, operand 0']
    %21 = vsyncpa [#allocation3], 0
    %s22 = scalar_lea.sflag [#allocation3], 1
    %23 = vsyncpa %s22, 0
    %24 = vsyncpa [#allocation6], 0
    %25 = vsyncpa [#allocation9], 0
    %26 = vsyncpa [#allocation12], 0
    %27 = vsyncpa [#allocation15], 0
    %28 = vsyncpa [#allocation18], 0
    %29 = vsyncpa [#allocation21], 0
    %30 = vsyncpa [#allocation24], 0
    %31 = vsyncpa [#allocation27], 0
    %32 = vsyncpa [#allocation4], 0
    %s33 = scalar_lea.sflag [#allocation4], 1
    %34 = vsyncpa %s33, 0
    loop: start=0, step=1, limit=4
    $region2: #{tpu_custom_call.1} parent=1 // loop_pre_header
      _
    $region3: #{tpu_custom_call.1} parent=1 // loop_header
      %s36 = sphi 0, %s40
      %p37 = scmp.ge.s32.totalorder %s36, 4
      %s46 = sphi 0, %s48
      %s49 = sphi 0, %s46
      %s50 = sphi 0, %s49
      %s66 = sphi 0, %s50
      %s70 = sphi 0, %s70
      %s72 = sphi 0, %s70
      %s73 = sphi 0, %s72
      %s87 = sphi 0, %s73
      %s91 = sphi 0, %s91
      %s93 = sphi 0, %s91
      %s94 = sphi 0, %s93
      %s108 = sphi 0, %s94
      %s112 = sphi 0, %s112
      %s114 = sphi 0, %s112
      %s115 = sphi 0, %s114
      %s129 = sphi 0, %s115
      %s133 = sphi 0, %s133
      %s135 = sphi 0, %s133
      %s136 = sphi 0, %s135
      %s150 = sphi 0, %s136
      %s154 = sphi 0, %s154
      %s156 = sphi 0, %s154
      %s157 = sphi 0, %s156
      %s171 = sphi 0, %s157
      %s175 = sphi 0, %s175
      %s177 = sphi 0, %s175
      %s178 = sphi 0, %s177
      %s192 = sphi 0, %s178
      %s196 = sphi 0, %s196
      %s198 = sphi 0, %s196
      %s199 = sphi 0, %s198
      %s213 = sphi 0, %s199
      %s217 = sphi 0, %s217
      %s219 = sphi 0, %s217
      %s220 = sphi 0, %s219
      %s234 = sphi 0, %s220
      %s238 = sphi 0, %s238
      %s240 = sphi 0, %s238
      %s241 = sphi 0, %s240
      %s255 = sphi 0, %s241
      %s259 = sphi 0, %s259
      %s261 = sphi 0, %s259
      %s262 = sphi 0, %s261
      %s276 = sphi 0, %s262
      %s280 = sphi 0, %s280
      %s282 = sphi 0, %s280
      %s283 = sphi 0, %s282
      %s297 = sphi 0, %s283
      %s301 = sphi 0, %s301
      %s303 = sphi 0, %s301
      %s304 = sphi 0, %s303
      %s318 = sphi 0, %s304
      %s322 = sphi 0, %s322
      %s324 = sphi 0, %s322
      %s325 = sphi 0, %s324
      %s339 = sphi 0, %s325
      %s343 = sphi 0, %s343
      %s345 = sphi 0, %s343
      %s346 = sphi 0, %s345
      %s360 = sphi 0, %s346
      %s364 = sphi 0, %s364
      %s366 = sphi 0, %s364
      %s367 = sphi 0, %s366
      %s381 = sphi 0, %s367
      %s387 = sphi 0, %s389
      %s390 = sphi 0, %s387
      %s391 = sphi 0, %s390
      %s407 = sphi 0, %s391
    $region4: #{tpu_custom_call.1} parent=1 // loop_header_branch
      %39 = sbr.rel (%p37) target = $region8
    $region5: #{tpu_custom_call.1} parent=1 // loop_body
      %s41 = ssub.s32 %s36, 1
      %s42 = ssub.s32 %s36, 2
      %s43 = sadd.s32 %s36, 1
      %s44 = ssub.s32 %s36, %s43
      %p45 = scmp.eq.s32.totalorder %s44, 0
      %s47 = sadd.s32 %s46, 1
      %s48 = scalar_select %p45, %s46, %s47
      %p51 = pneg %p45
      %p52 = scmp.eq.s32.totalorder %s36, 1
      %p53 = por %p51, %p52
      %p54 = scmp.ne.s32.totalorder %s46, %s49
      %p55 = scmp.eq.s32.totalorder %s36, 0
      %p56 = por %p54, %p55
      %p57 = scmp.ne.s32.totalorder %s46, %s49
      %p58 = scmp.eq.s32.totalorder %s41, 1
      %p59 = por %p57, %p58
      %p60 = scmp.ne.s32.totalorder %s49, %s50
      %p61 = scmp.eq.s32.totalorder %s41, 0
      %p62 = por %p60, %p61
      %p63 = scmp.ne.s32.totalorder %s49, %s50
      %p64 = scmp.eq.s32.totalorder %s42, 1
      %p65 = por %p63, %p64
      %p67 = scmp.ne.s32.totalorder %s50, %s66
      %p68 = scmp.eq.s32.totalorder %s42, 0
      %p69 = por %p67, %p68
      %s71 = sadd.s32 %s70, 1
      %p74 = scmp.eq.s32.totalorder %s36, 1
      %p75 = scmp.ne.s32.totalorder %s70, %s72
      %p76 = scmp.eq.s32.totalorder %s36, 0
      %p77 = por %p75, %p76
      %p78 = scmp.ne.s32.totalorder %s70, %s72
      %p79 = scmp.eq.s32.totalorder %s41, 1
      %p80 = por %p78, %p79
      %p81 = scmp.ne.s32.totalorder %s72, %s73
      %p82 = scmp.eq.s32.totalorder %s41, 0
      %p83 = por %p81, %p82
      %p84 = scmp.ne.s32.totalorder %s72, %s73
      %p85 = scmp.eq.s32.totalorder %s42, 1
      %p86 = por %p84, %p85
      %p88 = scmp.ne.s32.totalorder %s73, %s87
      %p89 = scmp.eq.s32.totalorder %s42, 0
      %p90 = por %p88, %p89
      %s92 = sadd.s32 %s91, 1
      %p95 = scmp.eq.s32.totalorder %s36, 1
      %p96 = scmp.ne.s32.totalorder %s91, %s93
      %p97 = scmp.eq.s32.totalorder %s36, 0
      %p98 = por %p96, %p97
      %p99 = scmp.ne.s32.totalorder %s91, %s93
      %p100 = scmp.eq.s32.totalorder %s41, 1
      %p101 = por %p99, %p100
      %p102 = scmp.ne.s32.totalorder %s93, %s94
      %p103 = scmp.eq.s32.totalorder %s41, 0
      %p104 = por %p102, %p103
      %p105 = scmp.ne.s32.totalorder %s93, %s94
      %p106 = scmp.eq.s32.totalorder %s42, 1
      %p107 = por %p105, %p106
      %p109 = scmp.ne.s32.totalorder %s94, %s108
      %p110 = scmp.eq.s32.totalorder %s42, 0
      %p111 = por %p109, %p110
      %s113 = sadd.s32 %s112, 1
      %p116 = scmp.eq.s32.totalorder %s36, 1
      %p117 = scmp.ne.s32.totalorder %s112, %s114
      %p118 = scmp.eq.s32.totalorder %s36, 0
      %p119 = por %p117, %p118
      %p120 = scmp.ne.s32.totalorder %s112, %s114
      %p121 = scmp.eq.s32.totalorder %s41, 1
      %p122 = por %p120, %p121
      %p123 = scmp.ne.s32.totalorder %s114, %s115
      %p124 = scmp.eq.s32.totalorder %s41, 0
      %p125 = por %p123, %p124
      %p126 = scmp.ne.s32.totalorder %s114, %s115
      %p127 = scmp.eq.s32.totalorder %s42, 1
      %p128 = por %p126, %p127
      %p130 = scmp.ne.s32.totalorder %s115, %s129
      %p131 = scmp.eq.s32.totalorder %s42, 0
      %p132 = por %p130, %p131
      %s134 = sadd.s32 %s133, 1
      %p137 = scmp.eq.s32.totalorder %s36, 1
      %p138 = scmp.ne.s32.totalorder %s133, %s135
      %p139 = scmp.eq.s32.totalorder %s36, 0
      %p140 = por %p138, %p139
      %p141 = scmp.ne.s32.totalorder %s133, %s135
      %p142 = scmp.eq.s32.totalorder %s41, 1
      %p143 = por %p141, %p142
      %p144 = scmp.ne.s32.totalorder %s135, %s136
      %p145 = scmp.eq.s32.totalorder %s41, 0
      %p146 = por %p144, %p145
      %p147 = scmp.ne.s32.totalorder %s135, %s136
      %p148 = scmp.eq.s32.totalorder %s42, 1
      %p149 = por %p147, %p148
      %p151 = scmp.ne.s32.totalorder %s136, %s150
      %p152 = scmp.eq.s32.totalorder %s42, 0
      %p153 = por %p151, %p152
      %s155 = sadd.s32 %s154, 1
      %p158 = scmp.eq.s32.totalorder %s36, 1
      %p159 = scmp.ne.s32.totalorder %s154, %s156
      %p160 = scmp.eq.s32.totalorder %s36, 0
      %p161 = por %p159, %p160
      %p162 = scmp.ne.s32.totalorder %s154, %s156
      %p163 = scmp.eq.s32.totalorder %s41, 1
      %p164 = por %p162, %p163
      %p165 = scmp.ne.s32.totalorder %s156, %s157
      %p166 = scmp.eq.s32.totalorder %s41, 0
      %p167 = por %p165, %p166
      %p168 = scmp.ne.s32.totalorder %s156, %s157
      %p169 = scmp.eq.s32.totalorder %s42, 1
      %p170 = por %p168, %p169
      %p172 = scmp.ne.s32.totalorder %s157, %s171
      %p173 = scmp.eq.s32.totalorder %s42, 0
      %p174 = por %p172, %p173
      %s176 = sadd.s32 %s175, 1
      %p179 = scmp.eq.s32.totalorder %s36, 1
      %p180 = scmp.ne.s32.totalorder %s175, %s177
      %p181 = scmp.eq.s32.totalorder %s36, 0
      %p182 = por %p180, %p181
      %p183 = scmp.ne.s32.totalorder %s175, %s177
      %p184 = scmp.eq.s32.totalorder %s41, 1
      %p185 = por %p183, %p184
      %p186 = scmp.ne.s32.totalorder %s177, %s178
      %p187 = scmp.eq.s32.totalorder %s41, 0
      %p188 = por %p186, %p187
      %p189 = scmp.ne.s32.totalorder %s177, %s178
      %p190 = scmp.eq.s32.totalorder %s42, 1
      %p191 = por %p189, %p190
      %p193 = scmp.ne.s32.totalorder %s178, %s192
      %p194 = scmp.eq.s32.totalorder %s42, 0
      %p195 = por %p193, %p194
      %s197 = sadd.s32 %s196, 1
      %p200 = scmp.eq.s32.totalorder %s36, 1
      %p201 = scmp.ne.s32.totalorder %s196, %s198
      %p202 = scmp.eq.s32.totalorder %s36, 0
      %p203 = por %p201, %p202
      %p204 = scmp.ne.s32.totalorder %s196, %s198
      %p205 = scmp.eq.s32.totalorder %s41, 1
      %p206 = por %p204, %p205
      %p207 = scmp.ne.s32.totalorder %s198, %s199
      %p208 = scmp.eq.s32.totalorder %s41, 0
      %p209 = por %p207, %p208
      %p210 = scmp.ne.s32.totalorder %s198, %s199
      %p211 = scmp.eq.s32.totalorder %s42, 1
      %p212 = por %p210, %p211
      %p214 = scmp.ne.s32.totalorder %s199, %s213
      %p215 = scmp.eq.s32.totalorder %s42, 0
      %p216 = por %p214, %p215
      %s218 = sadd.s32 %s217, 1
      %p221 = scmp.eq.s32.totalorder %s36, 1
      %p222 = scmp.ne.s32.totalorder %s217, %s219
      %p223 = scmp.eq.s32.totalorder %s36, 0
      %p224 = por %p222, %p223
      %p225 = scmp.ne.s32.totalorder %s217, %s219
      %p226 = scmp.eq.s32.totalorder %s41, 1
      %p227 = por %p225, %p226
      %p228 = scmp.ne.s32.totalorder %s219, %s220
      %p229 = scmp.eq.s32.totalorder %s41, 0
      %p230 = por %p228, %p229
      %p231 = scmp.ne.s32.totalorder %s219, %s220
      %p232 = scmp.eq.s32.totalorder %s42, 1
      %p233 = por %p231, %p232
      %p235 = scmp.ne.s32.totalorder %s220, %s234
      %p236 = scmp.eq.s32.totalorder %s42, 0
      %p237 = por %p235, %p236
      %s239 = sadd.s32 %s238, 1
      %p242 = scmp.eq.s32.totalorder %s36, 1
      %p243 = scmp.ne.s32.totalorder %s238, %s240
      %p244 = scmp.eq.s32.totalorder %s36, 0
      %p245 = por %p243, %p244
      %p246 = scmp.ne.s32.totalorder %s238, %s240
      %p247 = scmp.eq.s32.totalorder %s41, 1
      %p248 = por %p246, %p247
      %p249 = scmp.ne.s32.totalorder %s240, %s241
      %p250 = scmp.eq.s32.totalorder %s41, 0
      %p251 = por %p249, %p250
      %p252 = scmp.ne.s32.totalorder %s240, %s241
      %p253 = scmp.eq.s32.totalorder %s42, 1
      %p254 = por %p252, %p253
      %p256 = scmp.ne.s32.totalorder %s241, %s255
      %p257 = scmp.eq.s32.totalorder %s42, 0
      %p258 = por %p256, %p257
      %s260 = sadd.s32 %s259, 1
      %p263 = scmp.eq.s32.totalorder %s36, 1
      %p264 = scmp.ne.s32.totalorder %s259, %s261
      %p265 = scmp.eq.s32.totalorder %s36, 0
      %p266 = por %p264, %p265
      %p267 = scmp.ne.s32.totalorder %s259, %s261
      %p268 = scmp.eq.s32.totalorder %s41, 1
      %p269 = por %p267, %p268
      %p270 = scmp.ne.s32.totalorder %s261, %s262
      %p271 = scmp.eq.s32.totalorder %s41, 0
      %p272 = por %p270, %p271
      %p273 = scmp.ne.s32.totalorder %s261, %s262
      %p274 = scmp.eq.s32.totalorder %s42, 1
      %p275 = por %p273, %p274
      %p277 = scmp.ne.s32.totalorder %s262, %s276
      %p278 = scmp.eq.s32.totalorder %s42, 0
      %p279 = por %p277, %p278
      %s281 = sadd.s32 %s280, 1
      %p284 = scmp.eq.s32.totalorder %s36, 1
      %p285 = scmp.ne.s32.totalorder %s280, %s282
      %p286 = scmp.eq.s32.totalorder %s36, 0
      %p287 = por %p285, %p286
      %p288 = scmp.ne.s32.totalorder %s280, %s282
      %p289 = scmp.eq.s32.totalorder %s41, 1
      %p290 = por %p288, %p289
      %p291 = scmp.ne.s32.totalorder %s282, %s283
      %p292 = scmp.eq.s32.totalorder %s41, 0
      %p293 = por %p291, %p292
      %p294 = scmp.ne.s32.totalorder %s282, %s283
      %p295 = scmp.eq.s32.totalorder %s42, 1
      %p296 = por %p294, %p295
      %p298 = scmp.ne.s32.totalorder %s283, %s297
      %p299 = scmp.eq.s32.totalorder %s42, 0
      %p300 = por %p298, %p299
      %s302 = sadd.s32 %s301, 1
      %p305 = scmp.eq.s32.totalorder %s36, 1
      %p306 = scmp.ne.s32.totalorder %s301, %s303
      %p307 = scmp.eq.s32.totalorder %s36, 0
      %p308 = por %p306, %p307
      %p309 = scmp.ne.s32.totalorder %s301, %s303
      %p310 = scmp.eq.s32.totalorder %s41, 1
      %p311 = por %p309, %p310
      %p312 = scmp.ne.s32.totalorder %s303, %s304
      %p313 = scmp.eq.s32.totalorder %s41, 0
      %p314 = por %p312, %p313
      %p315 = scmp.ne.s32.totalorder %s303, %s304
      %p316 = scmp.eq.s32.totalorder %s42, 1
      %p317 = por %p315, %p316
      %p319 = scmp.ne.s32.totalorder %s304, %s318
      %p320 = scmp.eq.s32.totalorder %s42, 0
      %p321 = por %p319, %p320
      %s323 = sadd.s32 %s322, 1
      %p326 = scmp.eq.s32.totalorder %s36, 1
      %p327 = scmp.ne.s32.totalorder %s322, %s324
      %p328 = scmp.eq.s32.totalorder %s36, 0
      %p329 = por %p327, %p328
      %p330 = scmp.ne.s32.totalorder %s322, %s324
      %p331 = scmp.eq.s32.totalorder %s41, 1
      %p332 = por %p330, %p331
      %p333 = scmp.ne.s32.totalorder %s324, %s325
      %p334 = scmp.eq.s32.totalorder %s41, 0
      %p335 = por %p333, %p334
      %p336 = scmp.ne.s32.totalorder %s324, %s325
      %p337 = scmp.eq.s32.totalorder %s42, 1
      %p338 = por %p336, %p337
      %p340 = scmp.ne.s32.totalorder %s325, %s339
      %p341 = scmp.eq.s32.totalorder %s42, 0
      %p342 = por %p340, %p341
      %s344 = sadd.s32 %s343, 1
      %p347 = scmp.eq.s32.totalorder %s36, 1
      %p348 = scmp.ne.s32.totalorder %s343, %s345
      %p349 = scmp.eq.s32.totalorder %s36, 0
      %p350 = por %p348, %p349
      %p351 = scmp.ne.s32.totalorder %s343, %s345
      %p352 = scmp.eq.s32.totalorder %s41, 1
      %p353 = por %p351, %p352
      %p354 = scmp.ne.s32.totalorder %s345, %s346
      %p355 = scmp.eq.s32.totalorder %s41, 0
      %p356 = por %p354, %p355
      %p357 = scmp.ne.s32.totalorder %s345, %s346
      %p358 = scmp.eq.s32.totalorder %s42, 1
      %p359 = por %p357, %p358
      %p361 = scmp.ne.s32.totalorder %s346, %s360
      %p362 = scmp.eq.s32.totalorder %s42, 0
      %p363 = por %p361, %p362
      %s365 = sadd.s32 %s364, 1
      %p368 = scmp.eq.s32.totalorder %s36, 1
      %p369 = scmp.ne.s32.totalorder %s364, %s366
      %p370 = scmp.eq.s32.totalorder %s36, 0
      %p371 = por %p369, %p370
      %p372 = scmp.ne.s32.totalorder %s364, %s366
      %p373 = scmp.eq.s32.totalorder %s41, 1
      %p374 = por %p372, %p373
      %p375 = scmp.ne.s32.totalorder %s366, %s367
      %p376 = scmp.eq.s32.totalorder %s41, 0
      %p377 = por %p375, %p376
      %p378 = scmp.ne.s32.totalorder %s366, %s367
      %p379 = scmp.eq.s32.totalorder %s42, 1
      %p380 = por %p378, %p379
      %p382 = scmp.ne.s32.totalorder %s367, %s381
      %p383 = scmp.eq.s32.totalorder %s42, 0
      %p384 = por %p382, %p383
      %s385 = ssub.s32 %s36, %s43
      %p386 = scmp.eq.s32.totalorder %s385, 0
      %s388 = sadd.s32 %s387, 1
      %s389 = scalar_select %p386, %s387, %s388
      %p392 = pneg %p386
      %p393 = scmp.eq.s32.totalorder %s36, 1
      %p394 = por %p392, %p393
      %p395 = scmp.ne.s32.totalorder %s387, %s390
      %p396 = scmp.eq.s32.totalorder %s36, 0
      %p397 = por %p395, %p396
      %p398 = scmp.ne.s32.totalorder %s387, %s390
      %p399 = scmp.eq.s32.totalorder %s41, 1
      %p400 = por %p398, %p399
      %p401 = scmp.ne.s32.totalorder %s390, %s391
      %p402 = scmp.eq.s32.totalorder %s41, 0
      %p403 = por %p401, %p402
      %p404 = scmp.ne.s32.totalorder %s390, %s391
      %p405 = scmp.eq.s32.totalorder %s42, 1
      %p406 = por %p404, %p405
      %p408 = scmp.ne.s32.totalorder %s391, %s407
      %p409 = scmp.eq.s32.totalorder %s42, 0
      %p410 = por %p408, %p409
      %p411 = scmp.le.s32.totalorder 1, %s36
      %p412 = scmp.lt.s32.totalorder %s36, 3
      %p413 = pnand %p411, %p412
      %p414 = pneg %p413
      // Predicated region
      $region9: #{tpu_custom_call.1} parent=5 // pred_check
        _
      $region10: #{tpu_custom_call.1} parent=5 // pred_check_branch
        %416 = sbr.rel (%p413) target = $region12
      $region11: #{tpu_custom_call.1} parent=5 // pred_region
        %s417 = ssub.s32 %s36, 1
        // Predicated region
        $region13: #{tpu_custom_call.1} parent=11 // pred_check
          %p418 = pneg %p83
        $region14: #{tpu_custom_call.1} parent=11 // pred_check_branch
          %420 = sbr.rel (%p418) target = $region16
        $region15: #{tpu_custom_call.1} parent=11 // pred_region
          %s422 = ssub.s32 32, 32
          %423 = vsyncadd [#allocation6], %s422
          %s424 = sshll.u32 [#allocation5], 4
          %s425 = int_to_ptr.vmem [resolvable:$true] %s424
          %430 = dma.hbm_to_vmem [thread:$0]  %s1, 32, %s425, [#allocation6], 16, 16, 1
        $region16: #{tpu_custom_call.1} parent=11 // pred_fallthru
          _
        // Predicated region
        $region17: #{tpu_custom_call.1} parent=11 // pred_check
          %p431 = pneg %p104
        $region18: #{tpu_custom_call.1} parent=11 // pred_check_branch
          %433 = sbr.rel (%p431) target = $region20
        $region19: #{tpu_custom_call.1} parent=11 // pred_region
          %s435 = ssub.s32 32, 32
          %436 = vsyncadd [#allocation6], %s435
          %s437 = sshll.u32 [#allocation7], 4
          %s438 = int_to_ptr.vmem [resolvable:$true] %s437
          %443 = dma.hbm_to_vmem [thread:$0]  %s2, 32, %s438, [#allocation6], 16, 16, 1
        $region20: #{tpu_custom_call.1} parent=11 // pred_fallthru
          _
        // Predicated region
        $region21: #{tpu_custom_call.1} parent=11 // pred_check
          %p444 = pneg %p125
        $region22: #{tpu_custom_call.1} parent=11 // pred_check_branch
          %446 = sbr.rel (%p444) target = $region24
        $region23: #{tpu_custom_call.1} parent=11 // pred_region
          %s448 = ssub.s32 512, 512
          %449 = vsyncadd [#allocation9], %s448
          %s450 = sshll.u32 [#allocation8], 4
          %s451 = int_to_ptr.vmem [resolvable:$true] %s450
          %456 = dma.hbm_to_vmem [thread:$0]  %s3, 512, %s451, [#allocation9], 64, 64, 4
        $region24: #{tpu_custom_call.1} parent=11 // pred_fallthru
          _
        // Predicated region
        $region25: #{tpu_custom_call.1} parent=11 // pred_check
          %p457 = pneg %p146
        $region26: #{tpu_custom_call.1} parent=11 // pred_check_branch
          %459 = sbr.rel (%p457) target = $region28
        $region27: #{tpu_custom_call.1} parent=11 // pred_region
          %s461 = ssub.s32 512, 512
          %462 = vsyncadd [#allocation9], %s461
          %s463 = sshll.u32 [#allocation10], 4
          %s464 = int_to_ptr.vmem [resolvable:$true] %s463
          %469 = dma.hbm_to_vmem [thread:$0]  %s4, 512, %s464, [#allocation9], 64, 64, 4
        $region28: #{tpu_custom_call.1} parent=11 // pred_fallthru
          _
        // Predicated region
        $region29: #{tpu_custom_call.1} parent=11 // pred_check
          %p470 = pneg %p167
        $region30: #{tpu_custom_call.1} parent=11 // pred_check_branch
          %472 = sbr.rel (%p470) target = $region32
        $region31: #{tpu_custom_call.1} parent=11 // pred_region
          %s474 = ssub.s32 32, 32
          %475 = vsyncadd [#allocation12], %s474
          %s476 = sshll.u32 [#allocation11], 4
          %s477 = int_to_ptr.vmem [resolvable:$true] %s476
          %482 = dma.hbm_to_vmem [thread:$0]  %s5, 32, %s477, [#allocation12], 16, 16, 1
        $region32: #{tpu_custom_call.1} parent=11 // pred_fallthru
          _
        // Predicated region
        $region33: #{tpu_custom_call.1} parent=11 // pred_check
          %p483 = pneg %p188
        $region34: #{tpu_custom_call.1} parent=11 // pred_check_branch
          %485 = sbr.rel (%p483) target = $region36
        $region35: #{tpu_custom_call.1} parent=11 // pred_region
          %s487 = ssub.s32 32, 32
          %488 = vsyncadd [#allocation12], %s487
          %s489 = sshll.u32 [#allocation13], 4
          %s490 = int_to_ptr.vmem [resolvable:$true] %s489
          %495 = dma.hbm_to_vmem [thread:$0]  %s6, 32, %s490, [#allocation12], 16, 16, 1
        $region36: #{tpu_custom_call.1} parent=11 // pred_fallthru
          _
        // Predicated region
        $region37: #{tpu_custom_call.1} parent=11 // pred_check
          %p496 = pneg %p209
        $region38: #{tpu_custom_call.1} parent=11 // pred_check_branch
          %498 = sbr.rel (%p496) target = $region40
        $region39: #{tpu_custom_call.1} parent=11 // pred_region
          %s500 = ssub.s32 32, 32
          %501 = vsyncadd [#allocation15], %s500
          %s502 = sshll.u32 [#allocation14], 4
          %s503 = int_to_ptr.vmem [resolvable:$true] %s502
          %508 = dma.hbm_to_vmem [thread:$0]  %s7, 32, %s503, [#allocation15], 16, 16, 1
        $region40: #{tpu_custom_call.1} parent=11 // pred_fallthru
          _
        // Predicated region
        $region41: #{tpu_custom_call.1} parent=11 // pred_check
          %p509 = pneg %p230
        $region42: #{tpu_custom_call.1} parent=11 // pred_check_branch
          %511 = sbr.rel (%p509) target = $region44
        $region43: #{tpu_custom_call.1} parent=11 // pred_region
          %s513 = ssub.s32 512, 512
          %514 = vsyncadd [#allocation15], %s513
          %s515 = sshll.u32 [#allocation16], 4
          %s516 = int_to_ptr.vmem [resolvable:$true] %s515
          %521 = dma.hbm_to_vmem [thread:$0]  %s8, 512, %s516, [#allocation15], 64, 64, 4
        $region44: #{tpu_custom_call.1} parent=11 // pred_fallthru
          _
        // Predicated region
        $region45: #{tpu_custom_call.1} parent=11 // pred_check
          %p522 = pneg %p251
        $region46: #{tpu_custom_call.1} parent=11 // pred_check_branch
          %524 = sbr.rel (%p522) target = $region48
        $region47: #{tpu_custom_call.1} parent=11 // pred_region
          %s526 = ssub.s32 32, 32
          %527 = vsyncadd [#allocation18], %s526
          %s528 = sshll.u32 [#allocation17], 4
          %s529 = int_to_ptr.vmem [resolvable:$true] %s528
          %534 = dma.hbm_to_vmem [thread:$0]  %s9, 32, %s529, [#allocation18], 16, 16, 1
        $region48: #{tpu_custom_call.1} parent=11 // pred_fallthru
          _
        // Predicated region
        $region49: #{tpu_custom_call.1} parent=11 // pred_check
          %p535 = pneg %p272
        $region50: #{tpu_custom_call.1} parent=11 // pred_check_branch
          %537 = sbr.rel (%p535) target = $region52
        $region51: #{tpu_custom_call.1} parent=11 // pred_region
          %s539 = ssub.s32 2048, 2048
          %540 = vsyncadd [#allocation18], %s539
          %s541 = sshll.u32 [#allocation19], 4
          %s542 = int_to_ptr.vmem [resolvable:$true] %s541
          %547 = dma.hbm_to_vmem [thread:$0]  %s10, 2048, %s542, [#allocation18], 64, 64, 4
        $region52: #{tpu_custom_call.1} parent=11 // pred_fallthru
          _
        // Predicated region
        $region53: #{tpu_custom_call.1} parent=11 // pred_check
          %p548 = pneg %p293
        $region54: #{tpu_custom_call.1} parent=11 // pred_check_branch
          %550 = sbr.rel (%p548) target = $region56
        $region55: #{tpu_custom_call.1} parent=11 // pred_region
          %s552 = ssub.s32 32, 32
          %553 = vsyncadd [#allocation21], %s552
          %s554 = sshll.u32 [#allocation20], 4
          %s555 = int_to_ptr.vmem [resolvable:$true] %s554
          %560 = dma.hbm_to_vmem [thread:$0]  %s11, 32, %s555, [#allocation21], 16, 16, 1
        $region56: #{tpu_custom_call.1} parent=11 // pred_fallthru
          _
        // Predicated region
        $region57: #{tpu_custom_call.1} parent=11 // pred_check
          %p561 = pneg %p314
        $region58: #{tpu_custom_call.1} parent=11 // pred_check_branch
          %563 = sbr.rel (%p561) target = $region60
        $region59: #{tpu_custom_call.1} parent=11 // pred_region
          %s565 = ssub.s32 16, 16
          %566 = vsyncadd [#allocation21], %s565
          %s568 = sshll.u32 [#allocation22], 4
          %s569 = int_to_ptr.vmem [resolvable:$true] %s568
          %571 = dma.hbm_to_vmem [thread:$0]  %s12, 16, %s569, [#allocation21]
        $region60: #{tpu_custom_call.1} parent=11 // pred_fallthru
          _
        // Predicated region
        $region61: #{tpu_custom_call.1} parent=11 // pred_check
          %p572 = pneg %p335
        $region62: #{tpu_custom_call.1} parent=11 // pred_check_branch
          %574 = sbr.rel (%p572) target = $region64
        $region63: #{tpu_custom_call.1} parent=11 // pred_region
          %s576 = ssub.s32 16, 16
          %577 = vsyncadd [#allocation24], %s576
          %s579 = sshll.u32 [#allocation23], 4
          %s580 = int_to_ptr.vmem [resolvable:$true] %s579
          %582 = dma.hbm_to_vmem [thread:$0]  %s13, 16, %s580, [#allocation24]
        $region64: #{tpu_custom_call.1} parent=11 // pred_fallthru
          _
        // Predicated region
        $region65: #{tpu_custom_call.1} parent=11 // pred_check
          %p583 = pneg %p356
        $region66: #{tpu_custom_call.1} parent=11 // pred_check_branch
          %585 = sbr.rel (%p583) target = $region68
        $region67: #{tpu_custom_call.1} parent=11 // pred_region
          %s587 = ssub.s32 256, 256
          %588 = vsyncadd [#allocation24], %s587
          %s589 = sshll.u32 [#allocation25], 4
          %s590 = int_to_ptr.vmem [resolvable:$true] %s589
          %595 = dma.hbm_to_vmem [thread:$0]  %s14, 256, %s590, [#allocation24], 64, 64, 4
        $region68: #{tpu_custom_call.1} parent=11 // pred_fallthru
          _
        // Predicated region
        $region69: #{tpu_custom_call.1} parent=11 // pred_check
          %p596 = pneg %p377
        $region70: #{tpu_custom_call.1} parent=11 // pred_check_branch
          %598 = sbr.rel (%p596) target = $region72
        $region71: #{tpu_custom_call.1} parent=11 // pred_region
          %s600 = ssub.s32 16, 16
          %601 = vsyncadd [#allocation27], %s600
          %s603 = sshll.u32 [#allocation26], 4
          %s604 = int_to_ptr.vmem [resolvable:$true] %s603
          %606 = dma.hbm_to_vmem [thread:$0]  %s15, 16, %s604, [#allocation27]
        $region72: #{tpu_custom_call.1} parent=11 // pred_fallthru
          _
      $region12: #{tpu_custom_call.1} parent=5 // pred_fallthru
        _
      %p607 = scmp.lt.s32.totalorder %s36, 2
      // Predicated region
      $region73: #{tpu_custom_call.1} parent=5 // pred_check
        %p608 = pneg %p607
      $region74: #{tpu_custom_call.1} parent=5 // pred_check_branch
        %610 = sbr.rel (%p608) target = $region76
      $region75: #{tpu_custom_call.1} parent=5 // pred_region
        // Predicated region
        $region77: #{tpu_custom_call.1} parent=75 // pred_check
          %p611 = pneg %p56
        $region78: #{tpu_custom_call.1} parent=75 // pred_check_branch
          %613 = sbr.rel (%p611) target = $region80
        $region79: #{tpu_custom_call.1} parent=75 // pred_region
          %s614 = sand.u32 %s46, 1
          %s615 = scalar_lea.sflag [#allocation3], %s614
          %s616 = sand.u32 %s46, 1
          %s617 = smul.addr %s616, 8
          %s618 = scalar_lea.vmem [#allocation2], %s617
          %s620 = ssub.s32 128, 128
          %621 = vsyncadd %s615, %s620
          %s622 = smul.addr %s36, 128
          %s623 = scalar_lea.hbm %s0, %s622
          %s625 = sshll.u32 %s618, 4
          %s626 = int_to_ptr.vmem [resolvable:$true] %s625
          %628 = dma.hbm_to_vmem [thread:$0]  %s623, 128, %s626, %s615
        $region80: #{tpu_custom_call.1} parent=75 // pred_fallthru
          _
      $region76: #{tpu_custom_call.1} parent=5 // pred_fallthru
        _
      %p629 = scmp.le.s32.totalorder 1, %s36
      %p630 = scmp.lt.s32.totalorder %s36, 3
      %p631 = pnand %p629, %p630
      %p632 = pneg %p631
      // Predicated region
      $region81: #{tpu_custom_call.1} parent=5 // pred_check
        _
      $region82: #{tpu_custom_call.1} parent=5 // pred_check_branch
        %634 = sbr.rel (%p631) target = $region84
      $region83: #{tpu_custom_call.1} parent=5 // pred_region
        %s635 = ssub.s32 %s36, 1
        %s636 = sand.u32 %s49, 1
        %s637 = scalar_lea.sflag [#allocation3], %s636
        %s638 = sand.u32 %s49, 1
        %s639 = smul.addr %s638, 8
        %s640 = scalar_lea.vmem [#allocation2], %s639
        // Predicated region
        $region85: #{tpu_custom_call.1} parent=83 // pred_check
          %p641 = pneg %p62
        $region86: #{tpu_custom_call.1} parent=83 // pred_check_branch
          %643 = sbr.rel (%p641) target = $region88
        $region87: #{tpu_custom_call.1} parent=83 // pred_region
          %644 = dma.done %s637, 128
        $region88: #{tpu_custom_call.1} parent=83 // pred_fallthru
          _
        // Predicated region
        $region89: #{tpu_custom_call.1} parent=83 // pred_check
          %p645 = pneg %p83
        $region90: #{tpu_custom_call.1} parent=83 // pred_check_branch
          %647 = sbr.rel (%p645) target = $region92
        $region91: #{tpu_custom_call.1} parent=83 // pred_region
          %648 = dma.done [#allocation6], 32
        $region92: #{tpu_custom_call.1} parent=83 // pred_fallthru
          _
        // Predicated region
        $region93: #{tpu_custom_call.1} parent=83 // pred_check
          %p649 = pneg %p104
        $region94: #{tpu_custom_call.1} parent=83 // pred_check_branch
          %651 = sbr.rel (%p649) target = $region96
        $region95: #{tpu_custom_call.1} parent=83 // pred_region
          %652 = dma.done [#allocation6], 32
        $region96: #{tpu_custom_call.1} parent=83 // pred_fallthru
          _
        // Predicated region
        $region97: #{tpu_custom_call.1} parent=83 // pred_check
          %p653 = pneg %p125
        $region98: #{tpu_custom_call.1} parent=83 // pred_check_branch
          %655 = sbr.rel (%p653) target = $region100
        $region99: #{tpu_custom_call.1} parent=83 // pred_region
          %656 = dma.done [#allocation9], 512
        $region100: #{tpu_custom_call.1} parent=83 // pred_fallthru
          _
        // Predicated region
        $region101: #{tpu_custom_call.1} parent=83 // pred_check
          %p657 = pneg %p146
        $region102: #{tpu_custom_call.1} parent=83 // pred_check_branch
          %659 = sbr.rel (%p657) target = $region104
        $region103: #{tpu_custom_call.1} parent=83 // pred_region
          %660 = dma.done [#allocation9], 512
        $region104: #{tpu_custom_call.1} parent=83 // pred_fallthru
          _
        // Predicated region
        $region105: #{tpu_custom_call.1} parent=83 // pred_check
          %p661 = pneg %p167
        $region106: #{tpu_custom_call.1} parent=83 // pred_check_branch
          %663 = sbr.rel (%p661) target = $region108
        $region107: #{tpu_custom_call.1} parent=83 // pred_region
          %664 = dma.done [#allocation12], 32
        $region108: #{tpu_custom_call.1} parent=83 // pred_fallthru
          _
        // Predicated region
        $region109: #{tpu_custom_call.1} parent=83 // pred_check
          %p665 = pneg %p188
        $region110: #{tpu_custom_call.1} parent=83 // pred_check_branch
          %667 = sbr.rel (%p665) target = $region112
        $region111: #{tpu_custom_call.1} parent=83 // pred_region
          %668 = dma.done [#allocation12], 32
        $region112: #{tpu_custom_call.1} parent=83 // pred_fallthru
          _
        // Predicated region
        $region113: #{tpu_custom_call.1} parent=83 // pred_check
          %p669 = pneg %p209
        $region114: #{tpu_custom_call.1} parent=83 // pred_check_branch
          %671 = sbr.rel (%p669) target = $region116
        $region115: #{tpu_custom_call.1} parent=83 // pred_region
          %672 = dma.done [#allocation15], 32
        $region116: #{tpu_custom_call.1} parent=83 // pred_fallthru
          _
        // Predicated region
        $region117: #{tpu_custom_call.1} parent=83 // pred_check
          %p673 = pneg %p230
        $region118: #{tpu_custom_call.1} parent=83 // pred_check_branch
          %675 = sbr.rel (%p673) target = $region120
        $region119: #{tpu_custom_call.1} parent=83 // pred_region
          %676 = dma.done [#allocation15], 512
        $region120: #{tpu_custom_call.1} parent=83 // pred_fallthru
          _
        // Predicated region
        $region121: #{tpu_custom_call.1} parent=83 // pred_check
          %p677 = pneg %p251
        $region122: #{tpu_custom_call.1} parent=83 // pred_check_branch
          %679 = sbr.rel (%p677) target = $region124
        $region123: #{tpu_custom_call.1} parent=83 // pred_region
          %680 = dma.done [#allocation18], 32
        $region124: #{tpu_custom_call.1} parent=83 // pred_fallthru
          _
        // Predicated region
        $region125: #{tpu_custom_call.1} parent=83 // pred_check
          %p681 = pneg %p272
        $region126: #{tpu_custom_call.1} parent=83 // pred_check_branch
          %683 = sbr.rel (%p681) target = $region128
        $region127: #{tpu_custom_call.1} parent=83 // pred_region
          %684 = dma.done [#allocation18], 2048
        $region128: #{tpu_custom_call.1} parent=83 // pred_fallthru
          _
        // Predicated region
        $region129: #{tpu_custom_call.1} parent=83 // pred_check
          %p685 = pneg %p293
        $region130: #{tpu_custom_call.1} parent=83 // pred_check_branch
          %687 = sbr.rel (%p685) target = $region132
        $region131: #{tpu_custom_call.1} parent=83 // pred_region
          %688 = dma.done [#allocation21], 32
        $region132: #{tpu_custom_call.1} parent=83 // pred_fallthru
          _
        // Predicated region
        $region133: #{tpu_custom_call.1} parent=83 // pred_check
          %p689 = pneg %p314
        $region134: #{tpu_custom_call.1} parent=83 // pred_check_branch
          %691 = sbr.rel (%p689) target = $region136
        $region135: #{tpu_custom_call.1} parent=83 // pred_region
          %692 = dma.done [#allocation21], 16
        $region136: #{tpu_custom_call.1} parent=83 // pred_fallthru
          _
        // Predicated region
        $region137: #{tpu_custom_call.1} parent=83 // pred_check
          %p693 = pneg %p335
        $region138: #{tpu_custom_call.1} parent=83 // pred_check_branch
          %695 = sbr.rel (%p693) target = $region140
        $region139: #{tpu_custom_call.1} parent=83 // pred_region
          %696 = dma.done [#allocation24], 16
        $region140: #{tpu_custom_call.1} parent=83 // pred_fallthru
          _
        // Predicated region
        $region141: #{tpu_custom_call.1} parent=83 // pred_check
          %p697 = pneg %p356
        $region142: #{tpu_custom_call.1} parent=83 // pred_check_branch
          %699 = sbr.rel (%p697) target = $region144
        $region143: #{tpu_custom_call.1} parent=83 // pred_region
          %700 = dma.done [#allocation24], 256
        $region144: #{tpu_custom_call.1} parent=83 // pred_fallthru
          _
        // Predicated region
        $region145: #{tpu_custom_call.1} parent=83 // pred_check
          %p701 = pneg %p377
        $region146: #{tpu_custom_call.1} parent=83 // pred_check_branch
          %703 = sbr.rel (%p701) target = $region148
        $region147: #{tpu_custom_call.1} parent=83 // pred_region
          %704 = dma.done [#allocation27], 16
        $region148: #{tpu_custom_call.1} parent=83 // pred_fallthru
          _
        %s705 = sand.u32 %s49, 1
        %s706 = scalar_lea.sflag [#allocation3], %s705
        %s707 = sand.u32 %s49, 1
        %s708 = smul.addr %s707, 8
        %s709 = scalar_lea.vmem [#allocation2], %s708
        %p710 = pneg %p62
        %p711 = pneg %p59
        %p712 = pneg %p83
        %p713 = pneg %p80
        %p714 = pneg %p104
        %p715 = pneg %p101
        %p716 = pneg %p125
        %p717 = pneg %p122
        %p718 = pneg %p146
        %p719 = pneg %p143
        %p720 = pneg %p167
        %p721 = pneg %p164
        %p722 = pneg %p188
        %p723 = pneg %p185
        %p724 = pneg %p209
        %p725 = pneg %p206
        %p726 = pneg %p230
        %p727 = pneg %p227
        %p728 = pneg %p251
        %p729 = pneg %p248
        %p730 = pneg %p272
        %p731 = pneg %p269
        %p732 = pneg %p293
        %p733 = pneg %p290
        %p734 = pneg %p314
        %p735 = pneg %p311
        %p736 = pneg %p335
        %p737 = pneg %p332
        %p738 = pneg %p356
        %p739 = pneg %p353
        %p740 = pneg %p377
        %p741 = pneg %p374
        %p742 = pneg %p403
        %p743 = pneg %p400
        %s744 = sand.u32 %s390, 1
        %s745 = scalar_lea.sflag [#allocation4], %s744
        %s746 = sand.u32 %s390, 1
        %s747 = smul.addr %s746, 8
        %s748 = scalar_lea.vmem [#allocation28], %s747
        %v750 = vld [vmem:[%s640] sm:$0xff]
        %v751 = vlaneseq
        %v752 = vshrl.u32 %v751, 7
        %v753 = vlaneseq
        %v754 = vand.u32 %v753, 127
        %vm755 = vcmp.ge.s32.totalorder %v752, %v754
        %v756 = vld [vmem:[#allocation5] sm:$0x1]
        %v757 = vld [vmem:[#allocation7] sm:$0x1]
        %vm758 = vcmask 261120
        %v759 = vsel %vm758, %v750, 0.0
        %760 = vadd.xlane.f32.xlu0 %v759
        %v761 = vpop.xlane.xlu0 %760
        %v762 = vrcp.pop 32.0
        %v763 = vmul.f32 %v761, %v762
        %v764 = vsub.f32 %v750, %v763
        %v765 = vmul.f32 %v764, %v764
        %v766 = vsel %vm758, %v765, 0.0
        %767 = vadd.xlane.f32.xlu0 %v766
        %v768 = vpop.xlane.xlu0 %767
        %v769 = vmul.f32 %v768, %v762
        %v770 = vadd.f32 %v769, 1e-05
        %v771 = vrsqrt.pop %v770
        %v772 = vmul.f32 %v764, %v771
        %v774 = vlaneseq
        %v775 = vshrl.u32 %v774, 7
        %v776 = vsub.s32 0, %v775
        %v777 = vrot.slane %v756, %v776
        %v779 = vmul.f32 %v772, %v777
        %v781 = vlaneseq
        %v782 = vshrl.u32 %v781, 7
        %v783 = vsub.s32 0, %v782
        %v784 = vrot.slane %v757, %v783
        %v786 = vadd.f32 %v779, %v784
        %v787 = vpack.c.bf16 %v786, %v786
        %v788 = vld [vmem:[#allocation8] sm:$0xf]
        %v789 = vld [vmem:[#allocation8 + $0x4] sm:$0xf]
        %v790 = vld [vmem:[#allocation8 + $0x8] sm:$0xf]
        %v791 = vld [vmem:[#allocation8 + $0xc] sm:$0xf]
        %v796 = vunpack.c.l.b16 %v788
        %v797 = vunpack.c.l.b16 %v789
        %v798 = vunpack.c.l.b16 %v790
        %v799 = vunpack.c.l.b16 %v791
        %v800 = vpack.c.b16 %v797, %v796
        %v801 = vpack.c.b16 %v799, %v798
        %v805 = vsel %vm758, %v787, 0
        %807 = vmatprep.subr.bf16.mxu0 0
        %808 = vmatpush1.bf16.msra.mxu0 %v800
        %809 = vmatprep.subr.bf16.mxu0 0
        %810 = vmatpush1.bf16.msra.mxu0 %v801
        %811 = vmatprep.subr.bf16.mxu0 0
        %812 = vmatpush1.bf16.msra.mxu0 0
        %813 = vmatprep.subr.bf16.mxu0 0
        %814 = vmatpush1.bf16.msra.mxu0 0
        %815 = vmatprep.subr.bf16.mxu0 0
        %816 = vmatpush1.bf16.msra.mxu0 0
        %817 = vmatprep.subr.bf16.mxu0 0
        %818 = vmatpush1.bf16.msra.mxu0 0
        %819 = vmatprep.subr.bf16.mxu0 0
        %820 = vmatpush1.bf16.msra.mxu0 0
        %821 = vmatprep.subr.bf16.mxu0 0
        %822 = vmatpush1.bf16.msra.mxu0 0
        %823 = vmatprep.subr.bf16.mxu0 0
        %824 = vmatpush1.bf16.msra.mxu0 0
        %825 = vmatprep.subr.bf16.mxu0 0
        %826 = vmatpush1.bf16.msra.mxu0 0
        %827 = vmatprep.subr.bf16.mxu0 0
        %828 = vmatpush1.bf16.msra.mxu0 0
        %829 = vmatprep.subr.bf16.mxu0 0
        %830 = vmatpush1.bf16.msra.mxu0 0
        %831 = vmatprep.subr.bf16.mxu0 0
        %832 = vmatpush1.bf16.msra.mxu0 0
        %833 = vmatprep.subr.bf16.mxu0 0
        %834 = vmatpush1.bf16.msra.mxu0 0
        %835 = vmatprep.subr.bf16.mxu0 0
        %836 = vmatpush1.bf16.msra.mxu0 0
        %837 = vmatprep.subr.bf16.mxu0 0
        %838 = vmatpush1.bf16.msra.mxu0 0
        %839 = vmatprep.mubr.bf16.mxu0 0
        %840 = vmatmul.mubr.bf16.gmra.mrb[0].mxu0 %v805
        %v841 = vpop.f32.mrb[0].mxu0
        %v842 = vadd.f32 0.0, %v841
        %v843 = vpop.f32.mrb[0].mxu0
        %v844 = vpop.f32.mrb[0].mxu0
        %v845 = vpop.f32.mrb[0].mxu0
        %846 = vdwg.mxu0
        %848 = vrot.lane.b32.xlu0 %v842, 120
        %v849 = vpop.permute.xlu0 %848
        %850 = vrot.lane.b32.xlu0 %v842, 112
        %v851 = vpop.permute.xlu0 %850
        %852 = vrot.lane.b32.xlu0 %v842, 104
        %v853 = vpop.permute.xlu0 %852
        %854 = vrot.lane.b32.xlu0 %v842, 96
        %v855 = vpop.permute.xlu0 %854
        %856 = vrot.lane.b32.xlu0 %v849, 96
        %v857 = vpop.permute.xlu0 %856
        %858 = vrot.lane.b32.xlu0 %v851, 96
        %v859 = vpop.permute.xlu0 %858
        %860 = vrot.lane.b32.xlu0 %v853, 96
        %v861 = vpop.permute.xlu0 %860
        %866 = vxpose.xlu0.b32.start [1/16] %v855, 128
        %867 = vxpose.xlu0.b32.cont [2/16] 0.0, 128
        %868 = vxpose.xlu0.b32.cont [3/16] 0.0, 128
        %869 = vxpose.xlu0.b32.cont [4/16] 0.0, 128
        %870 = vxpose.xlu0.b32.cont [5/16] 0.0, 128
        %871 = vxpose.xlu0.b32.cont [6/16] 0.0, 128
        %872 = vxpose.xlu0.b32.cont [7/16] 0.0, 128
        %873 = vxpose.xlu0.b32.cont [8/16] 0.0, 128
        %874 = vxpose.xlu0.b32.cont [9/16] 0.0, 128
        %875 = vxpose.xlu0.b32.cont [10/16] 0.0, 128
        %876 = vxpose.xlu0.b32.cont [11/16] 0.0, 128
        %877 = vxpose.xlu0.b32.cont [12/16] 0.0, 128
        %878 = vxpose.xlu0.b32.cont [13/16] 0.0, 128
        %879 = vxpose.xlu0.b32.cont [14/16] 0.0, 128
        %880 = vxpose.xlu0.b32.cont [15/16] 0.0, 128
        %881 = vxpose.xlu0.b32.end [16/16] 0.0, 128
        %v882 = vpop.trf.xlu0
        %v883 = vpop.trf.xlu0
        %v884 = vpop.trf.xlu0
        %v885 = vpop.trf.xlu0
        %v886 = vpop.trf.xlu0
        %v887 = vpop.trf.xlu0
        %v888 = vpop.trf.xlu0
        %v889 = vpop.trf.xlu0
        %v890 = vpop.trf.xlu0
        %v891 = vpop.trf.xlu0
        %v892 = vpop.trf.xlu0
        %v893 = vpop.trf.xlu0
        %v894 = vpop.trf.xlu0
        %v895 = vpop.trf.xlu0
        %v896 = vpop.trf.xlu0
        %v897 = vpop.trf.xlu0
        %898 = vxpose.xlu0.b32.start [1/16] %v857, 128
        %899 = vxpose.xlu0.b32.cont [2/16] 0.0, 128
        %900 = vxpose.xlu0.b32.cont [3/16] 0.0, 128
        %901 = vxpose.xlu0.b32.cont [4/16] 0.0, 128
        %902 = vxpose.xlu0.b32.cont [5/16] 0.0, 128
        %903 = vxpose.xlu0.b32.cont [6/16] 0.0, 128
        %904 = vxpose.xlu0.b32.cont [7/16] 0.0, 128
        %905 = vxpose.xlu0.b32.cont [8/16] 0.0, 128
        %906 = vxpose.xlu0.b32.cont [9/16] 0.0, 128
        %907 = vxpose.xlu0.b32.cont [10/16] 0.0, 128
        %908 = vxpose.xlu0.b32.cont [11/16] 0.0, 128
        %909 = vxpose.xlu0.b32.cont [12/16] 0.0, 128
        %910 = vxpose.xlu0.b32.cont [13/16] 0.0, 128
        %911 = vxpose.xlu0.b32.cont [14/16] 0.0, 128
        %912 = vxpose.xlu0.b32.cont [15/16] 0.0, 128
        %913 = vxpose.xlu0.b32.end [16/16] 0.0, 128
        %v914 = vpop.trf.xlu0
        %v915 = vpop.trf.xlu0
        %v916 = vpop.trf.xlu0
        %v917 = vpop.trf.xlu0
        %v918 = vpop.trf.xlu0
        %v919 = vpop.trf.xlu0
        %v920 = vpop.trf.xlu0
        %v921 = vpop.trf.xlu0
        %v922 = vpop.trf.xlu0
        %v923 = vpop.trf.xlu0
        %v924 = vpop.trf.xlu0
        %v925 = vpop.trf.xlu0
        %v926 = vpop.trf.xlu0
        %v927 = vpop.trf.xlu0
        %v928 = vpop.trf.xlu0
        %v929 = vpop.trf.xlu0
        %930 = vxpose.xlu0.b32.start [1/16] %v859, 128
        %931 = vxpose.xlu0.b32.cont [2/16] 0.0, 128
        %932 = vxpose.xlu0.b32.cont [3/16] 0.0, 128
        %933 = vxpose.xlu0.b32.cont [4/16] 0.0, 128
        %934 = vxpose.xlu0.b32.cont [5/16] 0.0, 128
        %935 = vxpose.xlu0.b32.cont [6/16] 0.0, 128
        %936 = vxpose.xlu0.b32.cont [7/16] 0.0, 128
        %937 = vxpose.xlu0.b32.cont [8/16] 0.0, 128
        %938 = vxpose.xlu0.b32.cont [9/16] 0.0, 128
        %939 = vxpose.xlu0.b32.cont [10/16] 0.0, 128
        %940 = vxpose.xlu0.b32.cont [11/16] 0.0, 128
        %941 = vxpose.xlu0.b32.cont [12/16] 0.0, 128
        %942 = vxpose.xlu0.b32.cont [13/16] 0.0, 128
        %943 = vxpose.xlu0.b32.cont [14/16] 0.0, 128
        %944 = vxpose.xlu0.b32.cont [15/16] 0.0, 128
        %945 = vxpose.xlu0.b32.end [16/16] 0.0, 128
        %v946 = vpop.trf.xlu0
        %v947 = vpop.trf.xlu0
        %v948 = vpop.trf.xlu0
        %v949 = vpop.trf.xlu0
        %v950 = vpop.trf.xlu0
        %v951 = vpop.trf.xlu0
        %v952 = vpop.trf.xlu0
        %v953 = vpop.trf.xlu0
        %v954 = vpop.trf.xlu0
        %v955 = vpop.trf.xlu0
        %v956 = vpop.trf.xlu0
        %v957 = vpop.trf.xlu0
        %v958 = vpop.trf.xlu0
        %v959 = vpop.trf.xlu0
        %v960 = vpop.trf.xlu0
        %v961 = vpop.trf.xlu0
        %962 = vxpose.xlu0.b32.start [1/16] %v861, 128
        %963 = vxpose.xlu0.b32.cont [2/16] 0.0, 128
        %964 = vxpose.xlu0.b32.cont [3/16] 0.0, 128
        %965 = vxpose.xlu0.b32.cont [4/16] 0.0, 128
        %966 = vxpose.xlu0.b32.cont [5/16] 0.0, 128
        %967 = vxpose.xlu0.b32.cont [6/16] 0.0, 128
        %968 = vxpose.xlu0.b32.cont [7/16] 0.0, 128
        %969 = vxpose.xlu0.b32.cont [8/16] 0.0, 128
        %970 = vxpose.xlu0.b32.cont [9/16] 0.0, 128
        %971 = vxpose.xlu0.b32.cont [10/16] 0.0, 128
        %972 = vxpose.xlu0.b32.cont [11/16] 0.0, 128
        %973 = vxpose.xlu0.b32.cont [12/16] 0.0, 128
        %974 = vxpose.xlu0.b32.cont [13/16] 0.0, 128
        %975 = vxpose.xlu0.b32.cont [14/16] 0.0, 128
        %976 = vxpose.xlu0.b32.cont [15/16] 0.0, 128
        %977 = vxpose.xlu0.b32.end [16/16] 0.0, 128
        %v978 = vpop.trf.xlu0
        %v979 = vpop.trf.xlu0
        %v980 = vpop.trf.xlu0
        %v981 = vpop.trf.xlu0
        %v982 = vpop.trf.xlu0
        %v983 = vpop.trf.xlu0
        %v984 = vpop.trf.xlu0
        %v985 = vpop.trf.xlu0
        %v986 = vpop.trf.xlu0
        %v987 = vpop.trf.xlu0
        %v988 = vpop.trf.xlu0
        %v989 = vpop.trf.xlu0
        %v990 = vpop.trf.xlu0
        %v991 = vpop.trf.xlu0
        %v992 = vpop.trf.xlu0
        %v993 = vpop.trf.xlu0
        %vm994 = vcmask 64512
        %v995 = vsel %vm994, %v842, 0
        %997 = vmatprep.subr.mxu0 0.0
        %998 = vmatpush1.msra.mxu0 %v882
        %999 = vmatprep.subr.mxu0 0.0
        %1000 = vmatpush1.msra.mxu0 0.0
        %1001 = vmatprep.subr.mxu0 0.0
        %1002 = vmatpush1.msra.mxu0 0.0
        %1003 = vmatprep.subr.mxu0 0.0
        %1004 = vmatpush1.msra.mxu0 0.0
        %1005 = vmatprep.subr.mxu0 0.0
        %1006 = vmatpush1.msra.mxu0 0.0
        %1007 = vmatprep.subr.mxu0 0.0
        %1008 = vmatpush1.msra.mxu0 0.0
        %1009 = vmatprep.subr.mxu0 0.0
        %1010 = vmatpush1.msra.mxu0 0.0
        %1011 = vmatprep.subr.mxu0 0.0
        %1012 = vmatpush1.msra.mxu0 0.0
        %1013 = vmatprep.subr.mxu0 0.0
        %1014 = vmatpush1.msra.mxu0 0.0
        %1015 = vmatprep.subr.mxu0 0.0
        %1016 = vmatpush1.msra.mxu0 0.0
        %1017 = vmatprep.subr.mxu0 0.0
        %1018 = vmatpush1.msra.mxu0 0.0
        %1019 = vmatprep.subr.mxu0 0.0
        %1020 = vmatpush1.msra.mxu0 0.0
        %1021 = vmatprep.subr.mxu0 0.0
        %1022 = vmatpush1.msra.mxu0 0.0
        %1023 = vmatprep.subr.mxu0 0.0
        %1024 = vmatpush1.msra.mxu0 0.0
        %1025 = vmatprep.subr.mxu0 0.0
        %1026 = vmatpush1.msra.mxu0 0.0
        %1027 = vmatprep.subr.mxu0 0.0
        %1028 = vmatpush1.msra.mxu0 0.0
        %1029 = vmatprep.subr.mxu0 0.0
        %1030 = vmatpush1.msra.mxu0 0.0
        %1031 = vmatprep.subr.mxu0 0.0
        %1032 = vmatpush1.msra.mxu0 0.0
        %1033 = vmatprep.subr.mxu0 0.0
        %1034 = vmatpush1.msra.mxu0 0.0
        %1035 = vmatprep.subr.mxu0 0.0
        %1036 = vmatpush1.msra.mxu0 0.0
        %1037 = vmatprep.subr.mxu0 0.0
        %1038 = vmatpush1.msra.mxu0 0.0
        %1039 = vmatprep.subr.mxu0 0.0
        %1040 = vmatpush1.msra.mxu0 0.0
        %1041 = vmatprep.subr.mxu0 0.0
        %1042 = vmatpush1.msra.mxu0 0.0
        %1043 = vmatprep.subr.mxu0 0.0
        %1044 = vmatpush1.msra.mxu0 0.0
        %1045 = vmatprep.subr.mxu0 0.0
        %1046 = vmatpush1.msra.mxu0 0.0
        %1047 = vmatprep.subr.mxu0 0.0
        %1048 = vmatpush1.msra.mxu0 0.0
        %1049 = vmatprep.subr.mxu0 0.0
        %1050 = vmatpush1.msra.mxu0 0.0
        %1051 = vmatprep.subr.mxu0 0.0
        %1052 = vmatpush1.msra.mxu0 0.0
        %1053 = vmatprep.subr.mxu0 0.0
        %1054 = vmatpush1.msra.mxu0 0.0
        %1055 = vmatprep.subr.mxu0 0.0
        %1056 = vmatpush1.msra.mxu0 0.0
        %1057 = vmatprep.subr.mxu0 0.0
        %1058 = vmatpush1.msra.mxu0 0.0
        %1059 = vmatprep.subr.mxu0 0.0
        %1060 = vmatpush1.msra.mxu0 0.0
        %1061 = vmatprep.mubr.f32.mxu0 0.0
        %1062 = vmatmul.mubr.f32.gmra.mrb[0].mxu0 %v995
        %v1063 = vpop.f32.mrb[0].mxu0
        %v1064 = vadd.f32 0.0, %v1063
        %v1065 = vpop.f32.mrb[0].mxu0
        %1066 = vdwg.mxu0
        %v1067 = vsel %vm994, %v849, 0
        %1069 = vmatprep.subr.mxu0 0.0
        %1070 = vmatpush1.msra.mxu0 %v914
        %1071 = vmatprep.subr.mxu0 0.0
        %1072 = vmatpush1.msra.mxu0 0.0
        %1073 = vmatprep.subr.mxu0 0.0
        %1074 = vmatpush1.msra.mxu0 0.0
        %1075 = vmatprep.subr.mxu0 0.0
        %1076 = vmatpush1.msra.mxu0 0.0
        %1077 = vmatprep.subr.mxu0 0.0
        %1078 = vmatpush1.msra.mxu0 0.0
        %1079 = vmatprep.subr.mxu0 0.0
        %1080 = vmatpush1.msra.mxu0 0.0
        %1081 = vmatprep.subr.mxu0 0.0
        %1082 = vmatpush1.msra.mxu0 0.0
        %1083 = vmatprep.subr.mxu0 0.0
        %1084 = vmatpush1.msra.mxu0 0.0
        %1085 = vmatprep.subr.mxu0 0.0
        %1086 = vmatpush1.msra.mxu0 0.0
        %1087 = vmatprep.subr.mxu0 0.0
        %1088 = vmatpush1.msra.mxu0 0.0
        %1089 = vmatprep.subr.mxu0 0.0
        %1090 = vmatpush1.msra.mxu0 0.0
        %1091 = vmatprep.subr.mxu0 0.0
        %1092 = vmatpush1.msra.mxu0 0.0
        %1093 = vmatprep.subr.mxu0 0.0
        %1094 = vmatpush1.msra.mxu0 0.0
        %1095 = vmatprep.subr.mxu0 0.0
        %1096 = vmatpush1.msra.mxu0 0.0
        %1097 = vmatprep.subr.mxu0 0.0
        %1098 = vmatpush1.msra.mxu0 0.0
        %1099 = vmatprep.subr.mxu0 0.0
        %1100 = vmatpush1.msra.mxu0 0.0
        %1101 = vmatprep.subr.mxu0 0.0
        %1102 = vmatpush1.msra.mxu0 0.0
        %1103 = vmatprep.subr.mxu0 0.0
        %1104 = vmatpush1.msra.mxu0 0.0
        %1105 = vmatprep.subr.mxu0 0.0
        %1106 = vmatpush1.msra.mxu0 0.0
        %1107 = vmatprep.subr.mxu0 0.0
        %1108 = vmatpush1.msra.mxu0 0.0
        %1109 = vmatprep.subr.mxu0 0.0
        %1110 = vmatpush1.msra.mxu0 0.0
        %1111 = vmatprep.subr.mxu0 0.0
        %1112 = vmatpush1.msra.mxu0 0.0
        %1113 = vmatprep.subr.mxu0 0.0
        %1114 = vmatpush1.msra.mxu0 0.0
        %1115 = vmatprep.subr.mxu0 0.0
        %1116 = vmatpush1.msra.mxu0 0.0
        %1117 = vmatprep.subr.mxu0 0.0
        %1118 = vmatpush1.msra.mxu0 0.0
        %1119 = vmatprep.subr.mxu0 0.0
        %1120 = vmatpush1.msra.mxu0 0.0
        %1121 = vmatprep.subr.mxu0 0.0
        %1122 = vmatpush1.msra.mxu0 0.0
        %1123 = vmatprep.subr.mxu0 0.0
        %1124 = vmatpush1.msra.mxu0 0.0
        %1125 = vmatprep.subr.mxu0 0.0
        %1126 = vmatpush1.msra.mxu0 0.0
        %1127 = vmatprep.subr.mxu0 0.0
        %1128 = vmatpush1.msra.mxu0 0.0
        %1129 = vmatprep.subr.mxu0 0.0
        %1130 = vmatpush1.msra.mxu0 0.0
        %1131 = vmatprep.subr.mxu0 0.0
        %1132 = vmatpush1.msra.mxu0 0.0
        %1133 = vmatprep.mubr.f32.mxu0 0.0
        %1134 = vmatmul.mubr.f32.gmra.mrb[0].mxu0 %v1067
        %v1135 = vpop.f32.mrb[0].mxu0
        %v1136 = vadd.f32 0.0, %v1135
        %v1137 = vpop.f32.mrb[0].mxu0
        %1138 = vdwg.mxu0
        %v1139 = vsel %vm994, %v851, 0
        %1141 = vmatprep.subr.mxu0 0.0
        %1142 = vmatpush1.msra.mxu0 %v946
        %1143 = vmatprep.subr.mxu0 0.0
        %1144 = vmatpush1.msra.mxu0 0.0
        %1145 = vmatprep.subr.mxu0 0.0
        %1146 = vmatpush1.msra.mxu0 0.0
        %1147 = vmatprep.subr.mxu0 0.0
        %1148 = vmatpush1.msra.mxu0 0.0
        %1149 = vmatprep.subr.mxu0 0.0
        %1150 = vmatpush1.msra.mxu0 0.0
        %1151 = vmatprep.subr.mxu0 0.0
        %1152 = vmatpush1.msra.mxu0 0.0
        %1153 = vmatprep.subr.mxu0 0.0
        %1154 = vmatpush1.msra.mxu0 0.0
        %1155 = vmatprep.subr.mxu0 0.0
        %1156 = vmatpush1.msra.mxu0 0.0
        %1157 = vmatprep.subr.mxu0 0.0
        %1158 = vmatpush1.msra.mxu0 0.0
        %1159 = vmatprep.subr.mxu0 0.0
        %1160 = vmatpush1.msra.mxu0 0.0
        %1161 = vmatprep.subr.mxu0 0.0
        %1162 = vmatpush1.msra.mxu0 0.0
        %1163 = vmatprep.subr.mxu0 0.0
        %1164 = vmatpush1.msra.mxu0 0.0
        %1165 = vmatprep.subr.mxu0 0.0
        %1166 = vmatpush1.msra.mxu0 0.0
        %1167 = vmatprep.subr.mxu0 0.0
        %1168 = vmatpush1.msra.mxu0 0.0
        %1169 = vmatprep.subr.mxu0 0.0
        %1170 = vmatpush1.msra.mxu0 0.0
        %1171 = vmatprep.subr.mxu0 0.0
        %1172 = vmatpush1.msra.mxu0 0.0
        %1173 = vmatprep.subr.mxu0 0.0
        %1174 = vmatpush1.msra.mxu0 0.0
        %1175 = vmatprep.subr.mxu0 0.0
        %1176 = vmatpush1.msra.mxu0 0.0
        %1177 = vmatprep.subr.mxu0 0.0
        %1178 = vmatpush1.msra.mxu0 0.0
        %1179 = vmatprep.subr.mxu0 0.0
        %1180 = vmatpush1.msra.mxu0 0.0
        %1181 = vmatprep.subr.mxu0 0.0
        %1182 = vmatpush1.msra.mxu0 0.0
        %1183 = vmatprep.subr.mxu0 0.0
        %1184 = vmatpush1.msra.mxu0 0.0
        %1185 = vmatprep.subr.mxu0 0.0
        %1186 = vmatpush1.msra.mxu0 0.0
        %1187 = vmatprep.subr.mxu0 0.0
        %1188 = vmatpush1.msra.mxu0 0.0
        %1189 = vmatprep.subr.mxu0 0.0
        %1190 = vmatpush1.msra.mxu0 0.0
        %1191 = vmatprep.subr.mxu0 0.0
        %1192 = vmatpush1.msra.mxu0 0.0
        %1193 = vmatprep.subr.mxu0 0.0
        %1194 = vmatpush1.msra.mxu0 0.0
        %1195 = vmatprep.subr.mxu0 0.0
        %1196 = vmatpush1.msra.mxu0 0.0
        %1197 = vmatprep.subr.mxu0 0.0
        %1198 = vmatpush1.msra.mxu0 0.0
        %1199 = vmatprep.subr.mxu0 0.0
        %1200 = vmatpush1.msra.mxu0 0.0
        %1201 = vmatprep.subr.mxu0 0.0
        %1202 = vmatpush1.msra.mxu0 0.0
        %1203 = vmatprep.subr.mxu0 0.0
        %1204 = vmatpush1.msra.mxu0 0.0
        %1205 = vmatprep.mubr.f32.mxu0 0.0
        %1206 = vmatmul.mubr.f32.gmra.mrb[0].mxu0 %v1139
        %v1207 = vpop.f32.mrb[0].mxu0
        %v1208 = vadd.f32 0.0, %v1207
        %v1209 = vpop.f32.mrb[0].mxu0
        %1210 = vdwg.mxu0
        %v1211 = vsel %vm994, %v853, 0
        %1213 = vmatprep.subr.mxu0 0.0
        %1214 = vmatpush1.msra.mxu0 %v978
        %1215 = vmatprep.subr.mxu0 0.0
        %1216 = vmatpush1.msra.mxu0 0.0
        %1217 = vmatprep.subr.mxu0 0.0
        %1218 = vmatpush1.msra.mxu0 0.0
        %1219 = vmatprep.subr.mxu0 0.0
        %1220 = vmatpush1.msra.mxu0 0.0
        %1221 = vmatprep.subr.mxu0 0.0
        %1222 = vmatpush1.msra.mxu0 0.0
        %1223 = vmatprep.subr.mxu0 0.0
        %1224 = vmatpush1.msra.mxu0 0.0
        %1225 = vmatprep.subr.mxu0 0.0
        %1226 = vmatpush1.msra.mxu0 0.0
        %1227 = vmatprep.subr.mxu0 0.0
        %1228 = vmatpush1.msra.mxu0 0.0
        %1229 = vmatprep.subr.mxu0 0.0
        %1230 = vmatpush1.msra.mxu0 0.0
        %1231 = vmatprep.subr.mxu0 0.0
        %1232 = vmatpush1.msra.mxu0 0.0
        %1233 = vmatprep.subr.mxu0 0.0
        %1234 = vmatpush1.msra.mxu0 0.0
        %1235 = vmatprep.subr.mxu0 0.0
        %1236 = vmatpush1.msra.mxu0 0.0
        %1237 = vmatprep.subr.mxu0 0.0
        %1238 = vmatpush1.msra.mxu0 0.0
        %1239 = vmatprep.subr.mxu0 0.0
        %1240 = vmatpush1.msra.mxu0 0.0
        %1241 = vmatprep.subr.mxu0 0.0
        %1242 = vmatpush1.msra.mxu0 0.0
        %1243 = vmatprep.subr.mxu0 0.0
        %1244 = vmatpush1.msra.mxu0 0.0
        %1245 = vmatprep.subr.mxu0 0.0
        %1246 = vmatpush1.msra.mxu0 0.0
        %1247 = vmatprep.subr.mxu0 0.0
        %1248 = vmatpush1.msra.mxu0 0.0
        %1249 = vmatprep.subr.mxu0 0.0
        %1250 = vmatpush1.msra.mxu0 0.0
        %1251 = vmatprep.subr.mxu0 0.0
        %1252 = vmatpush1.msra.mxu0 0.0
        %1253 = vmatprep.subr.mxu0 0.0
        %1254 = vmatpush1.msra.mxu0 0.0
        %1255 = vmatprep.subr.mxu0 0.0
        %1256 = vmatpush1.msra.mxu0 0.0
        %1257 = vmatprep.subr.mxu0 0.0
        %1258 = vmatpush1.msra.mxu0 0.0
        %1259 = vmatprep.subr.mxu0 0.0
        %1260 = vmatpush1.msra.mxu0 0.0
        %1261 = vmatprep.subr.mxu0 0.0
        %1262 = vmatpush1.msra.mxu0 0.0
        %1263 = vmatprep.subr.mxu0 0.0
        %1264 = vmatpush1.msra.mxu0 0.0
        %1265 = vmatprep.subr.mxu0 0.0
        %1266 = vmatpush1.msra.mxu0 0.0
        %1267 = vmatprep.subr.mxu0 0.0
        %1268 = vmatpush1.msra.mxu0 0.0
        %1269 = vmatprep.subr.mxu0 0.0
        %1270 = vmatpush1.msra.mxu0 0.0
        %1271 = vmatprep.subr.mxu0 0.0
        %1272 = vmatpush1.msra.mxu0 0.0
        %1273 = vmatprep.subr.mxu0 0.0
        %1274 = vmatpush1.msra.mxu0 0.0
        %1275 = vmatprep.subr.mxu0 0.0
        %1276 = vmatpush1.msra.mxu0 0.0
        %1277 = vmatprep.mubr.f32.mxu0 0.0
        %1278 = vmatmul.mubr.f32.gmra.mrb[0].mxu0 %v1211
        %v1279 = vpop.f32.mrb[0].mxu0
        %v1280 = vadd.f32 0.0, %v1279
        %v1281 = vpop.f32.mrb[0].mxu0
        %1282 = vdwg.mxu0
        %v1283 = vmul.f32 %v1064, 0.35355338
        %v1284 = vmul.f32 %v1136, 0.35355338
        %v1285 = vmul.f32 %v1208, 0.35355338
        %v1286 = vmul.f32 %v1280, 0.35355338
        %v1287 = vsel %vm755, 1, 0
        %vm1288 = vcmp.eq.s32.totalorder %v1287, 1
        %v1289 = vsel %vm1288, %v1283, -inf
        %v1290 = vsel %vm1288, %v1284, -inf
        %v1291 = vsel %vm1288, %v1285, -inf
        %v1292 = vsel %vm1288, %v1286, -inf
        %v1293 = vsel %vm994, %v1289, -inf
        %1294 = vmax.xlane.f32.xlu0 %v1293
        %v1295 = vpop.xlane.xlu0 %1294
        %v1296 = vsel %vm994, %v1290, -inf
        %1297 = vmax.xlane.f32.xlu0 %v1296
        %v1298 = vpop.xlane.xlu0 %1297
        %v1299 = vsel %vm994, %v1291, -inf
        %1300 = vmax.xlane.f32.xlu0 %v1299
        %v1301 = vpop.xlane.xlu0 %1300
        %v1302 = vsel %vm994, %v1292, -inf
        %1303 = vmax.xlane.f32.xlu0 %v1302
        %v1304 = vpop.xlane.xlu0 %1303
        %v1305 = vsub.f32 %v1289, %v1295
        %v1306 = vsub.f32 %v1290, %v1298
        %v1307 = vsub.f32 %v1291, %v1301
        %v1308 = vsub.f32 %v1292, %v1304
        %v1309 = vmul.f32 %v1305, 1.442695
        %v1310 = vpow.pop %v1309
        %v1311 = vmul.f32 %v1306, 1.442695
        %v1312 = vpow.pop %v1311
        %v1313 = vmul.f32 %v1307, 1.442695
        %v1314 = vpow.pop %v1313
        %v1315 = vmul.f32 %v1308, 1.442695
        %v1316 = vpow.pop %v1315
        %v1317 = vsel %vm994, %v1310, 0.0
        %1318 = vadd.xlane.f32.xlu0 %v1317
        %v1319 = vpop.xlane.xlu0 %1318
        %v1320 = vsel %vm994, %v1312, 0.0
        %1321 = vadd.xlane.f32.xlu0 %v1320
        %v1322 = vpop.xlane.xlu0 %1321
        %v1323 = vsel %vm994, %v1314, 0.0
        %1324 = vadd.xlane.f32.xlu0 %v1323
        %v1325 = vpop.xlane.xlu0 %1324
        %v1326 = vsel %vm994, %v1316, 0.0
        %1327 = vadd.xlane.f32.xlu0 %v1326
        %v1328 = vpop.xlane.xlu0 %1327
        %v1329 = vrcp.pop %v1319
        %v1330 = vmul.f32 %v1310, %v1329
        %v1331 = vrcp.pop %v1322
        %v1332 = vmul.f32 %v1312, %v1331
        %v1333 = vrcp.pop %v1325
        %v1334 = vmul.f32 %v1314, %v1333
        %v1335 = vrcp.pop %v1328
        %v1336 = vmul.f32 %v1316, %v1335
        %1337 = vrot.lane.b32.xlu0 %v842, 64
        %v1338 = vpop.permute.xlu0 %1337
        %1339 = vrot.lane.b32.xlu0 %v849, 64
        %v1340 = vpop.permute.xlu0 %1339
        %1341 = vrot.lane.b32.xlu0 %v851, 64
        %v1342 = vpop.permute.xlu0 %1341
        %1343 = vrot.lane.b32.xlu0 %v853, 64
        %v1344 = vpop.permute.xlu0 %1343
        %1349 = vxpose.xlu0.b32.start [1/16] %v1338, 128
        %1350 = vxpose.xlu0.b32.cont [2/16] 0.0, 128
        %1351 = vxpose.xlu0.b32.cont [3/16] 0.0, 128
        %1352 = vxpose.xlu0.b32.cont [4/16] 0.0, 128
        %1353 = vxpose.xlu0.b32.cont [5/16] 0.0, 128
        %1354 = vxpose.xlu0.b32.cont [6/16] 0.0, 128
        %1355 = vxpose.xlu0.b32.cont [7/16] 0.0, 128
        %1356 = vxpose.xlu0.b32.cont [8/16] 0.0, 128
        %1357 = vxpose.xlu0.b32.cont [9/16] 0.0, 128
        %1358 = vxpose.xlu0.b32.cont [10/16] 0.0, 128
        %1359 = vxpose.xlu0.b32.cont [11/16] 0.0, 128
        %1360 = vxpose.xlu0.b32.cont [12/16] 0.0, 128
        %1361 = vxpose.xlu0.b32.cont [13/16] 0.0, 128
        %1362 = vxpose.xlu0.b32.cont [14/16] 0.0, 128
        %1363 = vxpose.xlu0.b32.cont [15/16] 0.0, 128
        %1364 = vxpose.xlu0.b32.end [16/16] 0.0, 128
        %v1365 = vpop.trf.xlu0
        %v1366 = vpop.trf.xlu0
        %v1367 = vpop.trf.xlu0
        %v1368 = vpop.trf.xlu0
        %v1369 = vpop.trf.xlu0
        %v1370 = vpop.trf.xlu0
        %v1371 = vpop.trf.xlu0
        %v1372 = vpop.trf.xlu0
        %v1373 = vpop.trf.xlu0
        %v1374 = vpop.trf.xlu0
        %v1375 = vpop.trf.xlu0
        %v1376 = vpop.trf.xlu0
        %v1377 = vpop.trf.xlu0
        %v1378 = vpop.trf.xlu0
        %v1379 = vpop.trf.xlu0
        %v1380 = vpop.trf.xlu0
        %1381 = vxpose.xlu0.b32.start [1/16] %v1340, 128
        %1382 = vxpose.xlu0.b32.cont [2/16] 0.0, 128
        %1383 = vxpose.xlu0.b32.cont [3/16] 0.0, 128
        %1384 = vxpose.xlu0.b32.cont [4/16] 0.0, 128
        %1385 = vxpose.xlu0.b32.cont [5/16] 0.0, 128
        %1386 = vxpose.xlu0.b32.cont [6/16] 0.0, 128
        %1387 = vxpose.xlu0.b32.cont [7/16] 0.0, 128
        %1388 = vxpose.xlu0.b32.cont [8/16] 0.0, 128
        %1389 = vxpose.xlu0.b32.cont [9/16] 0.0, 128
        %1390 = vxpose.xlu0.b32.cont [10/16] 0.0, 128
        %1391 = vxpose.xlu0.b32.cont [11/16] 0.0, 128
        %1392 = vxpose.xlu0.b32.cont [12/16] 0.0, 128
        %1393 = vxpose.xlu0.b32.cont [13/16] 0.0, 128
        %1394 = vxpose.xlu0.b32.cont [14/16] 0.0, 128
        %1395 = vxpose.xlu0.b32.cont [15/16] 0.0, 128
        %1396 = vxpose.xlu0.b32.end [16/16] 0.0, 128
        %v1397 = vpop.trf.xlu0
        %v1398 = vpop.trf.xlu0
        %v1399 = vpop.trf.xlu0
        %v1400 = vpop.trf.xlu0
        %v1401 = vpop.trf.xlu0
        %v1402 = vpop.trf.xlu0
        %v1403 = vpop.trf.xlu0
        %v1404 = vpop.trf.xlu0
        %v1405 = vpop.trf.xlu0
        %v1406 = vpop.trf.xlu0
        %v1407 = vpop.trf.xlu0
        %v1408 = vpop.trf.xlu0
        %v1409 = vpop.trf.xlu0
        %v1410 = vpop.trf.xlu0
        %v1411 = vpop.trf.xlu0
        %v1412 = vpop.trf.xlu0
        %1413 = vxpose.xlu0.b32.start [1/16] %v1342, 128
        %1414 = vxpose.xlu0.b32.cont [2/16] 0.0, 128
        %1415 = vxpose.xlu0.b32.cont [3/16] 0.0, 128
        %1416 = vxpose.xlu0.b32.cont [4/16] 0.0, 128
        %1417 = vxpose.xlu0.b32.cont [5/16] 0.0, 128
        %1418 = vxpose.xlu0.b32.cont [6/16] 0.0, 128
        %1419 = vxpose.xlu0.b32.cont [7/16] 0.0, 128
        %1420 = vxpose.xlu0.b32.cont [8/16] 0.0, 128
        %1421 = vxpose.xlu0.b32.cont [9/16] 0.0, 128
        %1422 = vxpose.xlu0.b32.cont [10/16] 0.0, 128
        %1423 = vxpose.xlu0.b32.cont [11/16] 0.0, 128
        %1424 = vxpose.xlu0.b32.cont [12/16] 0.0, 128
        %1425 = vxpose.xlu0.b32.cont [13/16] 0.0, 128
        %1426 = vxpose.xlu0.b32.cont [14/16] 0.0, 128
        %1427 = vxpose.xlu0.b32.cont [15/16] 0.0, 128
        %1428 = vxpose.xlu0.b32.end [16/16] 0.0, 128
        %v1429 = vpop.trf.xlu0
        %v1430 = vpop.trf.xlu0
        %v1431 = vpop.trf.xlu0
        %v1432 = vpop.trf.xlu0
        %v1433 = vpop.trf.xlu0
        %v1434 = vpop.trf.xlu0
        %v1435 = vpop.trf.xlu0
        %v1436 = vpop.trf.xlu0
        %v1437 = vpop.trf.xlu0
        %v1438 = vpop.trf.xlu0
        %v1439 = vpop.trf.xlu0
        %v1440 = vpop.trf.xlu0
        %v1441 = vpop.trf.xlu0
        %v1442 = vpop.trf.xlu0
        %v1443 = vpop.trf.xlu0
        %v1444 = vpop.trf.xlu0
        %1445 = vxpose.xlu0.b32.start [1/16] %v1344, 128
        %1446 = vxpose.xlu0.b32.cont [2/16] 0.0, 128
        %1447 = vxpose.xlu0.b32.cont [3/16] 0.0, 128
        %1448 = vxpose.xlu0.b32.cont [4/16] 0.0, 128
        %1449 = vxpose.xlu0.b32.cont [5/16] 0.0, 128
        %1450 = vxpose.xlu0.b32.cont [6/16] 0.0, 128
        %1451 = vxpose.xlu0.b32.cont [7/16] 0.0, 128
        %1452 = vxpose.xlu0.b32.cont [8/16] 0.0, 128
        %1453 = vxpose.xlu0.b32.cont [9/16] 0.0, 128
        %1454 = vxpose.xlu0.b32.cont [10/16] 0.0, 128
        %1455 = vxpose.xlu0.b32.cont [11/16] 0.0, 128
        %1456 = vxpose.xlu0.b32.cont [12/16] 0.0, 128
        %1457 = vxpose.xlu0.b32.cont [13/16] 0.0, 128
        %1458 = vxpose.xlu0.b32.cont [14/16] 0.0, 128
        %1459 = vxpose.xlu0.b32.cont [15/16] 0.0, 128
        %1460 = vxpose.xlu0.b32.end [16/16] 0.0, 128
        %v1461 = vpop.trf.xlu0
        %v1462 = vpop.trf.xlu0
        %v1463 = vpop.trf.xlu0
        %v1464 = vpop.trf.xlu0
        %v1465 = vpop.trf.xlu0
        %v1466 = vpop.trf.xlu0
        %v1467 = vpop.trf.xlu0
        %v1468 = vpop.trf.xlu0
        %v1469 = vpop.trf.xlu0
        %v1470 = vpop.trf.xlu0
        %v1471 = vpop.trf.xlu0
        %v1472 = vpop.trf.xlu0
        %v1473 = vpop.trf.xlu0
        %v1474 = vpop.trf.xlu0
        %v1475 = vpop.trf.xlu0
        %v1476 = vpop.trf.xlu0
        %v1478 = vsel %vm994, %v1365, 0
        %v1481 = vsel %vm994, %v1330, 0
        %1483 = vmatprep.subr.mxu0 0.0
        %1484 = vmatpush1.xpose.msra.mxu0 %v1481
        %1485 = vmatprep.subr.mxu0 0.0
        %1486 = vmatpush1.xpose.msra.mxu0 0.0
        %1487 = vmatprep.subr.mxu0 0.0
        %1488 = vmatpush1.xpose.msra.mxu0 0.0
        %1489 = vmatprep.subr.mxu0 0.0
        %1490 = vmatpush1.xpose.msra.mxu0 0.0
        %1491 = vmatprep.subr.mxu0 0.0
        %1492 = vmatpush1.xpose.msra.mxu0 0.0
        %1493 = vmatprep.subr.mxu0 0.0
        %1494 = vmatpush1.xpose.msra.mxu0 0.0
        %1495 = vmatprep.subr.mxu0 0.0
        %1496 = vmatpush1.xpose.msra.mxu0 0.0
        %1497 = vmatprep.subr.mxu0 0.0
        %1498 = vmatpush1.xpose.msra.mxu0 0.0
        %1499 = vmatprep.subr.mxu0 0.0
        %1500 = vmatpush1.xpose.msra.mxu0 0.0
        %1501 = vmatprep.subr.mxu0 0.0
        %1502 = vmatpush1.xpose.msra.mxu0 0.0
        %1503 = vmatprep.subr.mxu0 0.0
        %1504 = vmatpush1.xpose.msra.mxu0 0.0
        %1505 = vmatprep.subr.mxu0 0.0
        %1506 = vmatpush1.xpose.msra.mxu0 0.0
        %1507 = vmatprep.subr.mxu0 0.0
        %1508 = vmatpush1.xpose.msra.mxu0 0.0
        %1509 = vmatprep.subr.mxu0 0.0
        %1510 = vmatpush1.xpose.msra.mxu0 0.0
        %1511 = vmatprep.subr.mxu0 0.0
        %1512 = vmatpush1.xpose.msra.mxu0 0.0
        %1513 = vmatprep.subr.mxu0 0.0
        %1514 = vmatpush1.xpose.msra.mxu0 0.0
        %1515 = vmatprep.subr.mxu0 0.0
        %1516 = vmatpush1.xpose.msra.mxu0 0.0
        %1517 = vmatprep.subr.mxu0 0.0
        %1518 = vmatpush1.xpose.msra.mxu0 0.0
        %1519 = vmatprep.subr.mxu0 0.0
        %1520 = vmatpush1.xpose.msra.mxu0 0.0
        %1521 = vmatprep.subr.mxu0 0.0
        %1522 = vmatpush1.xpose.msra.mxu0 0.0
        %1523 = vmatprep.subr.mxu0 0.0
        %1524 = vmatpush1.xpose.msra.mxu0 0.0
        %1525 = vmatprep.subr.mxu0 0.0
        %1526 = vmatpush1.xpose.msra.mxu0 0.0
        %1527 = vmatprep.subr.mxu0 0.0
        %1528 = vmatpush1.xpose.msra.mxu0 0.0
        %1529 = vmatprep.subr.mxu0 0.0
        %1530 = vmatpush1.xpose.msra.mxu0 0.0
        %1531 = vmatprep.subr.mxu0 0.0
        %1532 = vmatpush1.xpose.msra.mxu0 0.0
        %1533 = vmatprep.subr.mxu0 0.0
        %1534 = vmatpush1.xpose.msra.mxu0 0.0
        %1535 = vmatprep.subr.mxu0 0.0
        %1536 = vmatpush1.xpose.msra.mxu0 0.0
        %1537 = vmatprep.subr.mxu0 0.0
        %1538 = vmatpush1.xpose.msra.mxu0 0.0
        %1539 = vmatprep.subr.mxu0 0.0
        %1540 = vmatpush1.xpose.msra.mxu0 0.0
        %1541 = vmatprep.subr.mxu0 0.0
        %1542 = vmatpush1.xpose.msra.mxu0 0.0
        %1543 = vmatprep.subr.mxu0 0.0
        %1544 = vmatpush1.xpose.msra.mxu0 0.0
        %1545 = vmatprep.subr.mxu0 0.0
        %1546 = vmatpush1.xpose.msra.mxu0 0.0
        %1547 = vmatprep.mubr.f32.mxu0 0.0
        %1548 = vmatmul.mubr.f32.gmra.mrb[0].mxu0 %v1478
        %v1549 = vpop.f32.mrb[0].mxu0
        %v1550 = vadd.f32 0.0, %v1549
        %v1551 = vpop.f32.mrb[0].mxu0
        %1552 = vdwg.mxu0
        %v1554 = vsel %vm994, %v1397, 0
        %v1557 = vsel %vm994, %v1332, 0
        %1559 = vmatprep.subr.mxu0 0.0
        %1560 = vmatpush1.xpose.msra.mxu0 %v1557
        %1561 = vmatprep.subr.mxu0 0.0
        %1562 = vmatpush1.xpose.msra.mxu0 0.0
        %1563 = vmatprep.subr.mxu0 0.0
        %1564 = vmatpush1.xpose.msra.mxu0 0.0
        %1565 = vmatprep.subr.mxu0 0.0
        %1566 = vmatpush1.xpose.msra.mxu0 0.0
        %1567 = vmatprep.subr.mxu0 0.0
        %1568 = vmatpush1.xpose.msra.mxu0 0.0
        %1569 = vmatprep.subr.mxu0 0.0
        %1570 = vmatpush1.xpose.msra.mxu0 0.0
        %1571 = vmatprep.subr.mxu0 0.0
        %1572 = vmatpush1.xpose.msra.mxu0 0.0
        %1573 = vmatprep.subr.mxu0 0.0
        %1574 = vmatpush1.xpose.msra.mxu0 0.0
        %1575 = vmatprep.subr.mxu0 0.0
        %1576 = vmatpush1.xpose.msra.mxu0 0.0
        %1577 = vmatprep.subr.mxu0 0.0
        %1578 = vmatpush1.xpose.msra.mxu0 0.0
        %1579 = vmatprep.subr.mxu0 0.0
        %1580 = vmatpush1.xpose.msra.mxu0 0.0
        %1581 = vmatprep.subr.mxu0 0.0
        %1582 = vmatpush1.xpose.msra.mxu0 0.0
        %1583 = vmatprep.subr.mxu0 0.0
        %1584 = vmatpush1.xpose.msra.mxu0 0.0
        %1585 = vmatprep.subr.mxu0 0.0
        %1586 = vmatpush1.xpose.msra.mxu0 0.0
        %1587 = vmatprep.subr.mxu0 0.0
        %1588 = vmatpush1.xpose.msra.mxu0 0.0
        %1589 = vmatprep.subr.mxu0 0.0
        %1590 = vmatpush1.xpose.msra.mxu0 0.0
        %1591 = vmatprep.subr.mxu0 0.0
        %1592 = vmatpush1.xpose.msra.mxu0 0.0
        %1593 = vmatprep.subr.mxu0 0.0
        %1594 = vmatpush1.xpose.msra.mxu0 0.0
        %1595 = vmatprep.subr.mxu0 0.0
        %1596 = vmatpush1.xpose.msra.mxu0 0.0
        %1597 = vmatprep.subr.mxu0 0.0
        %1598 = vmatpush1.xpose.msra.mxu0 0.0
        %1599 = vmatprep.subr.mxu0 0.0
        %1600 = vmatpush1.xpose.msra.mxu0 0.0
        %1601 = vmatprep.subr.mxu0 0.0
        %1602 = vmatpush1.xpose.msra.mxu0 0.0
        %1603 = vmatprep.subr.mxu0 0.0
        %1604 = vmatpush1.xpose.msra.mxu0 0.0
        %1605 = vmatprep.subr.mxu0 0.0
        %1606 = vmatpush1.xpose.msra.mxu0 0.0
        %1607 = vmatprep.subr.mxu0 0.0
        %1608 = vmatpush1.xpose.msra.mxu0 0.0
        %1609 = vmatprep.subr.mxu0 0.0
        %1610 = vmatpush1.xpose.msra.mxu0 0.0
        %1611 = vmatprep.subr.mxu0 0.0
        %1612 = vmatpush1.xpose.msra.mxu0 0.0
        %1613 = vmatprep.subr.mxu0 0.0
        %1614 = vmatpush1.xpose.msra.mxu0 0.0
        %1615 = vmatprep.subr.mxu0 0.0
        %1616 = vmatpush1.xpose.msra.mxu0 0.0
        %1617 = vmatprep.subr.mxu0 0.0
        %1618 = vmatpush1.xpose.msra.mxu0 0.0
        %1619 = vmatprep.subr.mxu0 0.0
        %1620 = vmatpush1.xpose.msra.mxu0 0.0
        %1621 = vmatprep.subr.mxu0 0.0
        %1622 = vmatpush1.xpose.msra.mxu0 0.0
        %1623 = vmatprep.mubr.f32.mxu0 0.0
        %1624 = vmatmul.mubr.f32.gmra.mrb[0].mxu0 %v1554
        %v1625 = vpop.f32.mrb[0].mxu0
        %v1626 = vadd.f32 0.0, %v1625
        %v1627 = vpop.f32.mrb[0].mxu0
        %1628 = vdwg.mxu0
        %v1630 = vsel %vm994, %v1429, 0
        %v1633 = vsel %vm994, %v1334, 0
        %1635 = vmatprep.subr.mxu0 0.0
        %1636 = vmatpush1.xpose.msra.mxu0 %v1633
        %1637 = vmatprep.subr.mxu0 0.0
        %1638 = vmatpush1.xpose.msra.mxu0 0.0
        %1639 = vmatprep.subr.mxu0 0.0
        %1640 = vmatpush1.xpose.msra.mxu0 0.0
        %1641 = vmatprep.subr.mxu0 0.0
        %1642 = vmatpush1.xpose.msra.mxu0 0.0
        %1643 = vmatprep.subr.mxu0 0.0
        %1644 = vmatpush1.xpose.msra.mxu0 0.0
        %1645 = vmatprep.subr.mxu0 0.0
        %1646 = vmatpush1.xpose.msra.mxu0 0.0
        %1647 = vmatprep.subr.mxu0 0.0
        %1648 = vmatpush1.xpose.msra.mxu0 0.0
        %1649 = vmatprep.subr.mxu0 0.0
        %1650 = vmatpush1.xpose.msra.mxu0 0.0
        %1651 = vmatprep.subr.mxu0 0.0
        %1652 = vmatpush1.xpose.msra.mxu0 0.0
        %1653 = vmatprep.subr.mxu0 0.0
        %1654 = vmatpush1.xpose.msra.mxu0 0.0
        %1655 = vmatprep.subr.mxu0 0.0
        %1656 = vmatpush1.xpose.msra.mxu0 0.0
        %1657 = vmatprep.subr.mxu0 0.0
        %1658 = vmatpush1.xpose.msra.mxu0 0.0
        %1659 = vmatprep.subr.mxu0 0.0
        %1660 = vmatpush1.xpose.msra.mxu0 0.0
        %1661 = vmatprep.subr.mxu0 0.0
        %1662 = vmatpush1.xpose.msra.mxu0 0.0
        %1663 = vmatprep.subr.mxu0 0.0
        %1664 = vmatpush1.xpose.msra.mxu0 0.0
        %1665 = vmatprep.subr.mxu0 0.0
        %1666 = vmatpush1.xpose.msra.mxu0 0.0
        %1667 = vmatprep.subr.mxu0 0.0
        %1668 = vmatpush1.xpose.msra.mxu0 0.0
        %1669 = vmatprep.subr.mxu0 0.0
        %1670 = vmatpush1.xpose.msra.mxu0 0.0
        %1671 = vmatprep.subr.mxu0 0.0
        %1672 = vmatpush1.xpose.msra.mxu0 0.0
        %1673 = vmatprep.subr.mxu0 0.0
        %1674 = vmatpush1.xpose.msra.mxu0 0.0
        %1675 = vmatprep.subr.mxu0 0.0
        %1676 = vmatpush1.xpose.msra.mxu0 0.0
        %1677 = vmatprep.subr.mxu0 0.0
        %1678 = vmatpush1.xpose.msra.mxu0 0.0
        %1679 = vmatprep.subr.mxu0 0.0
        %1680 = vmatpush1.xpose.msra.mxu0 0.0
        %1681 = vmatprep.subr.mxu0 0.0
        %1682 = vmatpush1.xpose.msra.mxu0 0.0
        %1683 = vmatprep.subr.mxu0 0.0
        %1684 = vmatpush1.xpose.msra.mxu0 0.0
        %1685 = vmatprep.subr.mxu0 0.0
        %1686 = vmatpush1.xpose.msra.mxu0 0.0
        %1687 = vmatprep.subr.mxu0 0.0
        %1688 = vmatpush1.xpose.msra.mxu0 0.0
        %1689 = vmatprep.subr.mxu0 0.0
        %1690 = vmatpush1.xpose.msra.mxu0 0.0
        %1691 = vmatprep.subr.mxu0 0.0
        %1692 = vmatpush1.xpose.msra.mxu0 0.0
        %1693 = vmatprep.subr.mxu0 0.0
        %1694 = vmatpush1.xpose.msra.mxu0 0.0
        %1695 = vmatprep.subr.mxu0 0.0
        %1696 = vmatpush1.xpose.msra.mxu0 0.0
        %1697 = vmatprep.subr.mxu0 0.0
        %1698 = vmatpush1.xpose.msra.mxu0 0.0
        %1699 = vmatprep.mubr.f32.mxu0 0.0
        %1700 = vmatmul.mubr.f32.gmra.mrb[0].mxu0 %v1630
        %v1701 = vpop.f32.mrb[0].mxu0
        %v1702 = vadd.f32 0.0, %v1701
        %v1703 = vpop.f32.mrb[0].mxu0
        %1704 = vdwg.mxu0
        %v1706 = vsel %vm994, %v1461, 0
        %v1709 = vsel %vm994, %v1336, 0
        %1711 = vmatprep.subr.mxu0 0.0
        %1712 = vmatpush1.xpose.msra.mxu0 %v1709
        %1713 = vmatprep.subr.mxu0 0.0
        %1714 = vmatpush1.xpose.msra.mxu0 0.0
        %1715 = vmatprep.subr.mxu0 0.0
        %1716 = vmatpush1.xpose.msra.mxu0 0.0
        %1717 = vmatprep.subr.mxu0 0.0
        %1718 = vmatpush1.xpose.msra.mxu0 0.0
        %1719 = vmatprep.subr.mxu0 0.0
        %1720 = vmatpush1.xpose.msra.mxu0 0.0
        %1721 = vmatprep.subr.mxu0 0.0
        %1722 = vmatpush1.xpose.msra.mxu0 0.0
        %1723 = vmatprep.subr.mxu0 0.0
        %1724 = vmatpush1.xpose.msra.mxu0 0.0
        %1725 = vmatprep.subr.mxu0 0.0
        %1726 = vmatpush1.xpose.msra.mxu0 0.0
        %1727 = vmatprep.subr.mxu0 0.0
        %1728 = vmatpush1.xpose.msra.mxu0 0.0
        %1729 = vmatprep.subr.mxu0 0.0
        %1730 = vmatpush1.xpose.msra.mxu0 0.0
        %1731 = vmatprep.subr.mxu0 0.0
        %1732 = vmatpush1.xpose.msra.mxu0 0.0
        %1733 = vmatprep.subr.mxu0 0.0
        %1734 = vmatpush1.xpose.msra.mxu0 0.0
        %1735 = vmatprep.subr.mxu0 0.0
        %1736 = vmatpush1.xpose.msra.mxu0 0.0
        %1737 = vmatprep.subr.mxu0 0.0
        %1738 = vmatpush1.xpose.msra.mxu0 0.0
        %1739 = vmatprep.subr.mxu0 0.0
        %1740 = vmatpush1.xpose.msra.mxu0 0.0
        %1741 = vmatprep.subr.mxu0 0.0
        %1742 = vmatpush1.xpose.msra.mxu0 0.0
        %1743 = vmatprep.subr.mxu0 0.0
        %1744 = vmatpush1.xpose.msra.mxu0 0.0
        %1745 = vmatprep.subr.mxu0 0.0
        %1746 = vmatpush1.xpose.msra.mxu0 0.0
        %1747 = vmatprep.subr.mxu0 0.0
        %1748 = vmatpush1.xpose.msra.mxu0 0.0
        %1749 = vmatprep.subr.mxu0 0.0
        %1750 = vmatpush1.xpose.msra.mxu0 0.0
        %1751 = vmatprep.subr.mxu0 0.0
        %1752 = vmatpush1.xpose.msra.mxu0 0.0
        %1753 = vmatprep.subr.mxu0 0.0
        %1754 = vmatpush1.xpose.msra.mxu0 0.0
        %1755 = vmatprep.subr.mxu0 0.0
        %1756 = vmatpush1.xpose.msra.mxu0 0.0
        %1757 = vmatprep.subr.mxu0 0.0
        %1758 = vmatpush1.xpose.msra.mxu0 0.0
        %1759 = vmatprep.subr.mxu0 0.0
        %1760 = vmatpush1.xpose.msra.mxu0 0.0
        %1761 = vmatprep.subr.mxu0 0.0
        %1762 = vmatpush1.xpose.msra.mxu0 0.0
        %1763 = vmatprep.subr.mxu0 0.0
        %1764 = vmatpush1.xpose.msra.mxu0 0.0
        %1765 = vmatprep.subr.mxu0 0.0
        %1766 = vmatpush1.xpose.msra.mxu0 0.0
        %1767 = vmatprep.subr.mxu0 0.0
        %1768 = vmatpush1.xpose.msra.mxu0 0.0
        %1769 = vmatprep.subr.mxu0 0.0
        %1770 = vmatpush1.xpose.msra.mxu0 0.0
        %1771 = vmatprep.subr.mxu0 0.0
        %1772 = vmatpush1.xpose.msra.mxu0 0.0
        %1773 = vmatprep.subr.mxu0 0.0
        %1774 = vmatpush1.xpose.msra.mxu0 0.0
        %1775 = vmatprep.mubr.f32.mxu0 0.0
        %1776 = vmatmul.mubr.f32.gmra.mrb[0].mxu0 %v1706
        %v1777 = vpop.f32.mrb[0].mxu0
        %v1778 = vadd.f32 0.0, %v1777
        %v1779 = vpop.f32.mrb[0].mxu0
        %1780 = vdwg.mxu0
        %1781 = vxpose.xlu0.b32.start [1/16] %v1550, 128
        %1782 = vxpose.xlu0.b32.cont [2/16] 0.0, 128
        %1783 = vxpose.xlu0.b32.cont [3/16] 0.0, 128
        %1784 = vxpose.xlu0.b32.cont [4/16] 0.0, 128
        %1785 = vxpose.xlu0.b32.cont [5/16] 0.0, 128
        %1786 = vxpose.xlu0.b32.cont [6/16] 0.0, 128
        %1787 = vxpose.xlu0.b32.cont [7/16] 0.0, 128
        %1788 = vxpose.xlu0.b32.cont [8/16] 0.0, 128
        %1789 = vxpose.xlu0.b32.cont [9/16] 0.0, 128
        %1790 = vxpose.xlu0.b32.cont [10/16] 0.0, 128
        %1791 = vxpose.xlu0.b32.cont [11/16] 0.0, 128
        %1792 = vxpose.xlu0.b32.cont [12/16] 0.0, 128
        %1793 = vxpose.xlu0.b32.cont [13/16] 0.0, 128
        %1794 = vxpose.xlu0.b32.cont [14/16] 0.0, 128
        %1795 = vxpose.xlu0.b32.cont [15/16] 0.0, 128
        %1796 = vxpose.xlu0.b32.end [16/16] 0.0, 128
        %v1797 = vpop.trf.xlu0
        %v1798 = vpop.trf.xlu0
        %v1799 = vpop.trf.xlu0
        %v1800 = vpop.trf.xlu0
        %v1801 = vpop.trf.xlu0
        %v1802 = vpop.trf.xlu0
        %v1803 = vpop.trf.xlu0
        %v1804 = vpop.trf.xlu0
        %v1805 = vpop.trf.xlu0
        %v1806 = vpop.trf.xlu0
        %v1807 = vpop.trf.xlu0
        %v1808 = vpop.trf.xlu0
        %v1809 = vpop.trf.xlu0
        %v1810 = vpop.trf.xlu0
        %v1811 = vpop.trf.xlu0
        %v1812 = vpop.trf.xlu0
        %1813 = vxpose.xlu0.b32.start [1/16] %v1626, 128
        %1814 = vxpose.xlu0.b32.cont [2/16] 0.0, 128
        %1815 = vxpose.xlu0.b32.cont [3/16] 0.0, 128
        %1816 = vxpose.xlu0.b32.cont [4/16] 0.0, 128
        %1817 = vxpose.xlu0.b32.cont [5/16] 0.0, 128
        %1818 = vxpose.xlu0.b32.cont [6/16] 0.0, 128
        %1819 = vxpose.xlu0.b32.cont [7/16] 0.0, 128
        %1820 = vxpose.xlu0.b32.cont [8/16] 0.0, 128
        %1821 = vxpose.xlu0.b32.cont [9/16] 0.0, 128
        %1822 = vxpose.xlu0.b32.cont [10/16] 0.0, 128
        %1823 = vxpose.xlu0.b32.cont [11/16] 0.0, 128
        %1824 = vxpose.xlu0.b32.cont [12/16] 0.0, 128
        %1825 = vxpose.xlu0.b32.cont [13/16] 0.0, 128
        %1826 = vxpose.xlu0.b32.cont [14/16] 0.0, 128
        %1827 = vxpose.xlu0.b32.cont [15/16] 0.0, 128
        %1828 = vxpose.xlu0.b32.end [16/16] 0.0, 128
        %v1829 = vpop.trf.xlu0
        %v1830 = vpop.trf.xlu0
        %v1831 = vpop.trf.xlu0
        %v1832 = vpop.trf.xlu0
        %v1833 = vpop.trf.xlu0
        %v1834 = vpop.trf.xlu0
        %v1835 = vpop.trf.xlu0
        %v1836 = vpop.trf.xlu0
        %v1837 = vpop.trf.xlu0
        %v1838 = vpop.trf.xlu0
        %v1839 = vpop.trf.xlu0
        %v1840 = vpop.trf.xlu0
        %v1841 = vpop.trf.xlu0
        %v1842 = vpop.trf.xlu0
        %v1843 = vpop.trf.xlu0
        %v1844 = vpop.trf.xlu0
        %1845 = vxpose.xlu0.b32.start [1/16] %v1702, 128
        %1846 = vxpose.xlu0.b32.cont [2/16] 0.0, 128
        %1847 = vxpose.xlu0.b32.cont [3/16] 0.0, 128
        %1848 = vxpose.xlu0.b32.cont [4/16] 0.0, 128
        %1849 = vxpose.xlu0.b32.cont [5/16] 0.0, 128
        %1850 = vxpose.xlu0.b32.cont [6/16] 0.0, 128
        %1851 = vxpose.xlu0.b32.cont [7/16] 0.0, 128
        %1852 = vxpose.xlu0.b32.cont [8/16] 0.0, 128
        %1853 = vxpose.xlu0.b32.cont [9/16] 0.0, 128
        %1854 = vxpose.xlu0.b32.cont [10/16] 0.0, 128
        %1855 = vxpose.xlu0.b32.cont [11/16] 0.0, 128
        %1856 = vxpose.xlu0.b32.cont [12/16] 0.0, 128
        %1857 = vxpose.xlu0.b32.cont [13/16] 0.0, 128
        %1858 = vxpose.xlu0.b32.cont [14/16] 0.0, 128
        %1859 = vxpose.xlu0.b32.cont [15/16] 0.0, 128
        %1860 = vxpose.xlu0.b32.end [16/16] 0.0, 128
        %v1861 = vpop.trf.xlu0
        %v1862 = vpop.trf.xlu0
        %v1863 = vpop.trf.xlu0
        %v1864 = vpop.trf.xlu0
        %v1865 = vpop.trf.xlu0
        %v1866 = vpop.trf.xlu0
        %v1867 = vpop.trf.xlu0
        %v1868 = vpop.trf.xlu0
        %v1869 = vpop.trf.xlu0
        %v1870 = vpop.trf.xlu0
        %v1871 = vpop.trf.xlu0
        %v1872 = vpop.trf.xlu0
        %v1873 = vpop.trf.xlu0
        %v1874 = vpop.trf.xlu0
        %v1875 = vpop.trf.xlu0
        %v1876 = vpop.trf.xlu0
        %1877 = vxpose.xlu0.b32.start [1/16] %v1778, 128
        %1878 = vxpose.xlu0.b32.cont [2/16] 0.0, 128
        %1879 = vxpose.xlu0.b32.cont [3/16] 0.0, 128
        %1880 = vxpose.xlu0.b32.cont [4/16] 0.0, 128
        %1881 = vxpose.xlu0.b32.cont [5/16] 0.0, 128
        %1882 = vxpose.xlu0.b32.cont [6/16] 0.0, 128
        %1883 = vxpose.xlu0.b32.cont [7/16] 0.0, 128
        %1884 = vxpose.xlu0.b32.cont [8/16] 0.0, 128
        %1885 = vxpose.xlu0.b32.cont [9/16] 0.0, 128
        %1886 = vxpose.xlu0.b32.cont [10/16] 0.0, 128
        %1887 = vxpose.xlu0.b32.cont [11/16] 0.0, 128
        %1888 = vxpose.xlu0.b32.cont [12/16] 0.0, 128
        %1889 = vxpose.xlu0.b32.cont [13/16] 0.0, 128
        %1890 = vxpose.xlu0.b32.cont [14/16] 0.0, 128
        %1891 = vxpose.xlu0.b32.cont [15/16] 0.0, 128
        %1892 = vxpose.xlu0.b32.end [16/16] 0.0, 128
        %v1893 = vpop.trf.xlu0
        %v1894 = vpop.trf.xlu0
        %v1895 = vpop.trf.xlu0
        %v1896 = vpop.trf.xlu0
        %v1897 = vpop.trf.xlu0
        %v1898 = vpop.trf.xlu0
        %v1899 = vpop.trf.xlu0
        %v1900 = vpop.trf.xlu0
        %v1901 = vpop.trf.xlu0
        %v1902 = vpop.trf.xlu0
        %v1903 = vpop.trf.xlu0
        %v1904 = vpop.trf.xlu0
        %v1905 = vpop.trf.xlu0
        %v1906 = vpop.trf.xlu0
        %v1907 = vpop.trf.xlu0
        %v1908 = vpop.trf.xlu0
        %v1909 = vcombine.low %v1797, %v1861
        %v1910 = vcombine.high %v1797, %v1861
        %v1912 = vunpack.c.l.s4 1983009808
        %v1913 = vunpack.c.0.s8 %v1912
        %v1914 = vlaneseq
        %v1915 = vshrl.u32 %v1914, 7
        %v1916 = vsub.s32 %v1913, %v1915
        %v1917 = vrot.slane %v1909, %v1916
        %v1919 = vunpack.c.l.s4 1983009808
        %v1920 = vunpack.c.0.s8 %v1919
        %v1921 = vlaneseq
        %v1922 = vshrl.u32 %v1921, 7
        %v1923 = vsub.s32 %v1920, %v1922
        %v1924 = vrot.slane %v1910, %v1923
        %v1925 = vcombine.low %v1829, %v1893
        %v1926 = vcombine.high %v1829, %v1893
        %v1928 = vunpack.c.l.s4 1983009808
        %v1929 = vunpack.c.0.s8 %v1928
        %v1930 = vlaneseq
        %v1931 = vshrl.u32 %v1930, 7
        %v1932 = vsub.s32 %v1929, %v1931
        %v1933 = vrot.slane %v1925, %v1932
        %v1935 = vunpack.c.l.s4 1983009808
        %v1936 = vunpack.c.0.s8 %v1935
        %v1937 = vlaneseq
        %v1938 = vshrl.u32 %v1937, 7
        %v1939 = vsub.s32 %v1936, %v1938
        %v1940 = vrot.slane %v1926, %v1939
        %v1941 = vcombine.low %v1917, %v1933
        %v1942 = vcombine.high %v1917, %v1933
        %v1944 = vunpack.c.l.s4 1934713408
        %v1945 = vunpack.c.0.s8 %v1944
        %v1946 = vlaneseq
        %v1947 = vshrl.u32 %v1946, 7
        %v1948 = vsub.s32 %v1945, %v1947
        %v1949 = vrot.slane %v1941, %v1948
        %v1951 = vunpack.c.l.s4 1934713408
        %v1952 = vunpack.c.0.s8 %v1951
        %v1953 = vlaneseq
        %v1954 = vshrl.u32 %v1953, 7
        %v1955 = vsub.s32 %v1952, %v1954
        %v1956 = vrot.slane %v1942, %v1955
        %v1957 = vcombine.low %v1924, %v1940
        %v1958 = vcombine.high %v1924, %v1940
        %v1960 = vunpack.c.l.s4 1934713408
        %v1961 = vunpack.c.0.s8 %v1960
        %v1962 = vlaneseq
        %v1963 = vshrl.u32 %v1962, 7
        %v1964 = vsub.s32 %v1961, %v1963
        %v1965 = vrot.slane %v1957, %v1964
        %v1967 = vunpack.c.l.s4 1934713408
        %v1968 = vunpack.c.0.s8 %v1967
        %v1969 = vlaneseq
        %v1970 = vshrl.u32 %v1969, 7
        %v1971 = vsub.s32 %v1968, %v1970
        %v1972 = vrot.slane %v1958, %v1971
        %v1973 = vcombine.high %v1949, 0.0
        %v1974 = vcombine.high %v1956, 0.0
        %v1975 = vcombine.high %v1965, 0.0
        %v1976 = vcombine.high %v1972, 0.0
        %v1977 = vcombine.low %v1949, %v1956
        %v1979 = vunpack.c.l.s4 1983009808
        %v1980 = vunpack.c.0.s8 %v1979
        %v1981 = vlaneseq
        %v1982 = vshrl.u32 %v1981, 7
        %v1983 = vsub.s32 %v1980, %v1982
        %v1984 = vrot.slane %v1977, %v1983
        %v1985 = vcombine.low %v1973, %v1974
        %v1987 = vunpack.c.l.s4 1983009808
        %v1988 = vunpack.c.0.s8 %v1987
        %v1989 = vlaneseq
        %v1990 = vshrl.u32 %v1989, 7
        %v1991 = vsub.s32 %v1988, %v1990
        %v1992 = vrot.slane %v1985, %v1991
        %v1993 = vcombine.low %v1965, %v1972
        %v1995 = vunpack.c.l.s4 1983009808
        %v1996 = vunpack.c.0.s8 %v1995
        %v1997 = vlaneseq
        %v1998 = vshrl.u32 %v1997, 7
        %v1999 = vsub.s32 %v1996, %v1998
        %v2000 = vrot.slane %v1993, %v1999
        %v2001 = vcombine.low %v1975, %v1976
        %v2003 = vunpack.c.l.s4 1983009808
        %v2004 = vunpack.c.0.s8 %v2003
        %v2005 = vlaneseq
        %v2006 = vshrl.u32 %v2005, 7
        %v2007 = vsub.s32 %v2004, %v2006
        %v2008 = vrot.slane %v2001, %v2007
        %v2009 = vcombine.low %v1984, %v1992
        %v2010 = vcombine.high %v1984, %v1992
        %v2012 = vunpack.c.l.s4 1934713408
        %v2013 = vunpack.c.0.s8 %v2012
        %v2014 = vlaneseq
        %v2015 = vshrl.u32 %v2014, 7
        %v2016 = vsub.s32 %v2013, %v2015
        %v2017 = vrot.slane %v2009, %v2016
        %v2019 = vunpack.c.l.s4 1934713408
        %v2020 = vunpack.c.0.s8 %v2019
        %v2021 = vlaneseq
        %v2022 = vshrl.u32 %v2021, 7
        %v2023 = vsub.s32 %v2020, %v2022
        %v2024 = vrot.slane %v2010, %v2023
        %v2025 = vcombine.low %v2000, %v2008
        %v2026 = vcombine.high %v2000, %v2008
        %v2028 = vunpack.c.l.s4 1934713408
        %v2029 = vunpack.c.0.s8 %v2028
        %v2030 = vlaneseq
        %v2031 = vshrl.u32 %v2030, 7
        %v2032 = vsub.s32 %v2029, %v2031
        %v2033 = vrot.slane %v2025, %v2032
        %v2035 = vunpack.c.l.s4 1934713408
        %v2036 = vunpack.c.0.s8 %v2035
        %v2037 = vlaneseq
        %v2038 = vshrl.u32 %v2037, 7
        %v2039 = vsub.s32 %v2036, %v2038
        %v2040 = vrot.slane %v2026, %v2039
        %v2041 = vcombine.low %v2017, %v2033
        %v2042 = vcombine.high %v2017, %v2033
        %v2043 = vcombine.low %v2024, %v2040
        %v2044 = vcombine.high %v2024, %v2040
        %2046 = vrot.lane.b32.xlu0 %v2042, 8
        %v2047 = vpop.permute.xlu0 %2046
        %2050 = vrot.lane.b32.xlu0 %v2043, 16
        %v2051 = vpop.permute.xlu0 %2050
        %2054 = vrot.lane.b32.xlu0 %v2044, 24
        %v2055 = vpop.permute.xlu0 %2054
        %v2057 = vsel %vm994, %v2041, %v2047
        %vm2058 = vcmask 130048
        %v2059 = vsel %vm2058, %v2057, %v2051
        %vm2060 = vcmask 195584
        %v2061 = vsel %vm2060, %v2059, %v2055
        %v2062 = vpack.c.bf16 %v2061, %v2061
        %v2063 = vld [vmem:[#allocation10] sm:$0xf]
        %v2064 = vld [vmem:[#allocation10 + $0x4] sm:$0xf]
        %v2065 = vld [vmem:[#allocation10 + $0x8] sm:$0xf]
        %v2066 = vld [vmem:[#allocation10 + $0xc] sm:$0xf]
        %v2067 = vld [vmem:[#allocation11] sm:$0x1]
        %v2069 = vlaneseq
        %v2070 = vshrl.u32 %v2069, 7
        %v2071 = vsub.s32 0, %v2070
        %v2072 = vrot.slane %v2067, %v2071
        %v2078 = vunpack.c.l.b16 %v2063
        %v2079 = vunpack.c.l.b16 %v2064
        %v2080 = vunpack.c.l.b16 %v2065
        %v2081 = vunpack.c.l.b16 %v2066
        %v2082 = vpack.c.b16 %v2079, %v2078
        %v2083 = vpack.c.b16 %v2081, %v2080
        %v2087 = vsel %vm758, %v2062, 0
        %2089 = vmatprep.subr.bf16.mxu0 0
        %2090 = vmatpush1.bf16.msra.mxu0 %v2082
        %2091 = vmatprep.subr.bf16.mxu0 0
        %2092 = vmatpush1.bf16.msra.mxu0 %v2083
        %2093 = vmatprep.subr.bf16.mxu0 0
        %2094 = vmatpush1.bf16.msra.mxu0 0
        %2095 = vmatprep.subr.bf16.mxu0 0
        %2096 = vmatpush1.bf16.msra.mxu0 0
        %2097 = vmatprep.subr.bf16.mxu0 0
        %2098 = vmatpush1.bf16.msra.mxu0 0
        %2099 = vmatprep.subr.bf16.mxu0 0
        %2100 = vmatpush1.bf16.msra.mxu0 0
        %2101 = vmatprep.subr.bf16.mxu0 0
        %2102 = vmatpush1.bf16.msra.mxu0 0
        %2103 = vmatprep.subr.bf16.mxu0 0
        %2104 = vmatpush1.bf16.msra.mxu0 0
        %2105 = vmatprep.subr.bf16.mxu0 0
        %2106 = vmatpush1.bf16.msra.mxu0 0
        %2107 = vmatprep.subr.bf16.mxu0 0
        %2108 = vmatpush1.bf16.msra.mxu0 0
        %2109 = vmatprep.subr.bf16.mxu0 0
        %2110 = vmatpush1.bf16.msra.mxu0 0
        %2111 = vmatprep.subr.bf16.mxu0 0
        %2112 = vmatpush1.bf16.msra.mxu0 0
        %2113 = vmatprep.subr.bf16.mxu0 0
        %2114 = vmatpush1.bf16.msra.mxu0 0
        %2115 = vmatprep.subr.bf16.mxu0 0
        %2116 = vmatpush1.bf16.msra.mxu0 0
        %2117 = vmatprep.subr.bf16.mxu0 0
        %2118 = vmatpush1.bf16.msra.mxu0 0
        %2119 = vmatprep.subr.bf16.mxu0 0
        %2120 = vmatpush1.bf16.msra.mxu0 0
        %2121 = vmatprep.mubr.bf16.mxu0 0
        %2122 = vmatmul.mubr.bf16.gmra.mrb[0].mxu0 %v2087
        %v2123 = vpop.f32.mrb[0].mxu0
        %v2124 = vadd.f32 %v2072, %v2123
        %v2125 = vpop.f32.mrb[0].mxu0
        %v2126 = vpop.f32.mrb[0].mxu0
        %v2127 = vpop.f32.mrb[0].mxu0
        %2128 = vdwg.mxu0
        %v2129 = vadd.f32 %v750, %v2124
        %v2130 = vld [vmem:[#allocation13] sm:$0x1]
        %v2131 = vld [vmem:[#allocation14] sm:$0x1]
        %v2132 = vsel %vm758, %v2129, 0.0
        %2133 = vadd.xlane.f32.xlu0 %v2132
        %v2134 = vpop.xlane.xlu0 %2133
        %v2135 = vmul.f32 %v2134, %v762
        %v2136 = vsub.f32 %v2129, %v2135
        %v2137 = vmul.f32 %v2136, %v2136
        %v2138 = vsel %vm758, %v2137, 0.0
        %2139 = vadd.xlane.f32.xlu0 %v2138
        %v2140 = vpop.xlane.xlu0 %2139
        %v2141 = vmul.f32 %v2140, %v762
        %v2142 = vadd.f32 %v2141, 1e-05
        %v2143 = vrsqrt.pop %v2142
        %v2144 = vmul.f32 %v2136, %v2143
        %v2146 = vlaneseq
        %v2147 = vshrl.u32 %v2146, 7
        %v2148 = vsub.s32 0, %v2147
        %v2149 = vrot.slane %v2130, %v2148
        %v2151 = vmul.f32 %v2144, %v2149
        %v2153 = vlaneseq
        %v2154 = vshrl.u32 %v2153, 7
        %v2155 = vsub.s32 0, %v2154
        %v2156 = vrot.slane %v2131, %v2155
        %v2158 = vadd.f32 %v2151, %v2156
        %v2159 = vpack.c.bf16 %v2158, %v2158
        %v2160 = vld [vmem:[#allocation16] sm:$0xf]
        %v2161 = vld [vmem:[#allocation16 + $0x4] sm:$0xf]
        %v2162 = vld [vmem:[#allocation16 + $0x8] sm:$0xf]
        %v2163 = vld [vmem:[#allocation16 + $0xc] sm:$0xf]
        %v2164 = vld [vmem:[#allocation17] sm:$0x1]
        %v2166 = vlaneseq
        %v2167 = vshrl.u32 %v2166, 7
        %v2168 = vsub.s32 0, %v2167
        %v2169 = vrot.slane %v2164, %v2168
        %v2175 = vunpack.c.l.b16 %v2160
        %v2176 = vunpack.c.l.b16 %v2161
        %v2177 = vunpack.c.l.b16 %v2162
        %v2178 = vunpack.c.l.b16 %v2163
        %v2179 = vpack.c.b16 %v2176, %v2175
        %v2180 = vpack.c.b16 %v2178, %v2177
        %v2184 = vsel %vm758, %v2159, 0
        %2186 = vmatprep.subr.bf16.mxu0 0
        %2187 = vmatpush1.bf16.msra.mxu0 %v2179
        %2188 = vmatprep.subr.bf16.mxu0 0
        %2189 = vmatpush1.bf16.msra.mxu0 %v2180
        %2190 = vmatprep.subr.bf16.mxu0 0
        %2191 = vmatpush1.bf16.msra.mxu0 0
        %2192 = vmatprep.subr.bf16.mxu0 0
        %2193 = vmatpush1.bf16.msra.mxu0 0
        %2194 = vmatprep.subr.bf16.mxu0 0
        %2195 = vmatpush1.bf16.msra.mxu0 0
        %2196 = vmatprep.subr.bf16.mxu0 0
        %2197 = vmatpush1.bf16.msra.mxu0 0
        %2198 = vmatprep.subr.bf16.mxu0 0
        %2199 = vmatpush1.bf16.msra.mxu0 0
        %2200 = vmatprep.subr.bf16.mxu0 0
        %2201 = vmatpush1.bf16.msra.mxu0 0
        %2202 = vmatprep.subr.bf16.mxu0 0
        %2203 = vmatpush1.bf16.msra.mxu0 0
        %2204 = vmatprep.subr.bf16.mxu0 0
        %2205 = vmatpush1.bf16.msra.mxu0 0
        %2206 = vmatprep.subr.bf16.mxu0 0
        %2207 = vmatpush1.bf16.msra.mxu0 0
        %2208 = vmatprep.subr.bf16.mxu0 0
        %2209 = vmatpush1.bf16.msra.mxu0 0
        %2210 = vmatprep.subr.bf16.mxu0 0
        %2211 = vmatpush1.bf16.msra.mxu0 0
        %2212 = vmatprep.subr.bf16.mxu0 0
        %2213 = vmatpush1.bf16.msra.mxu0 0
        %2214 = vmatprep.subr.bf16.mxu0 0
        %2215 = vmatpush1.bf16.msra.mxu0 0
        %2216 = vmatprep.subr.bf16.mxu0 0
        %2217 = vmatpush1.bf16.msra.mxu0 0
        %2218 = vmatprep.mubr.bf16.mxu0 0
        %2219 = vmatmul.mubr.bf16.gmra.mrb[0].mxu0 %v2184
        %v2220 = vpop.f32.mrb[0].mxu0
        %v2221 = vadd.f32 %v2169, %v2220
        %v2222 = vpop.f32.mrb[0].mxu0
        %v2223 = vpop.f32.mrb[0].mxu0
        %v2224 = vpop.f32.mrb[0].mxu0
        %2225 = vdwg.mxu0
        %v2226 = vmax.f32 %v2221, 0.0
        %v2227 = vpack.c.bf16 %v2226, %v2226
        %v2228 = vld [vmem:[#allocation19] sm:$0xf]
        %v2229 = vld [vmem:[#allocation19 + $0x4] sm:$0xf]
        %v2230 = vld [vmem:[#allocation19 + $0x8] sm:$0xf]
        %v2231 = vld [vmem:[#allocation19 + $0xc] sm:$0xf]
        %v2232 = vld [vmem:[#allocation19 + $0x10] sm:$0xf]
        %v2233 = vld [vmem:[#allocation19 + $0x14] sm:$0xf]
        %v2234 = vld [vmem:[#allocation19 + $0x18] sm:$0xf]
        %v2235 = vld [vmem:[#allocation19 + $0x1c] sm:$0xf]
        %v2236 = vld [vmem:[#allocation19 + $0x20] sm:$0xf]
        %v2237 = vld [vmem:[#allocation19 + $0x24] sm:$0xf]
        %v2238 = vld [vmem:[#allocation19 + $0x28] sm:$0xf]
        %v2239 = vld [vmem:[#allocation19 + $0x2c] sm:$0xf]
        %v2240 = vld [vmem:[#allocation19 + $0x30] sm:$0xf]
        %v2241 = vld [vmem:[#allocation19 + $0x34] sm:$0xf]
        %v2242 = vld [vmem:[#allocation19 + $0x38] sm:$0xf]
        %v2243 = vld [vmem:[#allocation19 + $0x3c] sm:$0xf]
        %v2260 = vunpack.c.l.b16 %v2228
        %v2261 = vunpack.c.l.b16 %v2229
        %v2262 = vunpack.c.l.b16 %v2230
        %v2263 = vunpack.c.l.b16 %v2231
        %v2264 = vunpack.c.l.b16 %v2232
        %v2265 = vunpack.c.l.b16 %v2233
        %v2266 = vunpack.c.l.b16 %v2234
        %v2267 = vunpack.c.l.b16 %v2235
        %v2268 = vunpack.c.l.b16 %v2236
        %v2269 = vunpack.c.l.b16 %v2237
        %v2270 = vunpack.c.l.b16 %v2238
        %v2271 = vunpack.c.l.b16 %v2239
        %v2272 = vunpack.c.l.b16 %v2240
        %v2273 = vunpack.c.l.b16 %v2241
        %v2274 = vunpack.c.l.b16 %v2242
        %v2275 = vunpack.c.l.b16 %v2243
        %v2276 = vpack.c.b16 %v2261, %v2260
        %v2277 = vpack.c.b16 %v2263, %v2262
        %v2278 = vpack.c.b16 %v2265, %v2264
        %v2279 = vpack.c.b16 %v2267, %v2266
        %v2280 = vpack.c.b16 %v2269, %v2268
        %v2281 = vpack.c.b16 %v2271, %v2270
        %v2282 = vpack.c.b16 %v2273, %v2272
        %v2283 = vpack.c.b16 %v2275, %v2274
        %2292 = vmatprep.subr.bf16.mxu0 0
        %2293 = vmatpush1.bf16.msra.mxu0 %v2276
        %2294 = vmatprep.subr.bf16.mxu0 0
        %2295 = vmatpush1.bf16.msra.mxu0 %v2277
        %2296 = vmatprep.subr.bf16.mxu0 0
        %2297 = vmatpush1.bf16.msra.mxu0 %v2278
        %2298 = vmatprep.subr.bf16.mxu0 0
        %2299 = vmatpush1.bf16.msra.mxu0 %v2279
        %2300 = vmatprep.subr.bf16.mxu0 0
        %2301 = vmatpush1.bf16.msra.mxu0 %v2280
        %2302 = vmatprep.subr.bf16.mxu0 0
        %2303 = vmatpush1.bf16.msra.mxu0 %v2281
        %2304 = vmatprep.subr.bf16.mxu0 0
        %2305 = vmatpush1.bf16.msra.mxu0 %v2282
        %2306 = vmatprep.subr.bf16.mxu0 0
        %2307 = vmatpush1.bf16.msra.mxu0 %v2283
        %2308 = vmatprep.subr.bf16.mxu0 0
        %2309 = vmatpush1.bf16.msra.mxu0 0
        %2310 = vmatprep.subr.bf16.mxu0 0
        %2311 = vmatpush1.bf16.msra.mxu0 0
        %2312 = vmatprep.subr.bf16.mxu0 0
        %2313 = vmatpush1.bf16.msra.mxu0 0
        %2314 = vmatprep.subr.bf16.mxu0 0
        %2315 = vmatpush1.bf16.msra.mxu0 0
        %2316 = vmatprep.subr.bf16.mxu0 0
        %2317 = vmatpush1.bf16.msra.mxu0 0
        %2318 = vmatprep.subr.bf16.mxu0 0
        %2319 = vmatpush1.bf16.msra.mxu0 0
        %2320 = vmatprep.subr.bf16.mxu0 0
        %2321 = vmatpush1.bf16.msra.mxu0 0
        %2322 = vmatprep.subr.bf16.mxu0 0
        %2323 = vmatpush1.bf16.msra.mxu0 0
        %2324 = vmatprep.mubr.bf16.mxu0 0
        %2325 = vmatmul.mubr.bf16.gmra.mrb[0].mxu0 %v2227
        %v2326 = vpop.f32.mrb[0].mxu0
        %v2327 = vadd.f32 0.0, %v2326
        %v2328 = vpop.f32.mrb[0].mxu0
        %v2329 = vpop.f32.mrb[0].mxu0
        %v2330 = vpop.f32.mrb[0].mxu0
        %2331 = vdwg.mxu0
        %v2332 = vadd.f32 %v2129, %v2327
        %v2333 = vld [vmem:[#allocation20] sm:$0x1]
        %v2335 = vlaneseq
        %v2336 = vshrl.u32 %v2335, 7
        %v2337 = vsub.s32 0, %v2336
        %v2338 = vrot.slane %v2333, %v2337
        %v2340 = vadd.f32 %v2332, %v2338
        %s2341 = scalar_lea.vmem [#allocation5], 1
        %v2342 = vld [vmem:[%s2341] sm:$0x1]
        %s2343 = scalar_lea.vmem [#allocation7], 1
        %v2344 = vld [vmem:[%s2343] sm:$0x1]
        %v2345 = vsel %vm758, %v2340, 0.0
        %2346 = vadd.xlane.f32.xlu0 %v2345
        %v2347 = vpop.xlane.xlu0 %2346
        %v2348 = vmul.f32 %v2347, %v762
        %v2349 = vsub.f32 %v2340, %v2348
        %v2350 = vmul.f32 %v2349, %v2349
        %v2351 = vsel %vm758, %v2350, 0.0
        %2352 = vadd.xlane.f32.xlu0 %v2351
        %v2353 = vpop.xlane.xlu0 %2352
        %v2354 = vmul.f32 %v2353, %v762
        %v2355 = vadd.f32 %v2354, 1e-05
        %v2356 = vrsqrt.pop %v2355
        %v2357 = vmul.f32 %v2349, %v2356
        %v2359 = vlaneseq
        %v2360 = vshrl.u32 %v2359, 7
        %v2361 = vsub.s32 0, %v2360
        %v2362 = vrot.slane %v2342, %v2361
        %v2364 = vmul.f32 %v2357, %v2362
        %v2366 = vlaneseq
        %v2367 = vshrl.u32 %v2366, 7
        %v2368 = vsub.s32 0, %v2367
        %v2369 = vrot.slane %v2344, %v2368
        %v2371 = vadd.f32 %v2364, %v2369
        %v2372 = vpack.c.bf16 %v2371, %v2371
        %s2373 = scalar_lea.vmem [#allocation8], 16
        %v2374 = vld [vmem:[%s2373] sm:$0xf]
        %v2375 = vld [vmem:[%s2373 + $0x4] sm:$0xf]
        %v2376 = vld [vmem:[%s2373 + $0x8] sm:$0xf]
        %v2377 = vld [vmem:[%s2373 + $0xc] sm:$0xf]
        %v2382 = vunpack.c.l.b16 %v2374
        %v2383 = vunpack.c.l.b16 %v2375
        %v2384 = vunpack.c.l.b16 %v2376
        %v2385 = vunpack.c.l.b16 %v2377
        %v2386 = vpack.c.b16 %v2383, %v2382
        %v2387 = vpack.c.b16 %v2385, %v2384
        %v2391 = vsel %vm758, %v2372, 0
        %2393 = vmatprep.subr.bf16.mxu0 0
        %2394 = vmatpush1.bf16.msra.mxu0 %v2386
        %2395 = vmatprep.subr.bf16.mxu0 0
        %2396 = vmatpush1.bf16.msra.mxu0 %v2387
        %2397 = vmatprep.subr.bf16.mxu0 0
        %2398 = vmatpush1.bf16.msra.mxu0 0
        %2399 = vmatprep.subr.bf16.mxu0 0
        %2400 = vmatpush1.bf16.msra.mxu0 0
        %2401 = vmatprep.subr.bf16.mxu0 0
        %2402 = vmatpush1.bf16.msra.mxu0 0
        %2403 = vmatprep.subr.bf16.mxu0 0
        %2404 = vmatpush1.bf16.msra.mxu0 0
        %2405 = vmatprep.subr.bf16.mxu0 0
        %2406 = vmatpush1.bf16.msra.mxu0 0
        %2407 = vmatprep.subr.bf16.mxu0 0
        %2408 = vmatpush1.bf16.msra.mxu0 0
        %2409 = vmatprep.subr.bf16.mxu0 0
        %2410 = vmatpush1.bf16.msra.mxu0 0
        %2411 = vmatprep.subr.bf16.mxu0 0
        %2412 = vmatpush1.bf16.msra.mxu0 0
        %2413 = vmatprep.subr.bf16.mxu0 0
        %2414 = vmatpush1.bf16.msra.mxu0 0
        %2415 = vmatprep.subr.bf16.mxu0 0
        %2416 = vmatpush1.bf16.msra.mxu0 0
        %2417 = vmatprep.subr.bf16.mxu0 0
        %2418 = vmatpush1.bf16.msra.mxu0 0
        %2419 = vmatprep.subr.bf16.mxu0 0
        %2420 = vmatpush1.bf16.msra.mxu0 0
        %2421 = vmatprep.subr.bf16.mxu0 0
        %2422 = vmatpush1.bf16.msra.mxu0 0
        %2423 = vmatprep.subr.bf16.mxu0 0
        %2424 = vmatpush1.bf16.msra.mxu0 0
        %2425 = vmatprep.mubr.bf16.mxu0 0
        %2426 = vmatmul.mubr.bf16.gmra.mrb[0].mxu0 %v2391
        %v2427 = vpop.f32.mrb[0].mxu0
        %v2428 = vadd.f32 0.0, %v2427
        %v2429 = vpop.f32.mrb[0].mxu0
        %v2430 = vpop.f32.mrb[0].mxu0
        %v2431 = vpop.f32.mrb[0].mxu0
        %2432 = vdwg.mxu0
        %2434 = vrot.lane.b32.xlu0 %v2428, 120
        %v2435 = vpop.permute.xlu0 %2434
        %2436 = vrot.lane.b32.xlu0 %v2428, 112
        %v2437 = vpop.permute.xlu0 %2436
        %2438 = vrot.lane.b32.xlu0 %v2428, 104
        %v2439 = vpop.permute.xlu0 %2438
        %2440 = vrot.lane.b32.xlu0 %v2428, 96
        %v2441 = vpop.permute.xlu0 %2440
        %2442 = vrot.lane.b32.xlu0 %v2435, 96
        %v2443 = vpop.permute.xlu0 %2442
        %2444 = vrot.lane.b32.xlu0 %v2437, 96
        %v2445 = vpop.permute.xlu0 %2444
        %2446 = vrot.lane.b32.xlu0 %v2439, 96
        %v2447 = vpop.permute.xlu0 %2446
        %2452 = vxpose.xlu0.b32.start [1/16] %v2441, 128
        %2453 = vxpose.xlu0.b32.cont [2/16] 0.0, 128
        %2454 = vxpose.xlu0.b32.cont [3/16] 0.0, 128
        %2455 = vxpose.xlu0.b32.cont [4/16] 0.0, 128
        %2456 = vxpose.xlu0.b32.cont [5/16] 0.0, 128
        %2457 = vxpose.xlu0.b32.cont [6/16] 0.0, 128
        %2458 = vxpose.xlu0.b32.cont [7/16] 0.0, 128
        %2459 = vxpose.xlu0.b32.cont [8/16] 0.0, 128
        %2460 = vxpose.xlu0.b32.cont [9/16] 0.0, 128
        %2461 = vxpose.xlu0.b32.cont [10/16] 0.0, 128
        %2462 = vxpose.xlu0.b32.cont [11/16] 0.0, 128
        %2463 = vxpose.xlu0.b32.cont [12/16] 0.0, 128
        %2464 = vxpose.xlu0.b32.cont [13/16] 0.0, 128
        %2465 = vxpose.xlu0.b32.cont [14/16] 0.0, 128
        %2466 = vxpose.xlu0.b32.cont [15/16] 0.0, 128
        %2467 = vxpose.xlu0.b32.end [16/16] 0.0, 128
        %v2468 = vpop.trf.xlu0
        %v2469 = vpop.trf.xlu0
        %v2470 = vpop.trf.xlu0
        %v2471 = vpop.trf.xlu0
        %v2472 = vpop.trf.xlu0
        %v2473 = vpop.trf.xlu0
        %v2474 = vpop.trf.xlu0
        %v2475 = vpop.trf.xlu0
        %v2476 = vpop.trf.xlu0
        %v2477 = vpop.trf.xlu0
        %v2478 = vpop.trf.xlu0
        %v2479 = vpop.trf.xlu0
        %v2480 = vpop.trf.xlu0
        %v2481 = vpop.trf.xlu0
        %v2482 = vpop.trf.xlu0
        %v2483 = vpop.trf.xlu0
        %2484 = vxpose.xlu0.b32.start [1/16] %v2443, 128
        %2485 = vxpose.xlu0.b32.cont [2/16] 0.0, 128
        %2486 = vxpose.xlu0.b32.cont [3/16] 0.0, 128
        %2487 = vxpose.xlu0.b32.cont [4/16] 0.0, 128
        %2488 = vxpose.xlu0.b32.cont [5/16] 0.0, 128
        %2489 = vxpose.xlu0.b32.cont [6/16] 0.0, 128
        %2490 = vxpose.xlu0.b32.cont [7/16] 0.0, 128
        %2491 = vxpose.xlu0.b32.cont [8/16] 0.0, 128
        %2492 = vxpose.xlu0.b32.cont [9/16] 0.0, 128
        %2493 = vxpose.xlu0.b32.cont [10/16] 0.0, 128
        %2494 = vxpose.xlu0.b32.cont [11/16] 0.0, 128
        %2495 = vxpose.xlu0.b32.cont [12/16] 0.0, 128
        %2496 = vxpose.xlu0.b32.cont [13/16] 0.0, 128
        %2497 = vxpose.xlu0.b32.cont [14/16] 0.0, 128
        %2498 = vxpose.xlu0.b32.cont [15/16] 0.0, 128
        %2499 = vxpose.xlu0.b32.end [16/16] 0.0, 128
        %v2500 = vpop.trf.xlu0
        %v2501 = vpop.trf.xlu0
        %v2502 = vpop.trf.xlu0
        %v2503 = vpop.trf.xlu0
        %v2504 = vpop.trf.xlu0
        %v2505 = vpop.trf.xlu0
        %v2506 = vpop.trf.xlu0
        %v2507 = vpop.trf.xlu0
        %v2508 = vpop.trf.xlu0
        %v2509 = vpop.trf.xlu0
        %v2510 = vpop.trf.xlu0
        %v2511 = vpop.trf.xlu0
        %v2512 = vpop.trf.xlu0
        %v2513 = vpop.trf.xlu0
        %v2514 = vpop.trf.xlu0
        %v2515 = vpop.trf.xlu0
        %2516 = vxpose.xlu0.b32.start [1/16] %v2445, 128
        %2517 = vxpose.xlu0.b32.cont [2/16] 0.0, 128
        %2518 = vxpose.xlu0.b32.cont [3/16] 0.0, 128
        %2519 = vxpose.xlu0.b32.cont [4/16] 0.0, 128
        %2520 = vxpose.xlu0.b32.cont [5/16] 0.0, 128
        %2521 = vxpose.xlu0.b32.cont [6/16] 0.0, 128
        %2522 = vxpose.xlu0.b32.cont [7/16] 0.0, 128
        %2523 = vxpose.xlu0.b32.cont [8/16] 0.0, 128
        %2524 = vxpose.xlu0.b32.cont [9/16] 0.0, 128
        %2525 = vxpose.xlu0.b32.cont [10/16] 0.0, 128
        %2526 = vxpose.xlu0.b32.cont [11/16] 0.0, 128
        %2527 = vxpose.xlu0.b32.cont [12/16] 0.0, 128
        %2528 = vxpose.xlu0.b32.cont [13/16] 0.0, 128
        %2529 = vxpose.xlu0.b32.cont [14/16] 0.0, 128
        %2530 = vxpose.xlu0.b32.cont [15/16] 0.0, 128
        %2531 = vxpose.xlu0.b32.end [16/16] 0.0, 128
        %v2532 = vpop.trf.xlu0
        %v2533 = vpop.trf.xlu0
        %v2534 = vpop.trf.xlu0
        %v2535 = vpop.trf.xlu0
        %v2536 = vpop.trf.xlu0
        %v2537 = vpop.trf.xlu0
        %v2538 = vpop.trf.xlu0
        %v2539 = vpop.trf.xlu0
        %v2540 = vpop.trf.xlu0
        %v2541 = vpop.trf.xlu0
        %v2542 = vpop.trf.xlu0
        %v2543 = vpop.trf.xlu0
        %v2544 = vpop.trf.xlu0
        %v2545 = vpop.trf.xlu0
        %v2546 = vpop.trf.xlu0
        %v2547 = vpop.trf.xlu0
        %2548 = vxpose.xlu0.b32.start [1/16] %v2447, 128
        %2549 = vxpose.xlu0.b32.cont [2/16] 0.0, 128
        %2550 = vxpose.xlu0.b32.cont [3/16] 0.0, 128
        %2551 = vxpose.xlu0.b32.cont [4/16] 0.0, 128
        %2552 = vxpose.xlu0.b32.cont [5/16] 0.0, 128
        %2553 = vxpose.xlu0.b32.cont [6/16] 0.0, 128
        %2554 = vxpose.xlu0.b32.cont [7/16] 0.0, 128
        %2555 = vxpose.xlu0.b32.cont [8/16] 0.0, 128
        %2556 = vxpose.xlu0.b32.cont [9/16] 0.0, 128
        %2557 = vxpose.xlu0.b32.cont [10/16] 0.0, 128
        %2558 = vxpose.xlu0.b32.cont [11/16] 0.0, 128
        %2559 = vxpose.xlu0.b32.cont [12/16] 0.0, 128
        %2560 = vxpose.xlu0.b32.cont [13/16] 0.0, 128
        %2561 = vxpose.xlu0.b32.cont [14/16] 0.0, 128
        %2562 = vxpose.xlu0.b32.cont [15/16] 0.0, 128
        %2563 = vxpose.xlu0.b32.end [16/16] 0.0, 128
        %v2564 = vpop.trf.xlu0
        %v2565 = vpop.trf.xlu0
        %v2566 = vpop.trf.xlu0
        %v2567 = vpop.trf.xlu0
        %v2568 = vpop.trf.xlu0
        %v2569 = vpop.trf.xlu0
        %v2570 = vpop.trf.xlu0
        %v2571 = vpop.trf.xlu0
        %v2572 = vpop.trf.xlu0
        %v2573 = vpop.trf.xlu0
        %v2574 = vpop.trf.xlu0
        %v2575 = vpop.trf.xlu0
        %v2576 = vpop.trf.xlu0
        %v2577 = vpop.trf.xlu0
        %v2578 = vpop.trf.xlu0
        %v2579 = vpop.trf.xlu0
        %v2580 = vsel %vm994, %v2428, 0
        %2582 = vmatprep.subr.mxu0 0.0
        %2583 = vmatpush1.msra.mxu0 %v2468
        %2584 = vmatprep.subr.mxu0 0.0
        %2585 = vmatpush1.msra.mxu0 0.0
        %2586 = vmatprep.subr.mxu0 0.0
        %2587 = vmatpush1.msra.mxu0 0.0
        %2588 = vmatprep.subr.mxu0 0.0
        %2589 = vmatpush1.msra.mxu0 0.0
        %2590 = vmatprep.subr.mxu0 0.0
        %2591 = vmatpush1.msra.mxu0 0.0
        %2592 = vmatprep.subr.mxu0 0.0
        %2593 = vmatpush1.msra.mxu0 0.0
        %2594 = vmatprep.subr.mxu0 0.0
        %2595 = vmatpush1.msra.mxu0 0.0
        %2596 = vmatprep.subr.mxu0 0.0
        %2597 = vmatpush1.msra.mxu0 0.0
        %2598 = vmatprep.subr.mxu0 0.0
        %2599 = vmatpush1.msra.mxu0 0.0
        %2600 = vmatprep.subr.mxu0 0.0
        %2601 = vmatpush1.msra.mxu0 0.0
        %2602 = vmatprep.subr.mxu0 0.0
        %2603 = vmatpush1.msra.mxu0 0.0
        %2604 = vmatprep.subr.mxu0 0.0
        %2605 = vmatpush1.msra.mxu0 0.0
        %2606 = vmatprep.subr.mxu0 0.0
        %2607 = vmatpush1.msra.mxu0 0.0
        %2608 = vmatprep.subr.mxu0 0.0
        %2609 = vmatpush1.msra.mxu0 0.0
        %2610 = vmatprep.subr.mxu0 0.0
        %2611 = vmatpush1.msra.mxu0 0.0
        %2612 = vmatprep.subr.mxu0 0.0
        %2613 = vmatpush1.msra.mxu0 0.0
        %2614 = vmatprep.subr.mxu0 0.0
        %2615 = vmatpush1.msra.mxu0 0.0
        %2616 = vmatprep.subr.mxu0 0.0
        %2617 = vmatpush1.msra.mxu0 0.0
        %2618 = vmatprep.subr.mxu0 0.0
        %2619 = vmatpush1.msra.mxu0 0.0
        %2620 = vmatprep.subr.mxu0 0.0
        %2621 = vmatpush1.msra.mxu0 0.0
        %2622 = vmatprep.subr.mxu0 0.0
        %2623 = vmatpush1.msra.mxu0 0.0
        %2624 = vmatprep.subr.mxu0 0.0
        %2625 = vmatpush1.msra.mxu0 0.0
        %2626 = vmatprep.subr.mxu0 0.0
        %2627 = vmatpush1.msra.mxu0 0.0
        %2628 = vmatprep.subr.mxu0 0.0
        %2629 = vmatpush1.msra.mxu0 0.0
        %2630 = vmatprep.subr.mxu0 0.0
        %2631 = vmatpush1.msra.mxu0 0.0
        %2632 = vmatprep.subr.mxu0 0.0
        %2633 = vmatpush1.msra.mxu0 0.0
        %2634 = vmatprep.subr.mxu0 0.0
        %2635 = vmatpush1.msra.mxu0 0.0
        %2636 = vmatprep.subr.mxu0 0.0
        %2637 = vmatpush1.msra.mxu0 0.0
        %2638 = vmatprep.subr.mxu0 0.0
        %2639 = vmatpush1.msra.mxu0 0.0
        %2640 = vmatprep.subr.mxu0 0.0
        %2641 = vmatpush1.msra.mxu0 0.0
        %2642 = vmatprep.subr.mxu0 0.0
        %2643 = vmatpush1.msra.mxu0 0.0
        %2644 = vmatprep.subr.mxu0 0.0
        %2645 = vmatpush1.msra.mxu0 0.0
        %2646 = vmatprep.mubr.f32.mxu0 0.0
        %2647 = vmatmul.mubr.f32.gmra.mrb[0].mxu0 %v2580
        %v2648 = vpop.f32.mrb[0].mxu0
        %v2649 = vadd.f32 0.0, %v2648
        %v2650 = vpop.f32.mrb[0].mxu0
        %2651 = vdwg.mxu0
        %v2652 = vsel %vm994, %v2435, 0
        %2654 = vmatprep.subr.mxu0 0.0
        %2655 = vmatpush1.msra.mxu0 %v2500
        %2656 = vmatprep.subr.mxu0 0.0
        %2657 = vmatpush1.msra.mxu0 0.0
        %2658 = vmatprep.subr.mxu0 0.0
        %2659 = vmatpush1.msra.mxu0 0.0
        %2660 = vmatprep.subr.mxu0 0.0
        %2661 = vmatpush1.msra.mxu0 0.0
        %2662 = vmatprep.subr.mxu0 0.0
        %2663 = vmatpush1.msra.mxu0 0.0
        %2664 = vmatprep.subr.mxu0 0.0
        %2665 = vmatpush1.msra.mxu0 0.0
        %2666 = vmatprep.subr.mxu0 0.0
        %2667 = vmatpush1.msra.mxu0 0.0
        %2668 = vmatprep.subr.mxu0 0.0
        %2669 = vmatpush1.msra.mxu0 0.0
        %2670 = vmatprep.subr.mxu0 0.0
        %2671 = vmatpush1.msra.mxu0 0.0
        %2672 = vmatprep.subr.mxu0 0.0
        %2673 = vmatpush1.msra.mxu0 0.0
        %2674 = vmatprep.subr.mxu0 0.0
        %2675 = vmatpush1.msra.mxu0 0.0
        %2676 = vmatprep.subr.mxu0 0.0
        %2677 = vmatpush1.msra.mxu0 0.0
        %2678 = vmatprep.subr.mxu0 0.0
        %2679 = vmatpush1.msra.mxu0 0.0
        %2680 = vmatprep.subr.mxu0 0.0
        %2681 = vmatpush1.msra.mxu0 0.0
        %2682 = vmatprep.subr.mxu0 0.0
        %2683 = vmatpush1.msra.mxu0 0.0
        %2684 = vmatprep.subr.mxu0 0.0
        %2685 = vmatpush1.msra.mxu0 0.0
        %2686 = vmatprep.subr.mxu0 0.0
        %2687 = vmatpush1.msra.mxu0 0.0
        %2688 = vmatprep.subr.mxu0 0.0
        %2689 = vmatpush1.msra.mxu0 0.0
        %2690 = vmatprep.subr.mxu0 0.0
        %2691 = vmatpush1.msra.mxu0 0.0
        %2692 = vmatprep.subr.mxu0 0.0
        %2693 = vmatpush1.msra.mxu0 0.0
        %2694 = vmatprep.subr.mxu0 0.0
        %2695 = vmatpush1.msra.mxu0 0.0
        %2696 = vmatprep.subr.mxu0 0.0
        %2697 = vmatpush1.msra.mxu0 0.0
        %2698 = vmatprep.subr.mxu0 0.0
        %2699 = vmatpush1.msra.mxu0 0.0
        %2700 = vmatprep.subr.mxu0 0.0
        %2701 = vmatpush1.msra.mxu0 0.0
        %2702 = vmatprep.subr.mxu0 0.0
        %2703 = vmatpush1.msra.mxu0 0.0
        %2704 = vmatprep.subr.mxu0 0.0
        %2705 = vmatpush1.msra.mxu0 0.0
        %2706 = vmatprep.subr.mxu0 0.0
        %2707 = vmatpush1.msra.mxu0 0.0
        %2708 = vmatprep.subr.mxu0 0.0
        %2709 = vmatpush1.msra.mxu0 0.0
        %2710 = vmatprep.subr.mxu0 0.0
        %2711 = vmatpush1.msra.mxu0 0.0
        %2712 = vmatprep.subr.mxu0 0.0
        %2713 = vmatpush1.msra.mxu0 0.0
        %2714 = vmatprep.subr.mxu0 0.0
        %2715 = vmatpush1.msra.mxu0 0.0
        %2716 = vmatprep.subr.mxu0 0.0
        %2717 = vmatpush1.msra.mxu0 0.0
        %2718 = vmatprep.mubr.f32.mxu0 0.0
        %2719 = vmatmul.mubr.f32.gmra.mrb[0].mxu0 %v2652
        %v2720 = vpop.f32.mrb[0].mxu0
        %v2721 = vadd.f32 0.0, %v2720
        %v2722 = vpop.f32.mrb[0].mxu0
        %2723 = vdwg.mxu0
        %v2724 = vsel %vm994, %v2437, 0
        %2726 = vmatprep.subr.mxu0 0.0
        %2727 = vmatpush1.msra.mxu0 %v2532
        %2728 = vmatprep.subr.mxu0 0.0
        %2729 = vmatpush1.msra.mxu0 0.0
        %2730 = vmatprep.subr.mxu0 0.0
        %2731 = vmatpush1.msra.mxu0 0.0
        %2732 = vmatprep.subr.mxu0 0.0
        %2733 = vmatpush1.msra.mxu0 0.0
        %2734 = vmatprep.subr.mxu0 0.0
        %2735 = vmatpush1.msra.mxu0 0.0
        %2736 = vmatprep.subr.mxu0 0.0
        %2737 = vmatpush1.msra.mxu0 0.0
        %2738 = vmatprep.subr.mxu0 0.0
        %2739 = vmatpush1.msra.mxu0 0.0
        %2740 = vmatprep.subr.mxu0 0.0
        %2741 = vmatpush1.msra.mxu0 0.0
        %2742 = vmatprep.subr.mxu0 0.0
        %2743 = vmatpush1.msra.mxu0 0.0
        %2744 = vmatprep.subr.mxu0 0.0
        %2745 = vmatpush1.msra.mxu0 0.0
        %2746 = vmatprep.subr.mxu0 0.0
        %2747 = vmatpush1.msra.mxu0 0.0
        %2748 = vmatprep.subr.mxu0 0.0
        %2749 = vmatpush1.msra.mxu0 0.0
        %2750 = vmatprep.subr.mxu0 0.0
        %2751 = vmatpush1.msra.mxu0 0.0
        %2752 = vmatprep.subr.mxu0 0.0
        %2753 = vmatpush1.msra.mxu0 0.0
        %2754 = vmatprep.subr.mxu0 0.0
        %2755 = vmatpush1.msra.mxu0 0.0
        %2756 = vmatprep.subr.mxu0 0.0
        %2757 = vmatpush1.msra.mxu0 0.0
        %2758 = vmatprep.subr.mxu0 0.0
        %2759 = vmatpush1.msra.mxu0 0.0
        %2760 = vmatprep.subr.mxu0 0.0
        %2761 = vmatpush1.msra.mxu0 0.0
        %2762 = vmatprep.subr.mxu0 0.0
        %2763 = vmatpush1.msra.mxu0 0.0
        %2764 = vmatprep.subr.mxu0 0.0
        %2765 = vmatpush1.msra.mxu0 0.0
        %2766 = vmatprep.subr.mxu0 0.0
        %2767 = vmatpush1.msra.mxu0 0.0
        %2768 = vmatprep.subr.mxu0 0.0
        %2769 = vmatpush1.msra.mxu0 0.0
        %2770 = vmatprep.subr.mxu0 0.0
        %2771 = vmatpush1.msra.mxu0 0.0
        %2772 = vmatprep.subr.mxu0 0.0
        %2773 = vmatpush1.msra.mxu0 0.0
        %2774 = vmatprep.subr.mxu0 0.0
        %2775 = vmatpush1.msra.mxu0 0.0
        %2776 = vmatprep.subr.mxu0 0.0
        %2777 = vmatpush1.msra.mxu0 0.0
        %2778 = vmatprep.subr.mxu0 0.0
        %2779 = vmatpush1.msra.mxu0 0.0
        %2780 = vmatprep.subr.mxu0 0.0
        %2781 = vmatpush1.msra.mxu0 0.0
        %2782 = vmatprep.subr.mxu0 0.0
        %2783 = vmatpush1.msra.mxu0 0.0
        %2784 = vmatprep.subr.mxu0 0.0
        %2785 = vmatpush1.msra.mxu0 0.0
        %2786 = vmatprep.subr.mxu0 0.0
        %2787 = vmatpush1.msra.mxu0 0.0
        %2788 = vmatprep.subr.mxu0 0.0
        %2789 = vmatpush1.msra.mxu0 0.0
        %2790 = vmatprep.mubr.f32.mxu0 0.0
        %2791 = vmatmul.mubr.f32.gmra.mrb[0].mxu0 %v2724
        %v2792 = vpop.f32.mrb[0].mxu0
        %v2793 = vadd.f32 0.0, %v2792
        %v2794 = vpop.f32.mrb[0].mxu0
        %2795 = vdwg.mxu0
        %v2796 = vsel %vm994, %v2439, 0
        %2798 = vmatprep.subr.mxu0 0.0
        %2799 = vmatpush1.msra.mxu0 %v2564
        %2800 = vmatprep.subr.mxu0 0.0
        %2801 = vmatpush1.msra.mxu0 0.0
        %2802 = vmatprep.subr.mxu0 0.0
        %2803 = vmatpush1.msra.mxu0 0.0
        %2804 = vmatprep.subr.mxu0 0.0
        %2805 = vmatpush1.msra.mxu0 0.0
        %2806 = vmatprep.subr.mxu0 0.0
        %2807 = vmatpush1.msra.mxu0 0.0
        %2808 = vmatprep.subr.mxu0 0.0
        %2809 = vmatpush1.msra.mxu0 0.0
        %2810 = vmatprep.subr.mxu0 0.0
        %2811 = vmatpush1.msra.mxu0 0.0
        %2812 = vmatprep.subr.mxu0 0.0
        %2813 = vmatpush1.msra.mxu0 0.0
        %2814 = vmatprep.subr.mxu0 0.0
        %2815 = vmatpush1.msra.mxu0 0.0
        %2816 = vmatprep.subr.mxu0 0.0
        %2817 = vmatpush1.msra.mxu0 0.0
        %2818 = vmatprep.subr.mxu0 0.0
        %2819 = vmatpush1.msra.mxu0 0.0
        %2820 = vmatprep.subr.mxu0 0.0
        %2821 = vmatpush1.msra.mxu0 0.0
        %2822 = vmatprep.subr.mxu0 0.0
        %2823 = vmatpush1.msra.mxu0 0.0
        %2824 = vmatprep.subr.mxu0 0.0
        %2825 = vmatpush1.msra.mxu0 0.0
        %2826 = vmatprep.subr.mxu0 0.0
        %2827 = vmatpush1.msra.mxu0 0.0
        %2828 = vmatprep.subr.mxu0 0.0
        %2829 = vmatpush1.msra.mxu0 0.0
        %2830 = vmatprep.subr.mxu0 0.0
        %2831 = vmatpush1.msra.mxu0 0.0
        %2832 = vmatprep.subr.mxu0 0.0
        %2833 = vmatpush1.msra.mxu0 0.0
        %2834 = vmatprep.subr.mxu0 0.0
        %2835 = vmatpush1.msra.mxu0 0.0
        %2836 = vmatprep.subr.mxu0 0.0
        %2837 = vmatpush1.msra.mxu0 0.0
        %2838 = vmatprep.subr.mxu0 0.0
        %2839 = vmatpush1.msra.mxu0 0.0
        %2840 = vmatprep.subr.mxu0 0.0
        %2841 = vmatpush1.msra.mxu0 0.0
        %2842 = vmatprep.subr.mxu0 0.0
        %2843 = vmatpush1.msra.mxu0 0.0
        %2844 = vmatprep.subr.mxu0 0.0
        %2845 = vmatpush1.msra.mxu0 0.0
        %2846 = vmatprep.subr.mxu0 0.0
        %2847 = vmatpush1.msra.mxu0 0.0
        %2848 = vmatprep.subr.mxu0 0.0
        %2849 = vmatpush1.msra.mxu0 0.0
        %2850 = vmatprep.subr.mxu0 0.0
        %2851 = vmatpush1.msra.mxu0 0.0
        %2852 = vmatprep.subr.mxu0 0.0
        %2853 = vmatpush1.msra.mxu0 0.0
        %2854 = vmatprep.subr.mxu0 0.0
        %2855 = vmatpush1.msra.mxu0 0.0
        %2856 = vmatprep.subr.mxu0 0.0
        %2857 = vmatpush1.msra.mxu0 0.0
        %2858 = vmatprep.subr.mxu0 0.0
        %2859 = vmatpush1.msra.mxu0 0.0
        %2860 = vmatprep.subr.mxu0 0.0
        %2861 = vmatpush1.msra.mxu0 0.0
        %2862 = vmatprep.mubr.f32.mxu0 0.0
        %2863 = vmatmul.mubr.f32.gmra.mrb[0].mxu0 %v2796
        %v2864 = vpop.f32.mrb[0].mxu0
        %v2865 = vadd.f32 0.0, %v2864
        %v2866 = vpop.f32.mrb[0].mxu0
        %2867 = vdwg.mxu0
        %v2868 = vmul.f32 %v2649, 0.35355338
        %v2869 = vmul.f32 %v2721, 0.35355338
        %v2870 = vmul.f32 %v2793, 0.35355338
        %v2871 = vmul.f32 %v2865, 0.35355338
        %v2872 = vsel %vm1288, %v2868, -inf
        %v2873 = vsel %vm1288, %v2869, -inf
        %v2874 = vsel %vm1288, %v2870, -inf
        %v2875 = vsel %vm1288, %v2871, -inf
        %v2876 = vsel %vm994, %v2872, -inf
        %2877 = vmax.xlane.f32.xlu0 %v2876
        %v2878 = vpop.xlane.xlu0 %2877
        %v2879 = vsel %vm994, %v2873, -inf
        %2880 = vmax.xlane.f32.xlu0 %v2879
        %v2881 = vpop.xlane.xlu0 %2880
        %v2882 = vsel %vm994, %v2874, -inf
        %2883 = vmax.xlane.f32.xlu0 %v2882
        %v2884 = vpop.xlane.xlu0 %2883
        %v2885 = vsel %vm994, %v2875, -inf
        %2886 = vmax.xlane.f32.xlu0 %v2885
        %v2887 = vpop.xlane.xlu0 %2886
        %v2888 = vsub.f32 %v2872, %v2878
        %v2889 = vsub.f32 %v2873, %v2881
        %v2890 = vsub.f32 %v2874, %v2884
        %v2891 = vsub.f32 %v2875, %v2887
        %v2892 = vmul.f32 %v2888, 1.442695
        %v2893 = vpow.pop %v2892
        %v2894 = vmul.f32 %v2889, 1.442695
        %v2895 = vpow.pop %v2894
        %v2896 = vmul.f32 %v2890, 1.442695
        %v2897 = vpow.pop %v2896
        %v2898 = vmul.f32 %v2891, 1.442695
        %v2899 = vpow.pop %v2898
        %v2900 = vsel %vm994, %v2893, 0.0
        %2901 = vadd.xlane.f32.xlu0 %v2900
        %v2902 = vpop.xlane.xlu0 %2901
        %v2903 = vsel %vm994, %v2895, 0.0
        %2904 = vadd.xlane.f32.xlu0 %v2903
        %v2905 = vpop.xlane.xlu0 %2904
        %v2906 = vsel %vm994, %v2897, 0.0
        %2907 = vadd.xlane.f32.xlu0 %v2906
        %v2908 = vpop.xlane.xlu0 %2907
        %v2909 = vsel %vm994, %v2899, 0.0
        %2910 = vadd.xlane.f32.xlu0 %v2909
        %v2911 = vpop.xlane.xlu0 %2910
        %v2912 = vrcp.pop %v2902
        %v2913 = vmul.f32 %v2893, %v2912
        %v2914 = vrcp.pop %v2905
        %v2915 = vmul.f32 %v2895, %v2914
        %v2916 = vrcp.pop %v2908
        %v2917 = vmul.f32 %v2897, %v2916
        %v2918 = vrcp.pop %v2911
        %v2919 = vmul.f32 %v2899, %v2918
        %2920 = vrot.lane.b32.xlu0 %v2428, 64
        %v2921 = vpop.permute.xlu0 %2920
        %2922 = vrot.lane.b32.xlu0 %v2435, 64
        %v2923 = vpop.permute.xlu0 %2922
        %2924 = vrot.lane.b32.xlu0 %v2437, 64
        %v2925 = vpop.permute.xlu0 %2924
        %2926 = vrot.lane.b32.xlu0 %v2439, 64
        %v2927 = vpop.permute.xlu0 %2926
        %2932 = vxpose.xlu0.b32.start [1/16] %v2921, 128
        %2933 = vxpose.xlu0.b32.cont [2/16] 0.0, 128
        %2934 = vxpose.xlu0.b32.cont [3/16] 0.0, 128
        %2935 = vxpose.xlu0.b32.cont [4/16] 0.0, 128
        %2936 = vxpose.xlu0.b32.cont [5/16] 0.0, 128
        %2937 = vxpose.xlu0.b32.cont [6/16] 0.0, 128
        %2938 = vxpose.xlu0.b32.cont [7/16] 0.0, 128
        %2939 = vxpose.xlu0.b32.cont [8/16] 0.0, 128
        %2940 = vxpose.xlu0.b32.cont [9/16] 0.0, 128
        %2941 = vxpose.xlu0.b32.cont [10/16] 0.0, 128
        %2942 = vxpose.xlu0.b32.cont [11/16] 0.0, 128
        %2943 = vxpose.xlu0.b32.cont [12/16] 0.0, 128
        %2944 = vxpose.xlu0.b32.cont [13/16] 0.0, 128
        %2945 = vxpose.xlu0.b32.cont [14/16] 0.0, 128
        %2946 = vxpose.xlu0.b32.cont [15/16] 0.0, 128
        %2947 = vxpose.xlu0.b32.end [16/16] 0.0, 128
        %v2948 = vpop.trf.xlu0
        %v2949 = vpop.trf.xlu0
        %v2950 = vpop.trf.xlu0
        %v2951 = vpop.trf.xlu0
        %v2952 = vpop.trf.xlu0
        %v2953 = vpop.trf.xlu0
        %v2954 = vpop.trf.xlu0
        %v2955 = vpop.trf.xlu0
        %v2956 = vpop.trf.xlu0
        %v2957 = vpop.trf.xlu0
        %v2958 = vpop.trf.xlu0
        %v2959 = vpop.trf.xlu0
        %v2960 = vpop.trf.xlu0
        %v2961 = vpop.trf.xlu0
        %v2962 = vpop.trf.xlu0
        %v2963 = vpop.trf.xlu0
        %2964 = vxpose.xlu0.b32.start [1/16] %v2923, 128
        %2965 = vxpose.xlu0.b32.cont [2/16] 0.0, 128
        %2966 = vxpose.xlu0.b32.cont [3/16] 0.0, 128
        %2967 = vxpose.xlu0.b32.cont [4/16] 0.0, 128
        %2968 = vxpose.xlu0.b32.cont [5/16] 0.0, 128
        %2969 = vxpose.xlu0.b32.cont [6/16] 0.0, 128
        %2970 = vxpose.xlu0.b32.cont [7/16] 0.0, 128
        %2971 = vxpose.xlu0.b32.cont [8/16] 0.0, 128
        %2972 = vxpose.xlu0.b32.cont [9/16] 0.0, 128
        %2973 = vxpose.xlu0.b32.cont [10/16] 0.0, 128
        %2974 = vxpose.xlu0.b32.cont [11/16] 0.0, 128
        %2975 = vxpose.xlu0.b32.cont [12/16] 0.0, 128
        %2976 = vxpose.xlu0.b32.cont [13/16] 0.0, 128
        %2977 = vxpose.xlu0.b32.cont [14/16] 0.0, 128
        %2978 = vxpose.xlu0.b32.cont [15/16] 0.0, 128
        %2979 = vxpose.xlu0.b32.end [16/16] 0.0, 128
        %v2980 = vpop.trf.xlu0
        %v2981 = vpop.trf.xlu0
        %v2982 = vpop.trf.xlu0
        %v2983 = vpop.trf.xlu0
        %v2984 = vpop.trf.xlu0
        %v2985 = vpop.trf.xlu0
        %v2986 = vpop.trf.xlu0
        %v2987 = vpop.trf.xlu0
        %v2988 = vpop.trf.xlu0
        %v2989 = vpop.trf.xlu0
        %v2990 = vpop.trf.xlu0
        %v2991 = vpop.trf.xlu0
        %v2992 = vpop.trf.xlu0
        %v2993 = vpop.trf.xlu0
        %v2994 = vpop.trf.xlu0
        %v2995 = vpop.trf.xlu0
        %2996 = vxpose.xlu0.b32.start [1/16] %v2925, 128
        %2997 = vxpose.xlu0.b32.cont [2/16] 0.0, 128
        %2998 = vxpose.xlu0.b32.cont [3/16] 0.0, 128
        %2999 = vxpose.xlu0.b32.cont [4/16] 0.0, 128
        %3000 = vxpose.xlu0.b32.cont [5/16] 0.0, 128
        %3001 = vxpose.xlu0.b32.cont [6/16] 0.0, 128
        %3002 = vxpose.xlu0.b32.cont [7/16] 0.0, 128
        %3003 = vxpose.xlu0.b32.cont [8/16] 0.0, 128
        %3004 = vxpose.xlu0.b32.cont [9/16] 0.0, 128
        %3005 = vxpose.xlu0.b32.cont [10/16] 0.0, 128
        %3006 = vxpose.xlu0.b32.cont [11/16] 0.0, 128
        %3007 = vxpose.xlu0.b32.cont [12/16] 0.0, 128
        %3008 = vxpose.xlu0.b32.cont [13/16] 0.0, 128
        %3009 = vxpose.xlu0.b32.cont [14/16] 0.0, 128
        %3010 = vxpose.xlu0.b32.cont [15/16] 0.0, 128
        %3011 = vxpose.xlu0.b32.end [16/16] 0.0, 128
        %v3012 = vpop.trf.xlu0
        %v3013 = vpop.trf.xlu0
        %v3014 = vpop.trf.xlu0
        %v3015 = vpop.trf.xlu0
        %v3016 = vpop.trf.xlu0
        %v3017 = vpop.trf.xlu0
        %v3018 = vpop.trf.xlu0
        %v3019 = vpop.trf.xlu0
        %v3020 = vpop.trf.xlu0
        %v3021 = vpop.trf.xlu0
        %v3022 = vpop.trf.xlu0
        %v3023 = vpop.trf.xlu0
        %v3024 = vpop.trf.xlu0
        %v3025 = vpop.trf.xlu0
        %v3026 = vpop.trf.xlu0
        %v3027 = vpop.trf.xlu0
        %3028 = vxpose.xlu0.b32.start [1/16] %v2927, 128
        %3029 = vxpose.xlu0.b32.cont [2/16] 0.0, 128
        %3030 = vxpose.xlu0.b32.cont [3/16] 0.0, 128
        %3031 = vxpose.xlu0.b32.cont [4/16] 0.0, 128
        %3032 = vxpose.xlu0.b32.cont [5/16] 0.0, 128
        %3033 = vxpose.xlu0.b32.cont [6/16] 0.0, 128
        %3034 = vxpose.xlu0.b32.cont [7/16] 0.0, 128
        %3035 = vxpose.xlu0.b32.cont [8/16] 0.0, 128
        %3036 = vxpose.xlu0.b32.cont [9/16] 0.0, 128
        %3037 = vxpose.xlu0.b32.cont [10/16] 0.0, 128
        %3038 = vxpose.xlu0.b32.cont [11/16] 0.0, 128
        %3039 = vxpose.xlu0.b32.cont [12/16] 0.0, 128
        %3040 = vxpose.xlu0.b32.cont [13/16] 0.0, 128
        %3041 = vxpose.xlu0.b32.cont [14/16] 0.0, 128
        %3042 = vxpose.xlu0.b32.cont [15/16] 0.0, 128
        %3043 = vxpose.xlu0.b32.end [16/16] 0.0, 128
        %v3044 = vpop.trf.xlu0
        %v3045 = vpop.trf.xlu0
        %v3046 = vpop.trf.xlu0
        %v3047 = vpop.trf.xlu0
        %v3048 = vpop.trf.xlu0
        %v3049 = vpop.trf.xlu0
        %v3050 = vpop.trf.xlu0
        %v3051 = vpop.trf.xlu0
        %v3052 = vpop.trf.xlu0
        %v3053 = vpop.trf.xlu0
        %v3054 = vpop.trf.xlu0
        %v3055 = vpop.trf.xlu0
        %v3056 = vpop.trf.xlu0
        %v3057 = vpop.trf.xlu0
        %v3058 = vpop.trf.xlu0
        %v3059 = vpop.trf.xlu0
        %v3061 = vsel %vm994, %v2948, 0
        %v3064 = vsel %vm994, %v2913, 0
        %3066 = vmatprep.subr.mxu0 0.0
        %3067 = vmatpush1.xpose.msra.mxu0 %v3064
        %3068 = vmatprep.subr.mxu0 0.0
        %3069 = vmatpush1.xpose.msra.mxu0 0.0
        %3070 = vmatprep.subr.mxu0 0.0
        %3071 = vmatpush1.xpose.msra.mxu0 0.0
        %3072 = vmatprep.subr.mxu0 0.0
        %3073 = vmatpush1.xpose.msra.mxu0 0.0
        %3074 = vmatprep.subr.mxu0 0.0
        %3075 = vmatpush1.xpose.msra.mxu0 0.0
        %3076 = vmatprep.subr.mxu0 0.0
        %3077 = vmatpush1.xpose.msra.mxu0 0.0
        %3078 = vmatprep.subr.mxu0 0.0
        %3079 = vmatpush1.xpose.msra.mxu0 0.0
        %3080 = vmatprep.subr.mxu0 0.0
        %3081 = vmatpush1.xpose.msra.mxu0 0.0
        %3082 = vmatprep.subr.mxu0 0.0
        %3083 = vmatpush1.xpose.msra.mxu0 0.0
        %3084 = vmatprep.subr.mxu0 0.0
        %3085 = vmatpush1.xpose.msra.mxu0 0.0
        %3086 = vmatprep.subr.mxu0 0.0
        %3087 = vmatpush1.xpose.msra.mxu0 0.0
        %3088 = vmatprep.subr.mxu0 0.0
        %3089 = vmatpush1.xpose.msra.mxu0 0.0
        %3090 = vmatprep.subr.mxu0 0.0
        %3091 = vmatpush1.xpose.msra.mxu0 0.0
        %3092 = vmatprep.subr.mxu0 0.0
        %3093 = vmatpush1.xpose.msra.mxu0 0.0
        %3094 = vmatprep.subr.mxu0 0.0
        %3095 = vmatpush1.xpose.msra.mxu0 0.0
        %3096 = vmatprep.subr.mxu0 0.0
        %3097 = vmatpush1.xpose.msra.mxu0 0.0
        %3098 = vmatprep.subr.mxu0 0.0
        %3099 = vmatpush1.xpose.msra.mxu0 0.0
        %3100 = vmatprep.subr.mxu0 0.0
        %3101 = vmatpush1.xpose.msra.mxu0 0.0
        %3102 = vmatprep.subr.mxu0 0.0
        %3103 = vmatpush1.xpose.msra.mxu0 0.0
        %3104 = vmatprep.subr.mxu0 0.0
        %3105 = vmatpush1.xpose.msra.mxu0 0.0
        %3106 = vmatprep.subr.mxu0 0.0
        %3107 = vmatpush1.xpose.msra.mxu0 0.0
        %3108 = vmatprep.subr.mxu0 0.0
        %3109 = vmatpush1.xpose.msra.mxu0 0.0
        %3110 = vmatprep.subr.mxu0 0.0
        %3111 = vmatpush1.xpose.msra.mxu0 0.0
        %3112 = vmatprep.subr.mxu0 0.0
        %3113 = vmatpush1.xpose.msra.mxu0 0.0
        %3114 = vmatprep.subr.mxu0 0.0
        %3115 = vmatpush1.xpose.msra.mxu0 0.0
        %3116 = vmatprep.subr.mxu0 0.0
        %3117 = vmatpush1.xpose.msra.mxu0 0.0
        %3118 = vmatprep.subr.mxu0 0.0
        %3119 = vmatpush1.xpose.msra.mxu0 0.0
        %3120 = vmatprep.subr.mxu0 0.0
        %3121 = vmatpush1.xpose.msra.mxu0 0.0
        %3122 = vmatprep.subr.mxu0 0.0
        %3123 = vmatpush1.xpose.msra.mxu0 0.0
        %3124 = vmatprep.subr.mxu0 0.0
        %3125 = vmatpush1.xpose.msra.mxu0 0.0
        %3126 = vmatprep.subr.mxu0 0.0
        %3127 = vmatpush1.xpose.msra.mxu0 0.0
        %3128 = vmatprep.subr.mxu0 0.0
        %3129 = vmatpush1.xpose.msra.mxu0 0.0
        %3130 = vmatprep.mubr.f32.mxu0 0.0
        %3131 = vmatmul.mubr.f32.gmra.mrb[0].mxu0 %v3061
        %v3132 = vpop.f32.mrb[0].mxu0
        %v3133 = vadd.f32 0.0, %v3132
        %v3134 = vpop.f32.mrb[0].mxu0
        %3135 = vdwg.mxu0
        %v3137 = vsel %vm994, %v2980, 0
        %v3140 = vsel %vm994, %v2915, 0
        %3142 = vmatprep.subr.mxu0 0.0
        %3143 = vmatpush1.xpose.msra.mxu0 %v3140
        %3144 = vmatprep.subr.mxu0 0.0
        %3145 = vmatpush1.xpose.msra.mxu0 0.0
        %3146 = vmatprep.subr.mxu0 0.0
        %3147 = vmatpush1.xpose.msra.mxu0 0.0
        %3148 = vmatprep.subr.mxu0 0.0
        %3149 = vmatpush1.xpose.msra.mxu0 0.0
        %3150 = vmatprep.subr.mxu0 0.0
        %3151 = vmatpush1.xpose.msra.mxu0 0.0
        %3152 = vmatprep.subr.mxu0 0.0
        %3153 = vmatpush1.xpose.msra.mxu0 0.0
        %3154 = vmatprep.subr.mxu0 0.0
        %3155 = vmatpush1.xpose.msra.mxu0 0.0
        %3156 = vmatprep.subr.mxu0 0.0
        %3157 = vmatpush1.xpose.msra.mxu0 0.0
        %3158 = vmatprep.subr.mxu0 0.0
        %3159 = vmatpush1.xpose.msra.mxu0 0.0
        %3160 = vmatprep.subr.mxu0 0.0
        %3161 = vmatpush1.xpose.msra.mxu0 0.0
        %3162 = vmatprep.subr.mxu0 0.0
        %3163 = vmatpush1.xpose.msra.mxu0 0.0
        %3164 = vmatprep.subr.mxu0 0.0
        %3165 = vmatpush1.xpose.msra.mxu0 0.0
        %3166 = vmatprep.subr.mxu0 0.0
        %3167 = vmatpush1.xpose.msra.mxu0 0.0
        %3168 = vmatprep.subr.mxu0 0.0
        %3169 = vmatpush1.xpose.msra.mxu0 0.0
        %3170 = vmatprep.subr.mxu0 0.0
        %3171 = vmatpush1.xpose.msra.mxu0 0.0
        %3172 = vmatprep.subr.mxu0 0.0
        %3173 = vmatpush1.xpose.msra.mxu0 0.0
        %3174 = vmatprep.subr.mxu0 0.0
        %3175 = vmatpush1.xpose.msra.mxu0 0.0
        %3176 = vmatprep.subr.mxu0 0.0
        %3177 = vmatpush1.xpose.msra.mxu0 0.0
        %3178 = vmatprep.subr.mxu0 0.0
        %3179 = vmatpush1.xpose.msra.mxu0 0.0
        %3180 = vmatprep.subr.mxu0 0.0
        %3181 = vmatpush1.xpose.msra.mxu0 0.0
        %3182 = vmatprep.subr.mxu0 0.0
        %3183 = vmatpush1.xpose.msra.mxu0 0.0
        %3184 = vmatprep.subr.mxu0 0.0
        %3185 = vmatpush1.xpose.msra.mxu0 0.0
        %3186 = vmatprep.subr.mxu0 0.0
        %3187 = vmatpush1.xpose.msra.mxu0 0.0
        %3188 = vmatprep.subr.mxu0 0.0
        %3189 = vmatpush1.xpose.msra.mxu0 0.0
        %3190 = vmatprep.subr.mxu0 0.0
        %3191 = vmatpush1.xpose.msra.mxu0 0.0
        %3192 = vmatprep.subr.mxu0 0.0
        %3193 = vmatpush1.xpose.msra.mxu0 0.0
        %3194 = vmatprep.subr.mxu0 0.0
        %3195 = vmatpush1.xpose.msra.mxu0 0.0
        %3196 = vmatprep.subr.mxu0 0.0
        %3197 = vmatpush1.xpose.msra.mxu0 0.0
        %3198 = vmatprep.subr.mxu0 0.0
        %3199 = vmatpush1.xpose.msra.mxu0 0.0
        %3200 = vmatprep.subr.mxu0 0.0
        %3201 = vmatpush1.xpose.msra.mxu0 0.0
        %3202 = vmatprep.subr.mxu0 0.0
        %3203 = vmatpush1.xpose.msra.mxu0 0.0
        %3204 = vmatprep.subr.mxu0 0.0
        %3205 = vmatpush1.xpose.msra.mxu0 0.0
        %3206 = vmatprep.mubr.f32.mxu0 0.0
        %3207 = vmatmul.mubr.f32.gmra.mrb[0].mxu0 %v3137
        %v3208 = vpop.f32.mrb[0].mxu0
        %v3209 = vadd.f32 0.0, %v3208
        %v3210 = vpop.f32.mrb[0].mxu0
        %3211 = vdwg.mxu0
        %v3213 = vsel %vm994, %v3012, 0
        %v3216 = vsel %vm994, %v2917, 0
        %3218 = vmatprep.subr.mxu0 0.0
        %3219 = vmatpush1.xpose.msra.mxu0 %v3216
        %3220 = vmatprep.subr.mxu0 0.0
        %3221 = vmatpush1.xpose.msra.mxu0 0.0
        %3222 = vmatprep.subr.mxu0 0.0
        %3223 = vmatpush1.xpose.msra.mxu0 0.0
        %3224 = vmatprep.subr.mxu0 0.0
        %3225 = vmatpush1.xpose.msra.mxu0 0.0
        %3226 = vmatprep.subr.mxu0 0.0
        %3227 = vmatpush1.xpose.msra.mxu0 0.0
        %3228 = vmatprep.subr.mxu0 0.0
        %3229 = vmatpush1.xpose.msra.mxu0 0.0
        %3230 = vmatprep.subr.mxu0 0.0
        %3231 = vmatpush1.xpose.msra.mxu0 0.0
        %3232 = vmatprep.subr.mxu0 0.0
        %3233 = vmatpush1.xpose.msra.mxu0 0.0
        %3234 = vmatprep.subr.mxu0 0.0
        %3235 = vmatpush1.xpose.msra.mxu0 0.0
        %3236 = vmatprep.subr.mxu0 0.0
        %3237 = vmatpush1.xpose.msra.mxu0 0.0
        %3238 = vmatprep.subr.mxu0 0.0
        %3239 = vmatpush1.xpose.msra.mxu0 0.0
        %3240 = vmatprep.subr.mxu0 0.0
        %3241 = vmatpush1.xpose.msra.mxu0 0.0
        %3242 = vmatprep.subr.mxu0 0.0
        %3243 = vmatpush1.xpose.msra.mxu0 0.0
        %3244 = vmatprep.subr.mxu0 0.0
        %3245 = vmatpush1.xpose.msra.mxu0 0.0
        %3246 = vmatprep.subr.mxu0 0.0
        %3247 = vmatpush1.xpose.msra.mxu0 0.0
        %3248 = vmatprep.subr.mxu0 0.0
        %3249 = vmatpush1.xpose.msra.mxu0 0.0
        %3250 = vmatprep.subr.mxu0 0.0
        %3251 = vmatpush1.xpose.msra.mxu0 0.0
        %3252 = vmatprep.subr.mxu0 0.0
        %3253 = vmatpush1.xpose.msra.mxu0 0.0
        %3254 = vmatprep.subr.mxu0 0.0
        %3255 = vmatpush1.xpose.msra.mxu0 0.0
        %3256 = vmatprep.subr.mxu0 0.0
        %3257 = vmatpush1.xpose.msra.mxu0 0.0
        %3258 = vmatprep.subr.mxu0 0.0
        %3259 = vmatpush1.xpose.msra.mxu0 0.0
        %3260 = vmatprep.subr.mxu0 0.0
        %3261 = vmatpush1.xpose.msra.mxu0 0.0
        %3262 = vmatprep.subr.mxu0 0.0
        %3263 = vmatpush1.xpose.msra.mxu0 0.0
        %3264 = vmatprep.subr.mxu0 0.0
        %3265 = vmatpush1.xpose.msra.mxu0 0.0
        %3266 = vmatprep.subr.mxu0 0.0
        %3267 = vmatpush1.xpose.msra.mxu0 0.0
        %3268 = vmatprep.subr.mxu0 0.0
        %3269 = vmatpush1.xpose.msra.mxu0 0.0
        %3270 = vmatprep.subr.mxu0 0.0
        %3271 = vmatpush1.xpose.msra.mxu0 0.0
        %3272 = vmatprep.subr.mxu0 0.0
        %3273 = vmatpush1.xpose.msra.mxu0 0.0
        %3274 = vmatprep.subr.mxu0 0.0
        %3275 = vmatpush1.xpose.msra.mxu0 0.0
        %3276 = vmatprep.subr.mxu0 0.0
        %3277 = vmatpush1.xpose.msra.mxu0 0.0
        %3278 = vmatprep.subr.mxu0 0.0
        %3279 = vmatpush1.xpose.msra.mxu0 0.0
        %3280 = vmatprep.subr.mxu0 0.0
        %3281 = vmatpush1.xpose.msra.mxu0 0.0
        %3282 = vmatprep.mubr.f32.mxu0 0.0
        %3283 = vmatmul.mubr.f32.gmra.mrb[0].mxu0 %v3213
        %v3284 = vpop.f32.mrb[0].mxu0
        %v3285 = vadd.f32 0.0, %v3284
        %v3286 = vpop.f32.mrb[0].mxu0
        %3287 = vdwg.mxu0
        %v3289 = vsel %vm994, %v3044, 0
        %v3292 = vsel %vm994, %v2919, 0
        %3294 = vmatprep.subr.mxu0 0.0
        %3295 = vmatpush1.xpose.msra.mxu0 %v3292
        %3296 = vmatprep.subr.mxu0 0.0
        %3297 = vmatpush1.xpose.msra.mxu0 0.0
        %3298 = vmatprep.subr.mxu0 0.0
        %3299 = vmatpush1.xpose.msra.mxu0 0.0
        %3300 = vmatprep.subr.mxu0 0.0
        %3301 = vmatpush1.xpose.msra.mxu0 0.0
        %3302 = vmatprep.subr.mxu0 0.0
        %3303 = vmatpush1.xpose.msra.mxu0 0.0
        %3304 = vmatprep.subr.mxu0 0.0
        %3305 = vmatpush1.xpose.msra.mxu0 0.0
        %3306 = vmatprep.subr.mxu0 0.0
        %3307 = vmatpush1.xpose.msra.mxu0 0.0
        %3308 = vmatprep.subr.mxu0 0.0
        %3309 = vmatpush1.xpose.msra.mxu0 0.0
        %3310 = vmatprep.subr.mxu0 0.0
        %3311 = vmatpush1.xpose.msra.mxu0 0.0
        %3312 = vmatprep.subr.mxu0 0.0
        %3313 = vmatpush1.xpose.msra.mxu0 0.0
        %3314 = vmatprep.subr.mxu0 0.0
        %3315 = vmatpush1.xpose.msra.mxu0 0.0
        %3316 = vmatprep.subr.mxu0 0.0
        %3317 = vmatpush1.xpose.msra.mxu0 0.0
        %3318 = vmatprep.subr.mxu0 0.0
        %3319 = vmatpush1.xpose.msra.mxu0 0.0
        %3320 = vmatprep.subr.mxu0 0.0
        %3321 = vmatpush1.xpose.msra.mxu0 0.0
        %3322 = vmatprep.subr.mxu0 0.0
        %3323 = vmatpush1.xpose.msra.mxu0 0.0
        %3324 = vmatprep.subr.mxu0 0.0
        %3325 = vmatpush1.xpose.msra.mxu0 0.0
        %3326 = vmatprep.subr.mxu0 0.0
        %3327 = vmatpush1.xpose.msra.mxu0 0.0
        %3328 = vmatprep.subr.mxu0 0.0
        %3329 = vmatpush1.xpose.msra.mxu0 0.0
        %3330 = vmatprep.subr.mxu0 0.0
        %3331 = vmatpush1.xpose.msra.mxu0 0.0
        %3332 = vmatprep.subr.mxu0 0.0
        %3333 = vmatpush1.xpose.msra.mxu0 0.0
        %3334 = vmatprep.subr.mxu0 0.0
        %3335 = vmatpush1.xpose.msra.mxu0 0.0
        %3336 = vmatprep.subr.mxu0 0.0
        %3337 = vmatpush1.xpose.msra.mxu0 0.0
        %3338 = vmatprep.subr.mxu0 0.0
        %3339 = vmatpush1.xpose.msra.mxu0 0.0
        %3340 = vmatprep.subr.mxu0 0.0
        %3341 = vmatpush1.xpose.msra.mxu0 0.0
        %3342 = vmatprep.subr.mxu0 0.0
        %3343 = vmatpush1.xpose.msra.mxu0 0.0
        %3344 = vmatprep.subr.mxu0 0.0
        %3345 = vmatpush1.xpose.msra.mxu0 0.0
        %3346 = vmatprep.subr.mxu0 0.0
        %3347 = vmatpush1.xpose.msra.mxu0 0.0
        %3348 = vmatprep.subr.mxu0 0.0
        %3349 = vmatpush1.xpose.msra.mxu0 0.0
        %3350 = vmatprep.subr.mxu0 0.0
        %3351 = vmatpush1.xpose.msra.mxu0 0.0
        %3352 = vmatprep.subr.mxu0 0.0
        %3353 = vmatpush1.xpose.msra.mxu0 0.0
        %3354 = vmatprep.subr.mxu0 0.0
        %3355 = vmatpush1.xpose.msra.mxu0 0.0
        %3356 = vmatprep.subr.mxu0 0.0
        %3357 = vmatpush1.xpose.msra.mxu0 0.0
        %3358 = vmatprep.mubr.f32.mxu0 0.0
        %3359 = vmatmul.mubr.f32.gmra.mrb[0].mxu0 %v3289
        %v3360 = vpop.f32.mrb[0].mxu0
        %v3361 = vadd.f32 0.0, %v3360
        %v3362 = vpop.f32.mrb[0].mxu0
        %3363 = vdwg.mxu0
        %3364 = vxpose.xlu0.b32.start [1/16] %v3133, 128
        %3365 = vxpose.xlu0.b32.cont [2/16] 0.0, 128
        %3366 = vxpose.xlu0.b32.cont [3/16] 0.0, 128
        %3367 = vxpose.xlu0.b32.cont [4/16] 0.0, 128
        %3368 = vxpose.xlu0.b32.cont [5/16] 0.0, 128
        %3369 = vxpose.xlu0.b32.cont [6/16] 0.0, 128
        %3370 = vxpose.xlu0.b32.cont [7/16] 0.0, 128
        %3371 = vxpose.xlu0.b32.cont [8/16] 0.0, 128
        %3372 = vxpose.xlu0.b32.cont [9/16] 0.0, 128
        %3373 = vxpose.xlu0.b32.cont [10/16] 0.0, 128
        %3374 = vxpose.xlu0.b32.cont [11/16] 0.0, 128
        %3375 = vxpose.xlu0.b32.cont [12/16] 0.0, 128
        %3376 = vxpose.xlu0.b32.cont [13/16] 0.0, 128
        %3377 = vxpose.xlu0.b32.cont [14/16] 0.0, 128
        %3378 = vxpose.xlu0.b32.cont [15/16] 0.0, 128
        %3379 = vxpose.xlu0.b32.end [16/16] 0.0, 128
        %v3380 = vpop.trf.xlu0
        %v3381 = vpop.trf.xlu0
        %v3382 = vpop.trf.xlu0
        %v3383 = vpop.trf.xlu0
        %v3384 = vpop.trf.xlu0
        %v3385 = vpop.trf.xlu0
        %v3386 = vpop.trf.xlu0
        %v3387 = vpop.trf.xlu0
        %v3388 = vpop.trf.xlu0
        %v3389 = vpop.trf.xlu0
        %v3390 = vpop.trf.xlu0
        %v3391 = vpop.trf.xlu0
        %v3392 = vpop.trf.xlu0
        %v3393 = vpop.trf.xlu0
        %v3394 = vpop.trf.xlu0
        %v3395 = vpop.trf.xlu0
        %3396 = vxpose.xlu0.b32.start [1/16] %v3209, 128
        %3397 = vxpose.xlu0.b32.cont [2/16] 0.0, 128
        %3398 = vxpose.xlu0.b32.cont [3/16] 0.0, 128
        %3399 = vxpose.xlu0.b32.cont [4/16] 0.0, 128
        %3400 = vxpose.xlu0.b32.cont [5/16] 0.0, 128
        %3401 = vxpose.xlu0.b32.cont [6/16] 0.0, 128
        %3402 = vxpose.xlu0.b32.cont [7/16] 0.0, 128
        %3403 = vxpose.xlu0.b32.cont [8/16] 0.0, 128
        %3404 = vxpose.xlu0.b32.cont [9/16] 0.0, 128
        %3405 = vxpose.xlu0.b32.cont [10/16] 0.0, 128
        %3406 = vxpose.xlu0.b32.cont [11/16] 0.0, 128
        %3407 = vxpose.xlu0.b32.cont [12/16] 0.0, 128
        %3408 = vxpose.xlu0.b32.cont [13/16] 0.0, 128
        %3409 = vxpose.xlu0.b32.cont [14/16] 0.0, 128
        %3410 = vxpose.xlu0.b32.cont [15/16] 0.0, 128
        %3411 = vxpose.xlu0.b32.end [16/16] 0.0, 128
        %v3412 = vpop.trf.xlu0
        %v3413 = vpop.trf.xlu0
        %v3414 = vpop.trf.xlu0
        %v3415 = vpop.trf.xlu0
        %v3416 = vpop.trf.xlu0
        %v3417 = vpop.trf.xlu0
        %v3418 = vpop.trf.xlu0
        %v3419 = vpop.trf.xlu0
        %v3420 = vpop.trf.xlu0
        %v3421 = vpop.trf.xlu0
        %v3422 = vpop.trf.xlu0
        %v3423 = vpop.trf.xlu0
        %v3424 = vpop.trf.xlu0
        %v3425 = vpop.trf.xlu0
        %v3426 = vpop.trf.xlu0
        %v3427 = vpop.trf.xlu0
        %3428 = vxpose.xlu0.b32.start [1/16] %v3285, 128
        %3429 = vxpose.xlu0.b32.cont [2/16] 0.0, 128
        %3430 = vxpose.xlu0.b32.cont [3/16] 0.0, 128
        %3431 = vxpose.xlu0.b32.cont [4/16] 0.0, 128
        %3432 = vxpose.xlu0.b32.cont [5/16] 0.0, 128
        %3433 = vxpose.xlu0.b32.cont [6/16] 0.0, 128
        %3434 = vxpose.xlu0.b32.cont [7/16] 0.0, 128
        %3435 = vxpose.xlu0.b32.cont [8/16] 0.0, 128
        %3436 = vxpose.xlu0.b32.cont [9/16] 0.0, 128
        %3437 = vxpose.xlu0.b32.cont [10/16] 0.0, 128
        %3438 = vxpose.xlu0.b32.cont [11/16] 0.0, 128
        %3439 = vxpose.xlu0.b32.cont [12/16] 0.0, 128
        %3440 = vxpose.xlu0.b32.cont [13/16] 0.0, 128
        %3441 = vxpose.xlu0.b32.cont [14/16] 0.0, 128
        %3442 = vxpose.xlu0.b32.cont [15/16] 0.0, 128
        %3443 = vxpose.xlu0.b32.end [16/16] 0.0, 128
        %v3444 = vpop.trf.xlu0
        %v3445 = vpop.trf.xlu0
        %v3446 = vpop.trf.xlu0
        %v3447 = vpop.trf.xlu0
        %v3448 = vpop.trf.xlu0
        %v3449 = vpop.trf.xlu0
        %v3450 = vpop.trf.xlu0
        %v3451 = vpop.trf.xlu0
        %v3452 = vpop.trf.xlu0
        %v3453 = vpop.trf.xlu0
        %v3454 = vpop.trf.xlu0
        %v3455 = vpop.trf.xlu0
        %v3456 = vpop.trf.xlu0
        %v3457 = vpop.trf.xlu0
        %v3458 = vpop.trf.xlu0
        %v3459 = vpop.trf.xlu0
        %3460 = vxpose.xlu0.b32.start [1/16] %v3361, 128
        %3461 = vxpose.xlu0.b32.cont [2/16] 0.0, 128
        %3462 = vxpose.xlu0.b32.cont [3/16] 0.0, 128
        %3463 = vxpose.xlu0.b32.cont [4/16] 0.0, 128
        %3464 = vxpose.xlu0.b32.cont [5/16] 0.0, 128
        %3465 = vxpose.xlu0.b32.cont [6/16] 0.0, 128
        %3466 = vxpose.xlu0.b32.cont [7/16] 0.0, 128
        %3467 = vxpose.xlu0.b32.cont [8/16] 0.0, 128
        %3468 = vxpose.xlu0.b32.cont [9/16] 0.0, 128
        %3469 = vxpose.xlu0.b32.cont [10/16] 0.0, 128
        %3470 = vxpose.xlu0.b32.cont [11/16] 0.0, 128
        %3471 = vxpose.xlu0.b32.cont [12/16] 0.0, 128
        %3472 = vxpose.xlu0.b32.cont [13/16] 0.0, 128
        %3473 = vxpose.xlu0.b32.cont [14/16] 0.0, 128
        %3474 = vxpose.xlu0.b32.cont [15/16] 0.0, 128
        %3475 = vxpose.xlu0.b32.end [16/16] 0.0, 128
        %v3476 = vpop.trf.xlu0
        %v3477 = vpop.trf.xlu0
        %v3478 = vpop.trf.xlu0
        %v3479 = vpop.trf.xlu0
        %v3480 = vpop.trf.xlu0
        %v3481 = vpop.trf.xlu0
        %v3482 = vpop.trf.xlu0
        %v3483 = vpop.trf.xlu0
        %v3484 = vpop.trf.xlu0
        %v3485 = vpop.trf.xlu0
        %v3486 = vpop.trf.xlu0
        %v3487 = vpop.trf.xlu0
        %v3488 = vpop.trf.xlu0
        %v3489 = vpop.trf.xlu0
        %v3490 = vpop.trf.xlu0
        %v3491 = vpop.trf.xlu0
        %v3492 = vcombine.low %v3380, %v3444
        %v3493 = vcombine.high %v3380, %v3444
        %v3495 = vunpack.c.l.s4 1983009808
        %v3496 = vunpack.c.0.s8 %v3495
        %v3497 = vlaneseq
        %v3498 = vshrl.u32 %v3497, 7
        %v3499 = vsub.s32 %v3496, %v3498
        %v3500 = vrot.slane %v3492, %v3499
        %v3502 = vunpack.c.l.s4 1983009808
        %v3503 = vunpack.c.0.s8 %v3502
        %v3504 = vlaneseq
        %v3505 = vshrl.u32 %v3504, 7
        %v3506 = vsub.s32 %v3503, %v3505
        %v3507 = vrot.slane %v3493, %v3506
        %v3508 = vcombine.low %v3412, %v3476
        %v3509 = vcombine.high %v3412, %v3476
        %v3511 = vunpack.c.l.s4 1983009808
        %v3512 = vunpack.c.0.s8 %v3511
        %v3513 = vlaneseq
        %v3514 = vshrl.u32 %v3513, 7
        %v3515 = vsub.s32 %v3512, %v3514
        %v3516 = vrot.slane %v3508, %v3515
        %v3518 = vunpack.c.l.s4 1983009808
        %v3519 = vunpack.c.0.s8 %v3518
        %v3520 = vlaneseq
        %v3521 = vshrl.u32 %v3520, 7
        %v3522 = vsub.s32 %v3519, %v3521
        %v3523 = vrot.slane %v3509, %v3522
        %v3524 = vcombine.low %v3500, %v3516
        %v3525 = vcombine.high %v3500, %v3516
        %v3527 = vunpack.c.l.s4 1934713408
        %v3528 = vunpack.c.0.s8 %v3527
        %v3529 = vlaneseq
        %v3530 = vshrl.u32 %v3529, 7
        %v3531 = vsub.s32 %v3528, %v3530
        %v3532 = vrot.slane %v3524, %v3531
        %v3534 = vunpack.c.l.s4 1934713408
        %v3535 = vunpack.c.0.s8 %v3534
        %v3536 = vlaneseq
        %v3537 = vshrl.u32 %v3536, 7
        %v3538 = vsub.s32 %v3535, %v3537
        %v3539 = vrot.slane %v3525, %v3538
        %v3540 = vcombine.low %v3507, %v3523
        %v3541 = vcombine.high %v3507, %v3523
        %v3543 = vunpack.c.l.s4 1934713408
        %v3544 = vunpack.c.0.s8 %v3543
        %v3545 = vlaneseq
        %v3546 = vshrl.u32 %v3545, 7
        %v3547 = vsub.s32 %v3544, %v3546
        %v3548 = vrot.slane %v3540, %v3547
        %v3550 = vunpack.c.l.s4 1934713408
        %v3551 = vunpack.c.0.s8 %v3550
        %v3552 = vlaneseq
        %v3553 = vshrl.u32 %v3552, 7
        %v3554 = vsub.s32 %v3551, %v3553
        %v3555 = vrot.slane %v3541, %v3554
        %v3556 = vcombine.high %v3532, 0.0
        %v3557 = vcombine.high %v3539, 0.0
        %v3558 = vcombine.high %v3548, 0.0
        %v3559 = vcombine.high %v3555, 0.0
        %v3560 = vcombine.low %v3532, %v3539
        %v3562 = vunpack.c.l.s4 1983009808
        %v3563 = vunpack.c.0.s8 %v3562
        %v3564 = vlaneseq
        %v3565 = vshrl.u32 %v3564, 7
        %v3566 = vsub.s32 %v3563, %v3565
        %v3567 = vrot.slane %v3560, %v3566
        %v3568 = vcombine.low %v3556, %v3557
        %v3570 = vunpack.c.l.s4 1983009808
        %v3571 = vunpack.c.0.s8 %v3570
        %v3572 = vlaneseq
        %v3573 = vshrl.u32 %v3572, 7
        %v3574 = vsub.s32 %v3571, %v3573
        %v3575 = vrot.slane %v3568, %v3574
        %v3576 = vcombine.low %v3548, %v3555
        %v3578 = vunpack.c.l.s4 1983009808
        %v3579 = vunpack.c.0.s8 %v3578
        %v3580 = vlaneseq
        %v3581 = vshrl.u32 %v3580, 7
        %v3582 = vsub.s32 %v3579, %v3581
        %v3583 = vrot.slane %v3576, %v3582
        %v3584 = vcombine.low %v3558, %v3559
        %v3586 = vunpack.c.l.s4 1983009808
        %v3587 = vunpack.c.0.s8 %v3586
        %v3588 = vlaneseq
        %v3589 = vshrl.u32 %v3588, 7
        %v3590 = vsub.s32 %v3587, %v3589
        %v3591 = vrot.slane %v3584, %v3590
        %v3592 = vcombine.low %v3567, %v3575
        %v3593 = vcombine.high %v3567, %v3575
        %v3595 = vunpack.c.l.s4 1934713408
        %v3596 = vunpack.c.0.s8 %v3595
        %v3597 = vlaneseq
        %v3598 = vshrl.u32 %v3597, 7
        %v3599 = vsub.s32 %v3596, %v3598
        %v3600 = vrot.slane %v3592, %v3599
        %v3602 = vunpack.c.l.s4 1934713408
        %v3603 = vunpack.c.0.s8 %v3602
        %v3604 = vlaneseq
        %v3605 = vshrl.u32 %v3604, 7
        %v3606 = vsub.s32 %v3603, %v3605
        %v3607 = vrot.slane %v3593, %v3606
        %v3608 = vcombine.low %v3583, %v3591
        %v3609 = vcombine.high %v3583, %v3591
        %v3611 = vunpack.c.l.s4 1934713408
        %v3612 = vunpack.c.0.s8 %v3611
        %v3613 = vlaneseq
        %v3614 = vshrl.u32 %v3613, 7
        %v3615 = vsub.s32 %v3612, %v3614
        %v3616 = vrot.slane %v3608, %v3615
        %v3618 = vunpack.c.l.s4 1934713408
        %v3619 = vunpack.c.0.s8 %v3618
        %v3620 = vlaneseq
        %v3621 = vshrl.u32 %v3620, 7
        %v3622 = vsub.s32 %v3619, %v3621
        %v3623 = vrot.slane %v3609, %v3622
        %v3624 = vcombine.low %v3600, %v3616
        %v3625 = vcombine.high %v3600, %v3616
        %v3626 = vcombine.low %v3607, %v3623
        %v3627 = vcombine.high %v3607, %v3623
        %3629 = vrot.lane.b32.xlu0 %v3625, 8
        %v3630 = vpop.permute.xlu0 %3629
        %3633 = vrot.lane.b32.xlu0 %v3626, 16
        %v3634 = vpop.permute.xlu0 %3633
        %3637 = vrot.lane.b32.xlu0 %v3627, 24
        %v3638 = vpop.permute.xlu0 %3637
        %v3640 = vsel %vm994, %v3624, %v3630
        %v3641 = vsel %vm2058, %v3640, %v3634
        %v3642 = vsel %vm2060, %v3641, %v3638
        %v3643 = vpack.c.bf16 %v3642, %v3642
        %s3644 = scalar_lea.vmem [#allocation10], 16
        %v3645 = vld [vmem:[%s3644] sm:$0xf]
        %v3646 = vld [vmem:[%s3644 + $0x4] sm:$0xf]
        %v3647 = vld [vmem:[%s3644 + $0x8] sm:$0xf]
        %v3648 = vld [vmem:[%s3644 + $0xc] sm:$0xf]
        %s3649 = scalar_lea.vmem [#allocation11], 1
        %v3650 = vld [vmem:[%s3649] sm:$0x1]
        %v3652 = vlaneseq
        %v3653 = vshrl.u32 %v3652, 7
        %v3654 = vsub.s32 0, %v3653
        %v3655 = vrot.slane %v3650, %v3654
        %v3661 = vunpack.c.l.b16 %v3645
        %v3662 = vunpack.c.l.b16 %v3646
        %v3663 = vunpack.c.l.b16 %v3647
        %v3664 = vunpack.c.l.b16 %v3648
        %v3665 = vpack.c.b16 %v3662, %v3661
        %v3666 = vpack.c.b16 %v3664, %v3663
        %v3670 = vsel %vm758, %v3643, 0
        %3672 = vmatprep.subr.bf16.mxu0 0
        %3673 = vmatpush1.bf16.msra.mxu0 %v3665
        %3674 = vmatprep.subr.bf16.mxu0 0
        %3675 = vmatpush1.bf16.msra.mxu0 %v3666
        %3676 = vmatprep.subr.bf16.mxu0 0
        %3677 = vmatpush1.bf16.msra.mxu0 0
        %3678 = vmatprep.subr.bf16.mxu0 0
        %3679 = vmatpush1.bf16.msra.mxu0 0
        %3680 = vmatprep.subr.bf16.mxu0 0
        %3681 = vmatpush1.bf16.msra.mxu0 0
        %3682 = vmatprep.subr.bf16.mxu0 0
        %3683 = vmatpush1.bf16.msra.mxu0 0
        %3684 = vmatprep.subr.bf16.mxu0 0
        %3685 = vmatpush1.bf16.msra.mxu0 0
        %3686 = vmatprep.subr.bf16.mxu0 0
        %3687 = vmatpush1.bf16.msra.mxu0 0
        %3688 = vmatprep.subr.bf16.mxu0 0
        %3689 = vmatpush1.bf16.msra.mxu0 0
        %3690 = vmatprep.subr.bf16.mxu0 0
        %3691 = vmatpush1.bf16.msra.mxu0 0
        %3692 = vmatprep.subr.bf16.mxu0 0
        %3693 = vmatpush1.bf16.msra.mxu0 0
        %3694 = vmatprep.subr.bf16.mxu0 0
        %3695 = vmatpush1.bf16.msra.mxu0 0
        %3696 = vmatprep.subr.bf16.mxu0 0
        %3697 = vmatpush1.bf16.msra.mxu0 0
        %3698 = vmatprep.subr.bf16.mxu0 0
        %3699 = vmatpush1.bf16.msra.mxu0 0
        %3700 = vmatprep.subr.bf16.mxu0 0
        %3701 = vmatpush1.bf16.msra.mxu0 0
        %3702 = vmatprep.subr.bf16.mxu0 0
        %3703 = vmatpush1.bf16.msra.mxu0 0
        %3704 = vmatprep.mubr.bf16.mxu0 0
        %3705 = vmatmul.mubr.bf16.gmra.mrb[0].mxu0 %v3670
        %v3706 = vpop.f32.mrb[0].mxu0
        %v3707 = vadd.f32 %v3655, %v3706
        %v3708 = vpop.f32.mrb[0].mxu0
        %v3709 = vpop.f32.mrb[0].mxu0
        %v3710 = vpop.f32.mrb[0].mxu0
        %3711 = vdwg.mxu0
        %v3712 = vadd.f32 %v2340, %v3707
        %s3713 = scalar_lea.vmem [#allocation13], 1
        %v3714 = vld [vmem:[%s3713] sm:$0x1]
        %s3715 = scalar_lea.vmem [#allocation14], 1
        %v3716 = vld [vmem:[%s3715] sm:$0x1]
        %v3717 = vsel %vm758, %v3712, 0.0
        %3718 = vadd.xlane.f32.xlu0 %v3717
        %v3719 = vpop.xlane.xlu0 %3718
        %v3720 = vmul.f32 %v3719, %v762
        %v3721 = vsub.f32 %v3712, %v3720
        %v3722 = vmul.f32 %v3721, %v3721
        %v3723 = vsel %vm758, %v3722, 0.0
        %3724 = vadd.xlane.f32.xlu0 %v3723
        %v3725 = vpop.xlane.xlu0 %3724
        %v3726 = vmul.f32 %v3725, %v762
        %v3727 = vadd.f32 %v3726, 1e-05
        %v3728 = vrsqrt.pop %v3727
        %v3729 = vmul.f32 %v3721, %v3728
        %v3731 = vlaneseq
        %v3732 = vshrl.u32 %v3731, 7
        %v3733 = vsub.s32 0, %v3732
        %v3734 = vrot.slane %v3714, %v3733
        %v3736 = vmul.f32 %v3729, %v3734
        %v3738 = vlaneseq
        %v3739 = vshrl.u32 %v3738, 7
        %v3740 = vsub.s32 0, %v3739
        %v3741 = vrot.slane %v3716, %v3740
        %v3743 = vadd.f32 %v3736, %v3741
        %v3744 = vpack.c.bf16 %v3743, %v3743
        %s3745 = scalar_lea.vmem [#allocation16], 16
        %v3746 = vld [vmem:[%s3745] sm:$0xf]
        %v3747 = vld [vmem:[%s3745 + $0x4] sm:$0xf]
        %v3748 = vld [vmem:[%s3745 + $0x8] sm:$0xf]
        %v3749 = vld [vmem:[%s3745 + $0xc] sm:$0xf]
        %s3750 = scalar_lea.vmem [#allocation17], 1
        %v3751 = vld [vmem:[%s3750] sm:$0x1]
        %v3753 = vlaneseq
        %v3754 = vshrl.u32 %v3753, 7
        %v3755 = vsub.s32 0, %v3754
        %v3756 = vrot.slane %v3751, %v3755
        %v3762 = vunpack.c.l.b16 %v3746
        %v3763 = vunpack.c.l.b16 %v3747
        %v3764 = vunpack.c.l.b16 %v3748
        %v3765 = vunpack.c.l.b16 %v3749
        %v3766 = vpack.c.b16 %v3763, %v3762
        %v3767 = vpack.c.b16 %v3765, %v3764
        %v3771 = vsel %vm758, %v3744, 0
        %3773 = vmatprep.subr.bf16.mxu0 0
        %3774 = vmatpush1.bf16.msra.mxu0 %v3766
        %3775 = vmatprep.subr.bf16.mxu0 0
        %3776 = vmatpush1.bf16.msra.mxu0 %v3767
        %3777 = vmatprep.subr.bf16.mxu0 0
        %3778 = vmatpush1.bf16.msra.mxu0 0
        %3779 = vmatprep.subr.bf16.mxu0 0
        %3780 = vmatpush1.bf16.msra.mxu0 0
        %3781 = vmatprep.subr.bf16.mxu0 0
        %3782 = vmatpush1.bf16.msra.mxu0 0
        %3783 = vmatprep.subr.bf16.mxu0 0
        %3784 = vmatpush1.bf16.msra.mxu0 0
        %3785 = vmatprep.subr.bf16.mxu0 0
        %3786 = vmatpush1.bf16.msra.mxu0 0
        %3787 = vmatprep.subr.bf16.mxu0 0
        %3788 = vmatpush1.bf16.msra.mxu0 0
        %3789 = vmatprep.subr.bf16.mxu0 0
        %3790 = vmatpush1.bf16.msra.mxu0 0
        %3791 = vmatprep.subr.bf16.mxu0 0
        %3792 = vmatpush1.bf16.msra.mxu0 0
        %3793 = vmatprep.subr.bf16.mxu0 0
        %3794 = vmatpush1.bf16.msra.mxu0 0
        %3795 = vmatprep.subr.bf16.mxu0 0
        %3796 = vmatpush1.bf16.msra.mxu0 0
        %3797 = vmatprep.subr.bf16.mxu0 0
        %3798 = vmatpush1.bf16.msra.mxu0 0
        %3799 = vmatprep.subr.bf16.mxu0 0
        %3800 = vmatpush1.bf16.msra.mxu0 0
        %3801 = vmatprep.subr.bf16.mxu0 0
        %3802 = vmatpush1.bf16.msra.mxu0 0
        %3803 = vmatprep.subr.bf16.mxu0 0
        %3804 = vmatpush1.bf16.msra.mxu0 0
        %3805 = vmatprep.mubr.bf16.mxu0 0
        %3806 = vmatmul.mubr.bf16.gmra.mrb[0].mxu0 %v3771
        %v3807 = vpop.f32.mrb[0].mxu0
        %v3808 = vadd.f32 %v3756, %v3807
        %v3809 = vpop.f32.mrb[0].mxu0
        %v3810 = vpop.f32.mrb[0].mxu0
        %v3811 = vpop.f32.mrb[0].mxu0
        %3812 = vdwg.mxu0
        %v3813 = vmax.f32 %v3808, 0.0
        %v3814 = vpack.c.bf16 %v3813, %v3813
        %s3815 = scalar_lea.vmem [#allocation19], 64
        %v3816 = vld [vmem:[%s3815] sm:$0xf]
        %v3817 = vld [vmem:[%s3815 + $0x4] sm:$0xf]
        %v3818 = vld [vmem:[%s3815 + $0x8] sm:$0xf]
        %v3819 = vld [vmem:[%s3815 + $0xc] sm:$0xf]
        %v3820 = vld [vmem:[%s3815 + $0x10] sm:$0xf]
        %v3821 = vld [vmem:[%s3815 + $0x14] sm:$0xf]
        %v3822 = vld [vmem:[%s3815 + $0x18] sm:$0xf]
        %v3823 = vld [vmem:[%s3815 + $0x1c] sm:$0xf]
        %v3824 = vld [vmem:[%s3815 + $0x20] sm:$0xf]
        %v3825 = vld [vmem:[%s3815 + $0x24] sm:$0xf]
        %v3826 = vld [vmem:[%s3815 + $0x28] sm:$0xf]
        %v3827 = vld [vmem:[%s3815 + $0x2c] sm:$0xf]
        %v3828 = vld [vmem:[%s3815 + $0x30] sm:$0xf]
        %v3829 = vld [vmem:[%s3815 + $0x34] sm:$0xf]
        %v3830 = vld [vmem:[%s3815 + $0x38] sm:$0xf]
        %v3831 = vld [vmem:[%s3815 + $0x3c] sm:$0xf]
        %v3848 = vunpack.c.l.b16 %v3816
        %v3849 = vunpack.c.l.b16 %v3817
        %v3850 = vunpack.c.l.b16 %v3818
        %v3851 = vunpack.c.l.b16 %v3819
        %v3852 = vunpack.c.l.b16 %v3820
        %v3853 = vunpack.c.l.b16 %v3821
        %v3854 = vunpack.c.l.b16 %v3822
        %v3855 = vunpack.c.l.b16 %v3823
        %v3856 = vunpack.c.l.b16 %v3824
        %v3857 = vunpack.c.l.b16 %v3825
        %v3858 = vunpack.c.l.b16 %v3826
        %v3859 = vunpack.c.l.b16 %v3827
        %v3860 = vunpack.c.l.b16 %v3828
        %v3861 = vunpack.c.l.b16 %v3829
        %v3862 = vunpack.c.l.b16 %v3830
        %v3863 = vunpack.c.l.b16 %v3831
        %v3864 = vpack.c.b16 %v3849, %v3848
        %v3865 = vpack.c.b16 %v3851, %v3850
        %v3866 = vpack.c.b16 %v3853, %v3852
        %v3867 = vpack.c.b16 %v3855, %v3854
        %v3868 = vpack.c.b16 %v3857, %v3856
        %v3869 = vpack.c.b16 %v3859, %v3858
        %v3870 = vpack.c.b16 %v3861, %v3860
        %v3871 = vpack.c.b16 %v3863, %v3862
        %3880 = vmatprep.subr.bf16.mxu0 0
        %3881 = vmatpush1.bf16.msra.mxu0 %v3864
        %3882 = vmatprep.subr.bf16.mxu0 0
        %3883 = vmatpush1.bf16.msra.mxu0 %v3865
        %3884 = vmatprep.subr.bf16.mxu0 0
        %3885 = vmatpush1.bf16.msra.mxu0 %v3866
        %3886 = vmatprep.subr.bf16.mxu0 0
        %3887 = vmatpush1.bf16.msra.mxu0 %v3867
        %3888 = vmatprep.subr.bf16.mxu0 0
        %3889 = vmatpush1.bf16.msra.mxu0 %v3868
        %3890 = vmatprep.subr.bf16.mxu0 0
        %3891 = vmatpush1.bf16.msra.mxu0 %v3869
        %3892 = vmatprep.subr.bf16.mxu0 0
        %3893 = vmatpush1.bf16.msra.mxu0 %v3870
        %3894 = vmatprep.subr.bf16.mxu0 0
        %3895 = vmatpush1.bf16.msra.mxu0 %v3871
        %3896 = vmatprep.subr.bf16.mxu0 0
        %3897 = vmatpush1.bf16.msra.mxu0 0
        %3898 = vmatprep.subr.bf16.mxu0 0
        %3899 = vmatpush1.bf16.msra.mxu0 0
        %3900 = vmatprep.subr.bf16.mxu0 0
        %3901 = vmatpush1.bf16.msra.mxu0 0
        %3902 = vmatprep.subr.bf16.mxu0 0
        %3903 = vmatpush1.bf16.msra.mxu0 0
        %3904 = vmatprep.subr.bf16.mxu0 0
        %3905 = vmatpush1.bf16.msra.mxu0 0
        %3906 = vmatprep.subr.bf16.mxu0 0
        %3907 = vmatpush1.bf16.msra.mxu0 0
        %3908 = vmatprep.subr.bf16.mxu0 0
        %3909 = vmatpush1.bf16.msra.mxu0 0
        %3910 = vmatprep.subr.bf16.mxu0 0
        %3911 = vmatpush1.bf16.msra.mxu0 0
        %3912 = vmatprep.mubr.bf16.mxu0 0
        %3913 = vmatmul.mubr.bf16.gmra.mrb[0].mxu0 %v3814
        %v3914 = vpop.f32.mrb[0].mxu0
        %v3915 = vadd.f32 0.0, %v3914
        %v3916 = vpop.f32.mrb[0].mxu0
        %v3917 = vpop.f32.mrb[0].mxu0
        %v3918 = vpop.f32.mrb[0].mxu0
        %3919 = vdwg.mxu0
        %v3920 = vadd.f32 %v3712, %v3915
        %s3921 = scalar_lea.vmem [#allocation20], 1
        %v3922 = vld [vmem:[%s3921] sm:$0x1]
        %v3924 = vlaneseq
        %v3925 = vshrl.u32 %v3924, 7
        %v3926 = vsub.s32 0, %v3925
        %v3927 = vrot.slane %v3922, %v3926
        %v3929 = vadd.f32 %v3920, %v3927
        %v3930 = vld [vmem:[#allocation22] sm:$0x1]
        %v3931 = vld [vmem:[#allocation23] sm:$0x1]
        %v3932 = vsel %vm758, %v3929, 0.0
        %3933 = vadd.xlane.f32.xlu0 %v3932
        %v3934 = vpop.xlane.xlu0 %3933
        %v3935 = vmul.f32 %v3934, %v762
        %v3936 = vsub.f32 %v3929, %v3935
        %v3937 = vmul.f32 %v3936, %v3936
        %v3938 = vsel %vm758, %v3937, 0.0
        %3939 = vadd.xlane.f32.xlu0 %v3938
        %v3940 = vpop.xlane.xlu0 %3939
        %v3941 = vmul.f32 %v3940, %v762
        %v3942 = vadd.f32 %v3941, 1e-05
        %v3943 = vrsqrt.pop %v3942
        %v3944 = vmul.f32 %v3936, %v3943
        %v3946 = vlaneseq
        %v3947 = vshrl.u32 %v3946, 7
        %v3948 = vsub.s32 0, %v3947
        %v3949 = vrot.slane %v3930, %v3948
        %v3951 = vmul.f32 %v3944, %v3949
        %v3953 = vlaneseq
        %v3954 = vshrl.u32 %v3953, 7
        %v3955 = vsub.s32 0, %v3954
        %v3956 = vrot.slane %v3931, %v3955
        %v3958 = vadd.f32 %v3951, %v3956
        %v3959 = vpack.c.bf16 %v3958, %v3958
        %v3960 = vld [vmem:[#allocation25] sm:$0xf]
        %v3961 = vld [vmem:[#allocation25 + $0x4] sm:$0xf]
        %v3962 = vld [vmem:[#allocation25 + $0x8] sm:$0xf]
        %v3963 = vld [vmem:[#allocation25 + $0xc] sm:$0xf]
        %v3964 = vld [vmem:[#allocation26] sm:$0x1]
        %v3966 = vlaneseq
        %v3967 = vshrl.u32 %v3966, 7
        %v3968 = vsub.s32 0, %v3967
        %v3969 = vrot.slane %v3964, %v3968
        %v3975 = vunpack.c.l.b16 %v3960
        %v3976 = vunpack.c.l.b16 %v3961
        %v3977 = vunpack.c.l.b16 %v3962
        %v3978 = vunpack.c.l.b16 %v3963
        %v3979 = vpack.c.b16 %v3976, %v3975
        %v3980 = vpack.c.b16 %v3978, %v3977
        %v3984 = vsel %vm758, %v3959, 0
        %3986 = vmatprep.subr.bf16.mxu0 0
        %3987 = vmatpush1.bf16.msra.mxu0 %v3979
        %3988 = vmatprep.subr.bf16.mxu0 0
        %3989 = vmatpush1.bf16.msra.mxu0 %v3980
        %3990 = vmatprep.subr.bf16.mxu0 0
        %3991 = vmatpush1.bf16.msra.mxu0 0
        %3992 = vmatprep.subr.bf16.mxu0 0
        %3993 = vmatpush1.bf16.msra.mxu0 0
        %3994 = vmatprep.subr.bf16.mxu0 0
        %3995 = vmatpush1.bf16.msra.mxu0 0
        %3996 = vmatprep.subr.bf16.mxu0 0
        %3997 = vmatpush1.bf16.msra.mxu0 0
        %3998 = vmatprep.subr.bf16.mxu0 0
        %3999 = vmatpush1.bf16.msra.mxu0 0
        %4000 = vmatprep.subr.bf16.mxu0 0
        %4001 = vmatpush1.bf16.msra.mxu0 0
        %4002 = vmatprep.subr.bf16.mxu0 0
        %4003 = vmatpush1.bf16.msra.mxu0 0
        %4004 = vmatprep.subr.bf16.mxu0 0
        %4005 = vmatpush1.bf16.msra.mxu0 0
        %4006 = vmatprep.subr.bf16.mxu0 0
        %4007 = vmatpush1.bf16.msra.mxu0 0
        %4008 = vmatprep.subr.bf16.mxu0 0
        %4009 = vmatpush1.bf16.msra.mxu0 0
        %4010 = vmatprep.subr.bf16.mxu0 0
        %4011 = vmatpush1.bf16.msra.mxu0 0
        %4012 = vmatprep.subr.bf16.mxu0 0
        %4013 = vmatpush1.bf16.msra.mxu0 0
        %4014 = vmatprep.subr.bf16.mxu0 0
        %4015 = vmatpush1.bf16.msra.mxu0 0
        %4016 = vmatprep.subr.bf16.mxu0 0
        %4017 = vmatpush1.bf16.msra.mxu0 0
        %4018 = vmatprep.mubr.bf16.mxu0 0
        %4019 = vmatmul.mubr.bf16.gmra.mrb[0].mxu0 %v3984
        %v4020 = vpop.f32.mrb[0].mxu0
        %v4021 = vadd.f32 %v3969, %v4020
        %v4022 = vpop.f32.mrb[0].mxu0
        %v4023 = vpop.f32.mrb[0].mxu0
        %v4024 = vpop.f32.mrb[0].mxu0
        %4025 = vdwg.mxu0
        %4026 = vst [vmem:[%s748] sm:$0xff] %v4021
        %s4027 = sand.u32 %s390, 1
        %s4028 = scalar_lea.sflag [#allocation4], %s4027
        %s4029 = sand.u32 %s390, 1
        %s4030 = smul.addr %s4029, 8
        %s4031 = scalar_lea.vmem [#allocation28], %s4030
        // Predicated region
        $region149: #{tpu_custom_call.1} parent=83 // pred_check
          %p4032 = pneg %p400
        $region150: #{tpu_custom_call.1} parent=83 // pred_check_branch
          %4034 = sbr.rel (%p4032) target = $region152
        $region151: #{tpu_custom_call.1} parent=83 // pred_region
          %s4036 = ssub.s32 128, 128
          %4037 = vsyncadd %s4028, %s4036
          %s4038 = smul.addr %s41, 128
          %s4039 = scalar_lea.hbm %s16, %s4038
          %s4041 = sshll.u32 %s4031, 4
          %s4042 = int_to_ptr.vmem [resolvable:$true] %s4041
          %4044 = dma.vmem_to_hbm [thread:$0]  %s4042, 128, %s4039, %s4028
        $region152: #{tpu_custom_call.1} parent=83 // pred_fallthru
          _
      $region84: #{tpu_custom_call.1} parent=5 // pred_fallthru
        _
      %p4045 = scmp.le.s32.totalorder 2, %s36
      // Predicated region
      $region153: #{tpu_custom_call.1} parent=5 // pred_check
        %p4046 = pneg %p4045
      $region154: #{tpu_custom_call.1} parent=5 // pred_check_branch
        %4048 = sbr.rel (%p4046) target = $region156
      $region155: #{tpu_custom_call.1} parent=5 // pred_region
        %s4049 = ssub.s32 %s36, 2
        // Predicated region
        $region157: #{tpu_custom_call.1} parent=155 // pred_check
          %p4050 = pneg %p406
        $region158: #{tpu_custom_call.1} parent=155 // pred_check_branch
          %4052 = sbr.rel (%p4050) target = $region160
        $region159: #{tpu_custom_call.1} parent=155 // pred_region
          %s4053 = sand.u32 %s391, 1
          %s4054 = scalar_lea.sflag [#allocation4], %s4053
          %s4055 = sand.u32 %s391, 1
          %s4056 = smul.addr %s4055, 8
          %s4057 = scalar_lea.vmem [#allocation28], %s4056
          %4058 = dma.done %s4054, 128
        $region160: #{tpu_custom_call.1} parent=155 // pred_fallthru
          _
      $region156: #{tpu_custom_call.1} parent=5 // pred_fallthru
        _
    $region6: #{tpu_custom_call.1} parent=1 // loop_footer
      %s40 = sadd.s32 1, %s36
    $region7: #{tpu_custom_call.1} parent=1 // loop_footer_branch
      %35 = sbr.rel target = $region3
    $region8: #{tpu_custom_call.1} parent=1 // loop_exit
      _
    %4059 = vsyncpa [#allocation3], 1
    %s4060 = scalar_lea.sflag [#allocation3], 1
    %4061 = vsyncpa %s4060, 1
    %4062 = vsyncpa [#allocation6], 1
    %4063 = vsyncpa [#allocation9], 1
    %4064 = vsyncpa [#allocation12], 1
    %4065 = vsyncpa [#allocation15], 1
    %4066 = vsyncpa [#allocation18], 1
    %4067 = vsyncpa [#allocation21], 1
    %4068 = vsyncpa [#allocation24], 1
    %4069 = vsyncpa [#allocation27], 1
    %4070 = vsyncpa [#allocation4], 1
    %s4071 = scalar_lea.sflag [#allocation4], 1
    %4072 = vsyncpa %s4071, 1

</llo_original>
